<compile_context>
chip_gen: v5e
topology: v5e:2x2
jax: 0.10.0
libtpu: 0.0.40
codegen_flags: <defaults>
</compile_context>

<pallas_src>
import functools

import jax
import jax.numpy as jnp
from jax.experimental import pallas as pl
from jax.experimental.pallas import tpu as pltpu


# ---------------------------------------------------------------------------
# Kernel
# ---------------------------------------------------------------------------

def _tnet_kernel(x_ref, w1_ref, b1_ref, w2_ref, b2_ref, w3_ref, b3_ref,
                 w4_ref, b4_ref, w5_ref, b5_ref, w6_ref, b6_ref,
                 out_ref, pooled_ref, *, tn, n_valid, mask_rows):
    """One (batch, N-tile) step: conv stack + running max; FC fused on last tile."""
    n_idx = pl.program_id(1)
    last = pl.num_programs(1) - 1

    # Initialize the running max on the first N tile of this batch element.
    @pl.when(n_idx == 0)
    def _():
        pooled_ref[...] = jnp.full(pooled_ref.shape, -jnp.inf, pooled_ref.dtype)

    x = x_ref[0]                                                      # (TN, KP) f32

    # conv1: tiny contraction (K padded to 8) -- keep f32.
    h = jnp.dot(x, w1_ref[...], preferred_element_type=jnp.float32)   # (TN, 64)
    h = jnp.maximum(h + b1_ref[...], 0.0)

    # conv2 / conv3: heavy matmuls in bf16, f32 accumulation.
    h = jnp.dot(h.astype(jnp.bfloat16), w2_ref[...],
                preferred_element_type=jnp.float32)                   # (TN, 128)
    h = jnp.maximum(h + b2_ref[...], 0.0)

    h = jnp.dot(h.astype(jnp.bfloat16), w3_ref[...],
                preferred_element_type=jnp.float32)                   # (TN, 1024)
    # conv3 bias + ReLU are hoisted past the max-pool (bias commutes with max,
    # ReLU is monotone) and applied once in the finalize below.
    h = h.astype(pooled_ref.dtype)   # bf16 epilogue on v6e/v7x, f32 on v5e

    def accumulate(tile):
        pooled_ref[...] = jnp.maximum(
            pooled_ref[...], jnp.max(tile, axis=0, keepdims=True))    # (1, 1024)

    if mask_rows:
        # Padded point rows exist only in the last N tile; mask them there only
        # (they would otherwise contribute raw conv3 values to the max).
        @pl.when(n_idx != last)
        def _():
            accumulate(h)

        @pl.when(n_idx == last)
        def _():
            row = n_idx * tn + jax.lax.broadcasted_iota(jnp.int32, (tn, 1), 0)
            accumulate(jnp.where(row < n_valid, h, -jnp.inf))
    else:
        accumulate(h)

    # Finalize on the last N tile: hoisted conv3 bias/ReLU + fused FC stack.
    @pl.when(n_idx == last)
    def _():
        p = jnp.maximum(pooled_ref[...].astype(jnp.float32) + b3_ref[...], 0.0)
        f = jnp.dot(p.astype(jnp.bfloat16), w4_ref[...],
                    preferred_element_type=jnp.float32)               # (1, 512)
        f = jnp.maximum(f + b4_ref[...], 0.0)
        f = jnp.dot(f.astype(jnp.bfloat16), w5_ref[...],
                    preferred_element_type=jnp.float32)               # (1, 256)
        f = jnp.maximum(f + b5_ref[...], 0.0)
        out = jnp.dot(f, w6_ref[...], preferred_element_type=jnp.float32)
        out_ref[0] = out + b6_ref[...]                                # (1, k*k)


# ---------------------------------------------------------------------------
# Wrapper (plain-JAX glue: BN folding, padding, one pallas_call)
# ---------------------------------------------------------------------------

def _fold_bn(W, b, gamma, beta, mean, var, eps=1e-5):
    """Fold eval-mode BatchNorm into a preceding (out,in) linear layer.

    Returns W_folded with shape (in, out) (ready for x @ W) and bias (1, out).
    """
    scale = gamma / jnp.sqrt(var + eps)                 # (out,)
    Wf = (W * scale[:, None]).T                         # (in, out)
    bf = b * scale + beta - mean * scale                # (out,)
    return Wf, bf[None, :]


def _round_up(x, m):
    return (x + m - 1) // m * m


def _epilogue_dtype():
    # bf16 VPU exists on v6e / v7x; keep the f32 epilogue on v5e / older.
    try:
        kind = jax.devices()[0].device_kind.lower()
    except Exception:
        return jnp.float32
    if "v6" in kind or "v7" in kind or "7x" in kind:
        return jnp.bfloat16
    return jnp.float32


def tnet_forward(x_ncw, params, *, tn=None):
    """x_ncw: (B, k, N) float32, PyTorch Conv1d layout. Returns (B, k, k)."""
    B, k, N = x_ncw.shape

    # ---- fold BN into conv / fc weights (glue, plain JAX) ----
    w1, b1 = _fold_bn(params["conv1_w"], params["conv1_b"], *params["bn1"])
    w2, b2 = _fold_bn(params["conv2_w"], params["conv2_b"], *params["bn2"])
    w3, b3 = _fold_bn(params["conv3_w"], params["conv3_b"], *params["bn3"])
    w4, b4 = _fold_bn(params["fc1_w"], params["fc1_b"], *params["bn4"])
    w5, b5 = _fold_bn(params["fc2_w"], params["fc2_b"], *params["bn5"])
    w6 = params["fc3_w"].T                              # (256, k*k)
    # Fold the identity matrix into the fc3 bias (drops the post-kernel add).
    b6 = (params["fc3_b"]
          + jnp.eye(k, dtype=jnp.float32).reshape(-1))[None, :]        # (1, k*k)

    # bf16 weights for the heavy matmuls; accumulation stays f32 in-kernel.
    w2 = w2.astype(jnp.bfloat16)
    w3 = w3.astype(jnp.bfloat16)
    w4 = w4.astype(jnp.bfloat16)
    w5 = w5.astype(jnp.bfloat16)

    c3 = w3.shape[1]                                    # 1024

    # N tile: multiple of 8 sublanes; 2048 cap keeps the (TN,1024) activation
    # slab + resident weights ~16 MiB, under the explicit 48 MiB VMEM limit.
    if tn is None:
        tn = min(2048, _round_up(N, 8))
    tn = _round_up(tn, 8)
    n_pad = _round_up(N, tn)

    # Pad K (3 -> 8) for lane-friendlier input loads; zero rows in w1 => no-op.
    kp = max(8, _round_up(k, 8))
    x = jnp.transpose(x_ncw, (0, 2, 1))                 # (B, N, k)
    x = jnp.pad(x, ((0, 0), (0, n_pad - N), (0, kp - k)))
    w1 = jnp.pad(w1, ((0, kp - k), (0, 0)))             # (KP, 64)

    def const_spec(arr):
        nd = arr.ndim
        # NOTE: single-buffering these constant blocks (pl.Buffered(1)) would
        # trim ~1 MiB of VMEM; skipped since there is ample headroom.
        return pl.BlockSpec(arr.shape, lambda b, n, _nd=nd: (0,) * _nd)

    weights = [w1, b1, w2, b2, w3, b3, w4, b4, w5, b5, w6, b6]
    kernel = functools.partial(_tnet_kernel, tn=tn, n_valid=N,
                               mask_rows=(n_pad != N))

    out = pl.pallas_call(
        kernel,
        grid=(B, n_pad // tn),
        in_specs=[pl.BlockSpec((1, tn, kp), lambda b, n: (b, n, 0))]
                 + [const_spec(w) for w in weights],
        out_specs=pl.BlockSpec((1, 1, k * k), lambda b, n: (b, 0, 0)),
        out_shape=jax.ShapeDtypeStruct((B, 1, k * k), jnp.float32),
        scratch_shapes=[pltpu.VMEM((1, c3), _epilogue_dtype())],
        compiler_params=pltpu.CompilerParams(
            dimension_semantics=("parallel", "arbitrary"),
            vmem_limit_bytes=48 * 1024 * 1024),
    )(x, *weights)

    return out.reshape(B, k, k)


# ---------------------------------------------------------------------------
# Pure-JAX reference (eval-mode BN) and parameter init
# ---------------------------------------------------------------------------

def tnet_reference(x_ncw, params):
    x = jnp.transpose(x_ncw, (0, 2, 1))                 # (B, N, k)

    def bn(h, p):
        gamma, beta, mean, var = p
        return gamma * (h - mean) / jnp.sqrt(var + 1e-5) + beta

    h = jax.nn.relu(bn(x @ params["conv1_w"].T + params["conv1_b"], params["bn1"]))
    h = jax.nn.relu(bn(h @ params["conv2_w"].T + params["conv2_b"], params["bn2"]))
    h = jax.nn.relu(bn(h @ params["conv3_w"].T + params["conv3_b"], params["bn3"]))
    pooled = jnp.max(h, axis=1)                         # (B, 1024)
    h = jax.nn.relu(bn(pooled @ params["fc1_w"].T + params["fc1_b"], params["bn4"]))
    h = jax.nn.relu(bn(h @ params["fc2_w"].T + params["fc2_b"], params["bn5"]))
    out = h @ params["fc3_w"].T + params["fc3_b"]
    B, k = x.shape[0], x_ncw.shape[1]
    return out.reshape(B, k, k) + jnp.eye(k, dtype=jnp.float32)[None]


def init_params(key, k=3):
    dims_conv = [(64, k), (128, 64), (1024, 128)]
    dims_fc = [(512, 1024), (256, 512), (k * k, 256)]
    names_lin = ["conv1", "conv2", "conv3", "fc1", "fc2", "fc3"]
    bn_dims = [64, 128, 1024, 512, 256]

    keys = jax.random.split(key, 64)
    ki = iter(range(64))
    params = {}
    for name, (cout, cin) in zip(names_lin, dims_conv + dims_fc):
        params[f"{name}_w"] = 0.05 * jax.random.normal(
            keys[next(ki)], (cout, cin), jnp.float32)
        params[f"{name}_b"] = 0.01 * jax.random.normal(
            keys[next(ki)], (cout,), jnp.float32)
    for i, c in enumerate(bn_dims, start=1):
        gamma = 1.0 + 0.1 * jax.random.normal(keys[next(ki)], (c,), jnp.float32)
        beta = 0.05 * jax.random.normal(keys[next(ki)], (c,), jnp.float32)
        mean = 0.02 * jax.random.normal(keys[next(ki)], (c,), jnp.float32)
        var = 1.0 + 0.1 * jnp.abs(
            jax.random.normal(keys[next(ki)], (c,), jnp.float32))
        params[f"bn{i}"] = (gamma, beta, mean, var)
    return params


if __name__ == "__main__":
    key = jax.random.PRNGKey(0)
    k_feat = 3            # Tnet(k=3)
    B, N = 2, 80          # small: pads N to 96 with tn=32 -> 3 N tiles + masking
    k_x, k_p = jax.random.split(key)

    x = jax.random.normal(k_x, (B, k_feat, N), jnp.float32)   # PyTorch NCW layout
    params = init_params(k_p, k=k_feat)

    matrix = tnet_forward(x, params, tn=32)
    jax.block_until_ready(matrix)
    assert matrix.shape == (B, k_feat, k_feat)

    ref = tnet_reference(x, params)
    err = float(jnp.max(jnp.abs(matrix - ref)))
    assert err < 0.1, f"max abs err {err}"
    print("KERNEL_OK")
</pallas_src>

<mosaic_0001>
module attributes {stable_mosaic.version = 11 : i64} {
  func.func @_tnet_kernel(%arg0: i32, %arg1: i32, %arg2: memref<1x32x8xf32, #tpu.memory_space<vmem>>, %arg3: memref<8x64xf32, #tpu.memory_space<vmem>>, %arg4: memref<1x64xf32, #tpu.memory_space<vmem>>, %arg5: memref<64x128xbf16, #tpu.memory_space<vmem>>, %arg6: memref<1x128xf32, #tpu.memory_space<vmem>>, %arg7: memref<128x1024xbf16, #tpu.memory_space<vmem>>, %arg8: memref<1x1024xf32, #tpu.memory_space<vmem>>, %arg9: memref<1024x512xbf16, #tpu.memory_space<vmem>>, %arg10: memref<1x512xf32, #tpu.memory_space<vmem>>, %arg11: memref<512x256xbf16, #tpu.memory_space<vmem>>, %arg12: memref<1x256xf32, #tpu.memory_space<vmem>>, %arg13: memref<256x9xf32, #tpu.memory_space<vmem>>, %arg14: memref<1x9xf32, #tpu.memory_space<vmem>>, %arg15: memref<1x1x9xf32, #tpu.memory_space<vmem>>, %arg16: memref<1x1024xf32, #tpu.memory_space<vmem>>) attributes {dimension_semantics = [#tpu.dimension_semantics<parallel>, #tpu.dimension_semantics<arbitrary>], iteration_bounds = array<i64: 2, 3>, scalar_prefetch = 0 : i64, scratch_operands = 1 : i64, tpu.core_type = #tpu.core_type<tc>, window_params = [{transform_indices = @transform_0, window_bounds = array<i64: 1, 32, 8>}, {pipeline_mode = #tpu.pipeline_mode<synchronous>, transform_indices = @transform_1, window_bounds = array<i64: 8, 64>}, {pipeline_mode = #tpu.pipeline_mode<synchronous>, transform_indices = @transform_2, window_bounds = array<i64: 1, 64>}, {pipeline_mode = #tpu.pipeline_mode<synchronous>, transform_indices = @transform_3, window_bounds = array<i64: 64, 128>}, {pipeline_mode = #tpu.pipeline_mode<synchronous>, transform_indices = @transform_4, window_bounds = array<i64: 1, 128>}, {pipeline_mode = #tpu.pipeline_mode<synchronous>, transform_indices = @transform_5, window_bounds = array<i64: 128, 1024>}, {pipeline_mode = #tpu.pipeline_mode<synchronous>, transform_indices = @transform_6, window_bounds = array<i64: 1, 1024>}, {pipeline_mode = #tpu.pipeline_mode<synchronous>, transform_indices = @transform_7, window_bounds = array<i64: 1024, 512>}, {pipeline_mode = #tpu.pipeline_mode<synchronous>, transform_indices = @transform_8, window_bounds = array<i64: 1, 512>}, {pipeline_mode = #tpu.pipeline_mode<synchronous>, transform_indices = @transform_9, window_bounds = array<i64: 512, 256>}, {pipeline_mode = #tpu.pipeline_mode<synchronous>, transform_indices = @transform_10, window_bounds = array<i64: 1, 256>}, {pipeline_mode = #tpu.pipeline_mode<synchronous>, transform_indices = @transform_11, window_bounds = array<i64: 256, 9>}, {pipeline_mode = #tpu.pipeline_mode<synchronous>, transform_indices = @transform_12, window_bounds = array<i64: 1, 9>}, {transform_indices = @transform_13, window_bounds = array<i64: 1, 1, 9>}]} {
    %c0_i32 = arith.constant 0 : i32
    %0 = arith.cmpi eq, %arg1, %c0_i32 : i32
    %1 = arith.extui %0 : i1 to i32
    %c0_i32_0 = arith.constant 0 : i32
    %2 = arith.cmpi ne, %1, %c0_i32_0 : i32
    scf.if %2 {
      %cst_22 = arith.constant 0xFF800000 : f32
      %32 = vector.broadcast %cst_22 : f32 to vector<1x1024xf32>
      %c0_23 = arith.constant 0 : index
      %c0_24 = arith.constant 0 : index
      %33 = vector.load %arg16[%c0_23, %c0_24] : memref<1x1024xf32, #tpu.memory_space<vmem>>, vector<1x1024xf32>
      tpu.vector_store %arg16[%c0_23, %c0_24], %32 {strides = array<i32>} : memref<1x1024xf32, #tpu.memory_space<vmem>>, vector<1x1024xf32>,
    } else {
    }
    %c0 = arith.constant 0 : index
    %c0_1 = arith.constant 0 : index
    %c0_2 = arith.constant 0 : index
    %3 = vector.load %arg2[%c0, %c0_1, %c0_2] : memref<1x32x8xf32, #tpu.memory_space<vmem>>, vector<1x32x8xf32>
    %4 = vector.shape_cast %3 : vector<1x32x8xf32> to vector<32x8xf32>
    %c0_3 = arith.constant 0 : index
    %c0_4 = arith.constant 0 : index
    %5 = vector.load %arg3[%c0_3, %c0_4] : memref<8x64xf32, #tpu.memory_space<vmem>>, vector<8x64xf32>
    %cst = arith.constant dense<0.000000e+00> : vector<32x64xf32>
    %6 = tpu.matmul %4, %5, %cst {dimension_numbers = #tpu.dot_dimension_numbers<[1], [0], [0], [1], [0, 0, 1, 1], [], []>} : vector<32x8xf32>, vector<8x64xf32>, vector<32x64xf32> -> vector<32x64xf32>
    %c0_5 = arith.constant 0 : index
    %c0_6 = arith.constant 0 : index
    %7 = vector.load %arg4[%c0_5, %c0_6] : memref<1x64xf32, #tpu.memory_space<vmem>>, vector<1x64xf32>
    %8 = vector.broadcast %7 : vector<1x64xf32> to vector<32x64xf32>
    %9 = arith.addf %6, %8 : vector<32x64xf32>
    %cst_7 = arith.constant 0.000000e+00 : f32
    %10 = vector.broadcast %cst_7 : f32 to vector<32x64xf32>
    %11 = arith.maximumf %9, %10 : vector<32x64xf32>
    %12 = arith.truncf %11 : vector<32x64xf32> to vector<32x64xbf16>
    %c0_8 = arith.constant 0 : index
    %c0_9 = arith.constant 0 : index
    %13 = vector.load %arg5[%c0_8, %c0_9] : memref<64x128xbf16, #tpu.memory_space<vmem>>, vector<64x128xbf16>
    %cst_10 = arith.constant dense<0.000000e+00> : vector<32x128xf32>
    %14 = tpu.matmul %12, %13, %cst_10 {dimension_numbers = #tpu.dot_dimension_numbers<[1], [0], [0], [1], [0, 0, 1, 1], [], []>} : vector<32x64xbf16>, vector<64x128xbf16>, vector<32x128xf32> -> vector<32x128xf32>
    %c0_11 = arith.constant 0 : index
    %c0_12 = arith.constant 0 : index
    %15 = vector.load %arg6[%c0_11, %c0_12] : memref<1x128xf32, #tpu.memory_space<vmem>>, vector<1x128xf32>
    %16 = vector.broadcast %15 : vector<1x128xf32> to vector<32x128xf32>
    %17 = arith.addf %14, %16 : vector<32x128xf32>
    %cst_13 = arith.constant 0.000000e+00 : f32
    %18 = vector.broadcast %cst_13 : f32 to vector<32x128xf32>
    %19 = arith.maximumf %17, %18 : vector<32x128xf32>
    %20 = arith.truncf %19 : vector<32x128xf32> to vector<32x128xbf16>
    %c0_14 = arith.constant 0 : index
    %c0_15 = arith.constant 0 : index
    %21 = vector.load %arg7[%c0_14, %c0_15] : memref<128x1024xbf16, #tpu.memory_space<vmem>>, vector<128x1024xbf16>
    %cst_16 = arith.constant dense<0.000000e+00> : vector<32x1024xf32>
    %22 = tpu.matmul %20, %21, %cst_16 {dimension_numbers = #tpu.dot_dimension_numbers<[1], [0], [0], [1], [0, 0, 1, 1], [], []>} : vector<32x128xbf16>, vector<128x1024xbf16>, vector<32x1024xf32> -> vector<32x1024xf32>
    %c2_i32 = arith.constant 2 : i32
    %23 = arith.cmpi ne, %arg1, %c2_i32 : i32
    %24 = arith.extui %23 : i1 to i32
    %c0_i32_17 = arith.constant 0 : i32
    %25 = arith.cmpi ne, %24, %c0_i32_17 : i32
    scf.if %25 {
      %c0_22 = arith.constant 0 : index
      %c0_23 = arith.constant 0 : index
      %32 = vector.load %arg16[%c0_22, %c0_23] : memref<1x1024xf32, #tpu.memory_space<vmem>>, vector<1x1024xf32>
      %cst_24 = arith.constant dense<0xFF800000> : vector<1024xf32>
      %33 = vector.multi_reduction <maximumf>, %22, %cst_24 [0] : vector<32x1024xf32> to vector<1024xf32>
      %34 = vector.shape_cast %33 : vector<1024xf32> to vector<1x1024xf32>
      %35 = arith.maximumf %32, %34 : vector<1x1024xf32>
      %c0_25 = arith.constant 0 : index
      %c0_26 = arith.constant 0 : index
      %36 = vector.load %arg16[%c0_25, %c0_26] : memref<1x1024xf32, #tpu.memory_space<vmem>>, vector<1x1024xf32>
      tpu.vector_store %arg16[%c0_25, %c0_26], %35 {strides = array<i32>} : memref<1x1024xf32, #tpu.memory_space<vmem>>, vector<1x1024xf32>,
    } else {
    }
    %c2_i32_18 = arith.constant 2 : i32
    %26 = arith.cmpi eq, %arg1, %c2_i32_18 : i32
    %27 = arith.extui %26 : i1 to i32
    %c0_i32_19 = arith.constant 0 : i32
    %28 = arith.cmpi ne, %27, %c0_i32_19 : i32
    scf.if %28 {
      %c32_i32 = arith.constant 32 : i32
      %32 = arith.muli %arg1, %c32_i32 : i32
      %33 = tpu.iota {dimensions = array<i32: 0>} : vector<32x1xi32>
      %34 = vector.broadcast %32 : i32 to vector<32x1xi32>
      %35 = arith.addi %34, %33 : vector<32x1xi32>
      %c80_i32 = arith.constant 80 : i32
      %36 = vector.broadcast %c80_i32 : i32 to vector<32x1xi32>
      %37 = arith.cmpi slt, %35, %36 : vector<32x1xi32>
      %cst_22 = arith.constant 0xFF800000 : f32
      %38 = vector.shape_cast %37 : vector<32x1xi1> to vector<32x1xi1>
      %39 = vector.broadcast %38 : vector<32x1xi1> to vector<32x1024xi1>
      %40 = vector.broadcast %cst_22 : f32 to vector<32x1024xf32>
      %41 = arith.select %39, %22, %40 : vector<32x1024xi1>, vector<32x1024xf32>
      %c0_23 = arith.constant 0 : index
      %c0_24 = arith.constant 0 : index
      %42 = vector.load %arg16[%c0_23, %c0_24] : memref<1x1024xf32, #tpu.memory_space<vmem>>, vector<1x1024xf32>
      %cst_25 = arith.constant dense<0xFF800000> : vector<1024xf32>
      %43 = vector.multi_reduction <maximumf>, %41, %cst_25 [0] : vector<32x1024xf32> to vector<1024xf32>
      %44 = vector.shape_cast %43 : vector<1024xf32> to vector<1x1024xf32>
      %45 = arith.maximumf %42, %44 : vector<1x1024xf32>
      %c0_26 = arith.constant 0 : index
      %c0_27 = arith.constant 0 : index
      %46 = vector.load %arg16[%c0_26, %c0_27] : memref<1x1024xf32, #tpu.memory_space<vmem>>, vector<1x1024xf32>
      tpu.vector_store %arg16[%c0_26, %c0_27], %45 {strides = array<i32>} : memref<1x1024xf32, #tpu.memory_space<vmem>>, vector<1x1024xf32>,
    } else {
    }
    %c2_i32_20 = arith.constant 2 : i32
    %29 = arith.cmpi eq, %arg1, %c2_i32_20 : i32
    %30 = arith.extui %29 : i1 to i32
    %c0_i32_21 = arith.constant 0 : i32
    %31 = arith.cmpi ne, %30, %c0_i32_21 : i32
    scf.if %31 {
      %c0_22 = arith.constant 0 : index
      %c0_23 = arith.constant 0 : index
      %32 = vector.load %arg16[%c0_22, %c0_23] : memref<1x1024xf32, #tpu.memory_space<vmem>>, vector<1x1024xf32>
      %c0_24 = arith.constant 0 : index
      %c0_25 = arith.constant 0 : index
      %33 = vector.load %arg8[%c0_24, %c0_25] : memref<1x1024xf32, #tpu.memory_space<vmem>>, vector<1x1024xf32>
      %34 = arith.addf %32, %33 : vector<1x1024xf32>
      %cst_26 = arith.constant 0.000000e+00 : f32
      %35 = vector.broadcast %cst_26 : f32 to vector<1x1024xf32>
      %36 = arith.maximumf %34, %35 : vector<1x1024xf32>
      %37 = arith.truncf %36 : vector<1x1024xf32> to vector<1x1024xbf16>
      %c0_27 = arith.constant 0 : index
      %c0_28 = arith.constant 0 : index
      %38 = vector.load %arg9[%c0_27, %c0_28] : memref<1024x512xbf16, #tpu.memory_space<vmem>>, vector<1024x512xbf16>
      %cst_29 = arith.constant dense<0.000000e+00> : vector<1x512xf32>
      %39 = tpu.matmul %37, %38, %cst_29 {dimension_numbers = #tpu.dot_dimension_numbers<[1], [0], [0], [1], [0, 0, 1, 1], [], []>} : vector<1x1024xbf16>, vector<1024x512xbf16>, vector<1x512xf32> -> vector<1x512xf32>
      %c0_30 = arith.constant 0 : index
      %c0_31 = arith.constant 0 : index
      %40 = vector.load %arg10[%c0_30, %c0_31] : memref<1x512xf32, #tpu.memory_space<vmem>>, vector<1x512xf32>
      %41 = arith.addf %39, %40 : vector<1x512xf32>
      %cst_32 = arith.constant 0.000000e+00 : f32
      %42 = vector.broadcast %cst_32 : f32 to vector<1x512xf32>
      %43 = arith.maximumf %41, %42 : vector<1x512xf32>
      %44 = arith.truncf %43 : vector<1x512xf32> to vector<1x512xbf16>
      %c0_33 = arith.constant 0 : index
      %c0_34 = arith.constant 0 : index
      %45 = vector.load %arg11[%c0_33, %c0_34] : memref<512x256xbf16, #tpu.memory_space<vmem>>, vector<512x256xbf16>
      %cst_35 = arith.constant dense<0.000000e+00> : vector<1x256xf32>
      %46 = tpu.matmul %44, %45, %cst_35 {dimension_numbers = #tpu.dot_dimension_numbers<[1], [0], [0], [1], [0, 0, 1, 1], [], []>} : vector<1x512xbf16>, vector<512x256xbf16>, vector<1x256xf32> -> vector<1x256xf32>
      %c0_36 = arith.constant 0 : index
      %c0_37 = arith.constant 0 : index
      %47 = vector.load %arg12[%c0_36, %c0_37] : memref<1x256xf32, #tpu.memory_space<vmem>>, vector<1x256xf32>
      %48 = arith.addf %46, %47 : vector<1x256xf32>
      %cst_38 = arith.constant 0.000000e+00 : f32
      %49 = vector.broadcast %cst_38 : f32 to vector<1x256xf32>
      %50 = arith.maximumf %48, %49 : vector<1x256xf32>
      %c0_39 = arith.constant 0 : index
      %c0_40 = arith.constant 0 : index
      %51 = vector.load %arg13[%c0_39, %c0_40] : memref<256x9xf32, #tpu.memory_space<vmem>>, vector<256x9xf32>
      %cst_41 = arith.constant dense<0.000000e+00> : vector<1x9xf32>
      %52 = tpu.matmul %50, %51, %cst_41 {dimension_numbers = #tpu.dot_dimension_numbers<[1], [0], [0], [1], [0, 0, 1, 1], [], []>} : vector<1x256xf32>, vector<256x9xf32>, vector<1x9xf32> -> vector<1x9xf32>
      %c0_42 = arith.constant 0 : index
      %c0_43 = arith.constant 0 : index
      %53 = vector.load %arg14[%c0_42, %c0_43] : memref<1x9xf32, #tpu.memory_space<vmem>>, vector<1x9xf32>
      %54 = arith.addf %52, %53 : vector<1x9xf32>
      %c0_44 = arith.constant 0 : index
      %c0_45 = arith.constant 0 : index
      %c0_46 = arith.constant 0 : index
      %55 = vector.load %arg15[%c0_44, %c0_45, %c0_46] : memref<1x1x9xf32, #tpu.memory_space<vmem>>, vector<1x1x9xf32>
      %56 = vector.shape_cast %55 : vector<1x1x9xf32> to vector<1x9xf32>
      %57 = vector.shape_cast %54 : vector<1x9xf32> to vector<1x1x9xf32>
      tpu.vector_store %arg15[%c0_44, %c0_45, %c0_46], %57 {strides = array<i32>} : memref<1x1x9xf32, #tpu.memory_space<vmem>>, vector<1x1x9xf32>,
    } else {
    }
    return
  }
  func.func @transform_0(%arg0: i32, %arg1: i32) -> (i32, i32, i32) {
    %c0_i32 = arith.constant 0 : i32
    %c0_i32_0 = arith.constant 0 : i32
    return %arg0, %arg1, %c0_i32 : i32, i32, i32
  }
  func.func @transform_1(%arg0: i32, %arg1: i32) -> (i32, i32) {
    %c0_i32 = arith.constant 0 : i32
    %c0_i32_0 = arith.constant 0 : i32
    %c0_i32_1 = arith.constant 0 : i32
    return %c0_i32, %c0_i32_0 : i32, i32
  }
  func.func @transform_2(%arg0: i32, %arg1: i32) -> (i32, i32) {
    %c0_i32 = arith.constant 0 : i32
    %c0_i32_0 = arith.constant 0 : i32
    %c0_i32_1 = arith.constant 0 : i32
    return %c0_i32, %c0_i32_0 : i32, i32
  }
  func.func @transform_3(%arg0: i32, %arg1: i32) -> (i32, i32) {
    %c0_i32 = arith.constant 0 : i32
    %c0_i32_0 = arith.constant 0 : i32
    %c0_i32_1 = arith.constant 0 : i32
    return %c0_i32, %c0_i32_0 : i32, i32
  }
  func.func @transform_4(%arg0: i32, %arg1: i32) -> (i32, i32) {
    %c0_i32 = arith.constant 0 : i32
    %c0_i32_0 = arith.constant 0 : i32
    %c0_i32_1 = arith.constant 0 : i32
    return %c0_i32, %c0_i32_0 : i32, i32
  }
  func.func @transform_5(%arg0: i32, %arg1: i32) -> (i32, i32) {
    %c0_i32 = arith.constant 0 : i32
    %c0_i32_0 = arith.constant 0 : i32
    %c0_i32_1 = arith.constant 0 : i32
    return %c0_i32, %c0_i32_0 : i32, i32
  }
  func.func @transform_6(%arg0: i32, %arg1: i32) -> (i32, i32) {
    %c0_i32 = arith.constant 0 : i32
    %c0_i32_0 = arith.constant 0 : i32
    %c0_i32_1 = arith.constant 0 : i32
    return %c0_i32, %c0_i32_0 : i32, i32
  }
  func.func @transform_7(%arg0: i32, %arg1: i32) -> (i32, i32) {
    %c0_i32 = arith.constant 0 : i32
    %c0_i32_0 = arith.constant 0 : i32
    %c0_i32_1 = arith.constant 0 : i32
    return %c0_i32, %c0_i32_0 : i32, i32
  }
  func.func @transform_8(%arg0: i32, %arg1: i32) -> (i32, i32) {
    %c0_i32 = arith.constant 0 : i32
    %c0_i32_0 = arith.constant 0 : i32
    %c0_i32_1 = arith.constant 0 : i32
    return %c0_i32, %c0_i32_0 : i32, i32
  }
  func.func @transform_9(%arg0: i32, %arg1: i32) -> (i32, i32) {
    %c0_i32 = arith.constant 0 : i32
    %c0_i32_0 = arith.constant 0 : i32
    %c0_i32_1 = arith.constant 0 : i32
    return %c0_i32, %c0_i32_0 : i32, i32
  }
  func.func @transform_10(%arg0: i32, %arg1: i32) -> (i32, i32) {
    %c0_i32 = arith.constant 0 : i32
    %c0_i32_0 = arith.constant 0 : i32
    %c0_i32_1 = arith.constant 0 : i32
    return %c0_i32, %c0_i32_0 : i32, i32
  }
  func.func @transform_11(%arg0: i32, %arg1: i32) -> (i32, i32) {
    %c0_i32 = arith.constant 0 : i32
    %c0_i32_0 = arith.constant 0 : i32
    %c0_i32_1 = arith.constant 0 : i32
    return %c0_i32, %c0_i32_0 : i32, i32
  }
  func.func @transform_12(%arg0: i32, %arg1: i32) -> (i32, i32) {
    %c0_i32 = arith.constant 0 : i32
    %c0_i32_0 = arith.constant 0 : i32
    %c0_i32_1 = arith.constant 0 : i32
    return %c0_i32, %c0_i32_0 : i32, i32
  }
  func.func @transform_13(%arg0: i32, %arg1: i32) -> (i32, i32, i32) {
    %c0_i32 = arith.constant 0 : i32
    %c0_i32_0 = arith.constant 0 : i32
    %c0_i32_1 = arith.constant 0 : i32
    return %arg0, %c0_i32, %c0_i32_0 : i32, i32, i32
  }
}

</mosaic_0001>

<llo_original>
// kernel: tpu_custom_call.1
$region0: #{tpu_custom_call.1}
  #allocation0 [shape = 'u32[]', space=smem, size = 0x4, offset = 0x4, fixed_abs, tag = 'smem constant byte address 0x4 - core index']
  #allocation1 [shape = 'u32[72,128]{1,0:T(1,128)}', space=vmem, size = 0x9000, scoped, tag = 'internal scratch']
  #allocation2 [shape = 'f32[1,1024]{1,0:T(1,128)}', space=vmem, size = 0x1000, scoped, tag = 'scratch operand']
  %s0 = inlined_call_operand.vmem [shape: f32[2,96,8], index: 0, kind: input, shape index: {}]
  %s1 = inlined_call_operand.vmem [shape: f32[8,64], index: 1, kind: input, shape index: {}]
  %s2 = inlined_call_operand.vmem [shape: f32[1,64], index: 2, kind: input, shape index: {}]
  %s3 = inlined_call_operand.vmem [shape: bf16[64,128], index: 3, kind: input, shape index: {}]
  %s4 = inlined_call_operand.vmem [shape: f32[1,128], index: 4, kind: input, shape index: {}]
  %s5 = inlined_call_operand.hbm [shape: bf16[128,1024], index: 5, kind: input, shape index: {}]
  %s6 = inlined_call_operand.vmem [shape: f32[1,1024], index: 6, kind: input, shape index: {}]
  %s7 = inlined_call_operand.hbm [shape: bf16[1024,512], index: 7, kind: input, shape index: {}]
  %s8 = inlined_call_operand.vmem [shape: f32[1,512], index: 8, kind: input, shape index: {}]
  %s9 = inlined_call_operand.hbm [shape: bf16[512,256], index: 9, kind: input, shape index: {}]
  %s10 = inlined_call_operand.vmem [shape: f32[1,256], index: 10, kind: input, shape index: {}]
  %s11 = inlined_call_operand.vmem [shape: f32[256,9], index: 11, kind: input, shape index: {}]
  %s12 = inlined_call_operand.vmem [shape: f32[1,9], index: 12, kind: input, shape index: {}]
  %s13 = inlined_call_operand.hbm [shape: f32[2,1,9], index: 13, kind: output, shape index: {}]
  %s14 = sld [smem:[#allocation0]]
  $region109: #{tpu_custom_call.1} parent=0
    _
  %s16 = ssub.s32 1, %s14
  %s17 = scalar_select 0, %s16, %s14
  $region1: #{tpu_custom_call.1} parent=0
    #allocation3 [shape = 'u8[262144]{0}', space=vmem, size = 0x40000, scoped, tag = 'input window, operand 5, single buffered']
    #allocation4 [shape = 's32[2]{0}', space=sflag, size = 0x8, scoped, tag = 'scoped memory for tpu_custom_call.1']
    #allocation5 [shape = 's32[2]{0}', space=sflag, size = 0x8, scoped, tag = 'scoped memory for tpu_custom_call.1']
    #allocation6 [shape = 'u8[1048576]{0}', space=vmem, size = 0x100000, scoped, tag = 'input window, operand 7, single buffered']
    #allocation7 [shape = 's32[1]{0}', space=sflag, size = 0x4, scoped, tag = 'scoped memory for tpu_custom_call.1']
    #allocation8 [shape = 'u8[262144]{0}', space=vmem, size = 0x40000, scoped, tag = 'input window, operand 9, single buffered']
    #allocation9 [shape = 'u8[1024]{0}', space=vmem, size = 0x400, scoped, tag = 'output window, operand 0']
    %18 = vsyncpa [#allocation4], 0
    %19 = vsyncpa [#allocation7], 0
    %20 = vsyncpa [#allocation5], 0
    %s21 = scalar_lea.sflag [#allocation5], 1
    %22 = vsyncpa %s21, 0
    loop: start=0, step=1, limit=8
    $region2: #{tpu_custom_call.1} parent=1 // loop_pre_header
      _
    $region3: #{tpu_custom_call.1} parent=1 // loop_header
      %s24 = sphi 0, %s28
      %p25 = scmp.ge.s32.totalorder %s24, 8
      %s31 = sphi 0, %s43
      %s32 = sphi 0, %s39
      %s33 = sphi 0, %s31
      %s34 = sphi 0, %s32
      %s35 = sphi 0, %s33
      %s36 = sphi 0, %s34
      %s48 = sphi 0, %s50
      %s51 = sphi 0, %s48
      %s52 = sphi 0, %s51
      %s68 = sphi 0, %s52
      %s72 = sphi 0, %s72
      %s74 = sphi 0, %s72
      %s75 = sphi 0, %s74
      %s89 = sphi 0, %s75
      %s93 = sphi 0, %s93
      %s95 = sphi 0, %s93
      %s96 = sphi 0, %s95
      %s110 = sphi 0, %s96
      %s114 = sphi 0, %s114
      %s116 = sphi 0, %s114
      %s117 = sphi 0, %s116
      %s131 = sphi 0, %s117
      %s135 = sphi 0, %s135
      %s137 = sphi 0, %s135
      %s138 = sphi 0, %s137
      %s152 = sphi 0, %s138
      %s156 = sphi 0, %s156
      %s158 = sphi 0, %s156
      %s159 = sphi 0, %s158
      %s173 = sphi 0, %s159
      %s177 = sphi 0, %s177
      %s179 = sphi 0, %s177
      %s180 = sphi 0, %s179
      %s194 = sphi 0, %s180
      %s198 = sphi 0, %s198
      %s200 = sphi 0, %s198
      %s201 = sphi 0, %s200
      %s215 = sphi 0, %s201
      %s219 = sphi 0, %s219
      %s221 = sphi 0, %s219
      %s222 = sphi 0, %s221
      %s236 = sphi 0, %s222
      %s240 = sphi 0, %s240
      %s242 = sphi 0, %s240
      %s243 = sphi 0, %s242
      %s257 = sphi 0, %s243
      %s261 = sphi 0, %s261
      %s263 = sphi 0, %s261
      %s264 = sphi 0, %s263
      %s278 = sphi 0, %s264
      %s282 = sphi 0, %s282
      %s284 = sphi 0, %s282
      %s285 = sphi 0, %s284
      %s299 = sphi 0, %s285
      %s303 = sphi 0, %s303
      %s305 = sphi 0, %s303
      %s306 = sphi 0, %s305
      %s320 = sphi 0, %s306
      %s326 = sphi 0, %s328
      %s329 = sphi 0, %s326
      %s330 = sphi 0, %s329
      %s346 = sphi 0, %s330
    $region4: #{tpu_custom_call.1} parent=1 // loop_header_branch
      %27 = sbr.rel (%p25) target = $region8
    $region5: #{tpu_custom_call.1} parent=1 // loop_body
      %s29 = ssub.s32 %s24, 1
      %s30 = ssub.s32 %s24, 2
      %s37 = sadd.s32 1, %s32
      %p38 = scmp.ge.s32.totalorder %s37, 3
      %s39 = scalar_select %p38, 0, %s37
      %s40 = sadd.s32 1, %s31
      %s41 = scalar_select %p38, %s40, %s31
      %p42 = scmp.ge.s32.totalorder %s41, 2
      %s43 = scalar_select %p42, 0, %s41
      %s44 = ssub.s32 %s31, %s43
      %s45 = ssub.s32 %s32, %s39
      %s46 = sor.u32 %s44, %s45
      %p47 = scmp.eq.s32.totalorder %s46, 0
      %s49 = sadd.s32 %s48, 1
      %s50 = scalar_select %p47, %s48, %s49
      %p53 = pneg %p47
      %p54 = scmp.eq.s32.totalorder %s24, 5
      %p55 = por %p53, %p54
      %p56 = scmp.ne.s32.totalorder %s48, %s51
      %p57 = scmp.eq.s32.totalorder %s24, 0
      %p58 = por %p56, %p57
      %p59 = scmp.ne.s32.totalorder %s48, %s51
      %p60 = scmp.eq.s32.totalorder %s29, 5
      %p61 = por %p59, %p60
      %p62 = scmp.ne.s32.totalorder %s51, %s52
      %p63 = scmp.eq.s32.totalorder %s29, 0
      %p64 = por %p62, %p63
      %p65 = scmp.ne.s32.totalorder %s51, %s52
      %p66 = scmp.eq.s32.totalorder %s30, 5
      %p67 = por %p65, %p66
      %p69 = scmp.ne.s32.totalorder %s52, %s68
      %p70 = scmp.eq.s32.totalorder %s30, 0
      %p71 = por %p69, %p70
      %s73 = sadd.s32 %s72, 1
      %p76 = scmp.eq.s32.totalorder %s24, 5
      %p77 = scmp.ne.s32.totalorder %s72, %s74
      %p78 = scmp.eq.s32.totalorder %s24, 0
      %p79 = por %p77, %p78
      %p80 = scmp.ne.s32.totalorder %s72, %s74
      %p81 = scmp.eq.s32.totalorder %s29, 5
      %p82 = por %p80, %p81
      %p83 = scmp.ne.s32.totalorder %s74, %s75
      %p84 = scmp.eq.s32.totalorder %s29, 0
      %p85 = por %p83, %p84
      %p86 = scmp.ne.s32.totalorder %s74, %s75
      %p87 = scmp.eq.s32.totalorder %s30, 5
      %p88 = por %p86, %p87
      %p90 = scmp.ne.s32.totalorder %s75, %s89
      %p91 = scmp.eq.s32.totalorder %s30, 0
      %p92 = por %p90, %p91
      %s94 = sadd.s32 %s93, 1
      %p97 = scmp.eq.s32.totalorder %s24, 5
      %p98 = scmp.ne.s32.totalorder %s93, %s95
      %p99 = scmp.eq.s32.totalorder %s24, 0
      %p100 = por %p98, %p99
      %p101 = scmp.ne.s32.totalorder %s93, %s95
      %p102 = scmp.eq.s32.totalorder %s29, 5
      %p103 = por %p101, %p102
      %p104 = scmp.ne.s32.totalorder %s95, %s96
      %p105 = scmp.eq.s32.totalorder %s29, 0
      %p106 = por %p104, %p105
      %p107 = scmp.ne.s32.totalorder %s95, %s96
      %p108 = scmp.eq.s32.totalorder %s30, 5
      %p109 = por %p107, %p108
      %p111 = scmp.ne.s32.totalorder %s96, %s110
      %p112 = scmp.eq.s32.totalorder %s30, 0
      %p113 = por %p111, %p112
      %s115 = sadd.s32 %s114, 1
      %p118 = scmp.eq.s32.totalorder %s24, 5
      %p119 = scmp.ne.s32.totalorder %s114, %s116
      %p120 = scmp.eq.s32.totalorder %s24, 0
      %p121 = por %p119, %p120
      %p122 = scmp.ne.s32.totalorder %s114, %s116
      %p123 = scmp.eq.s32.totalorder %s29, 5
      %p124 = por %p122, %p123
      %p125 = scmp.ne.s32.totalorder %s116, %s117
      %p126 = scmp.eq.s32.totalorder %s29, 0
      %p127 = por %p125, %p126
      %p128 = scmp.ne.s32.totalorder %s116, %s117
      %p129 = scmp.eq.s32.totalorder %s30, 5
      %p130 = por %p128, %p129
      %p132 = scmp.ne.s32.totalorder %s117, %s131
      %p133 = scmp.eq.s32.totalorder %s30, 0
      %p134 = por %p132, %p133
      %s136 = sadd.s32 %s135, 1
      %p139 = scmp.eq.s32.totalorder %s24, 5
      %p140 = scmp.ne.s32.totalorder %s135, %s137
      %p141 = scmp.eq.s32.totalorder %s24, 0
      %p142 = por %p140, %p141
      %p143 = scmp.ne.s32.totalorder %s135, %s137
      %p144 = scmp.eq.s32.totalorder %s29, 5
      %p145 = por %p143, %p144
      %p146 = scmp.ne.s32.totalorder %s137, %s138
      %p147 = scmp.eq.s32.totalorder %s29, 0
      %p148 = por %p146, %p147
      %p149 = scmp.ne.s32.totalorder %s137, %s138
      %p150 = scmp.eq.s32.totalorder %s30, 5
      %p151 = por %p149, %p150
      %p153 = scmp.ne.s32.totalorder %s138, %s152
      %p154 = scmp.eq.s32.totalorder %s30, 0
      %p155 = por %p153, %p154
      %s157 = sadd.s32 %s156, 1
      %p160 = scmp.eq.s32.totalorder %s24, 5
      %p161 = scmp.ne.s32.totalorder %s156, %s158
      %p162 = scmp.eq.s32.totalorder %s24, 0
      %p163 = por %p161, %p162
      %p164 = scmp.ne.s32.totalorder %s156, %s158
      %p165 = scmp.eq.s32.totalorder %s29, 5
      %p166 = por %p164, %p165
      %p167 = scmp.ne.s32.totalorder %s158, %s159
      %p168 = scmp.eq.s32.totalorder %s29, 0
      %p169 = por %p167, %p168
      %p170 = scmp.ne.s32.totalorder %s158, %s159
      %p171 = scmp.eq.s32.totalorder %s30, 5
      %p172 = por %p170, %p171
      %p174 = scmp.ne.s32.totalorder %s159, %s173
      %p175 = scmp.eq.s32.totalorder %s30, 0
      %p176 = por %p174, %p175
      %s178 = sadd.s32 %s177, 1
      %p181 = scmp.eq.s32.totalorder %s24, 5
      %p182 = scmp.ne.s32.totalorder %s177, %s179
      %p183 = scmp.eq.s32.totalorder %s24, 0
      %p184 = por %p182, %p183
      %p185 = scmp.ne.s32.totalorder %s177, %s179
      %p186 = scmp.eq.s32.totalorder %s29, 5
      %p187 = por %p185, %p186
      %p188 = scmp.ne.s32.totalorder %s179, %s180
      %p189 = scmp.eq.s32.totalorder %s29, 0
      %p190 = por %p188, %p189
      %p191 = scmp.ne.s32.totalorder %s179, %s180
      %p192 = scmp.eq.s32.totalorder %s30, 5
      %p193 = por %p191, %p192
      %p195 = scmp.ne.s32.totalorder %s180, %s194
      %p196 = scmp.eq.s32.totalorder %s30, 0
      %p197 = por %p195, %p196
      %s199 = sadd.s32 %s198, 1
      %p202 = scmp.eq.s32.totalorder %s24, 5
      %p203 = scmp.ne.s32.totalorder %s198, %s200
      %p204 = scmp.eq.s32.totalorder %s24, 0
      %p205 = por %p203, %p204
      %p206 = scmp.ne.s32.totalorder %s198, %s200
      %p207 = scmp.eq.s32.totalorder %s29, 5
      %p208 = por %p206, %p207
      %p209 = scmp.ne.s32.totalorder %s200, %s201
      %p210 = scmp.eq.s32.totalorder %s29, 0
      %p211 = por %p209, %p210
      %p212 = scmp.ne.s32.totalorder %s200, %s201
      %p213 = scmp.eq.s32.totalorder %s30, 5
      %p214 = por %p212, %p213
      %p216 = scmp.ne.s32.totalorder %s201, %s215
      %p217 = scmp.eq.s32.totalorder %s30, 0
      %p218 = por %p216, %p217
      %s220 = sadd.s32 %s219, 1
      %p223 = scmp.eq.s32.totalorder %s24, 5
      %p224 = scmp.ne.s32.totalorder %s219, %s221
      %p225 = scmp.eq.s32.totalorder %s24, 0
      %p226 = por %p224, %p225
      %p227 = scmp.ne.s32.totalorder %s219, %s221
      %p228 = scmp.eq.s32.totalorder %s29, 5
      %p229 = por %p227, %p228
      %p230 = scmp.ne.s32.totalorder %s221, %s222
      %p231 = scmp.eq.s32.totalorder %s29, 0
      %p232 = por %p230, %p231
      %p233 = scmp.ne.s32.totalorder %s221, %s222
      %p234 = scmp.eq.s32.totalorder %s30, 5
      %p235 = por %p233, %p234
      %p237 = scmp.ne.s32.totalorder %s222, %s236
      %p238 = scmp.eq.s32.totalorder %s30, 0
      %p239 = por %p237, %p238
      %s241 = sadd.s32 %s240, 1
      %p244 = scmp.eq.s32.totalorder %s24, 5
      %p245 = scmp.ne.s32.totalorder %s240, %s242
      %p246 = scmp.eq.s32.totalorder %s24, 0
      %p247 = por %p245, %p246
      %p248 = scmp.ne.s32.totalorder %s240, %s242
      %p249 = scmp.eq.s32.totalorder %s29, 5
      %p250 = por %p248, %p249
      %p251 = scmp.ne.s32.totalorder %s242, %s243
      %p252 = scmp.eq.s32.totalorder %s29, 0
      %p253 = por %p251, %p252
      %p254 = scmp.ne.s32.totalorder %s242, %s243
      %p255 = scmp.eq.s32.totalorder %s30, 5
      %p256 = por %p254, %p255
      %p258 = scmp.ne.s32.totalorder %s243, %s257
      %p259 = scmp.eq.s32.totalorder %s30, 0
      %p260 = por %p258, %p259
      %s262 = sadd.s32 %s261, 1
      %p265 = scmp.eq.s32.totalorder %s24, 5
      %p266 = scmp.ne.s32.totalorder %s261, %s263
      %p267 = scmp.eq.s32.totalorder %s24, 0
      %p268 = por %p266, %p267
      %p269 = scmp.ne.s32.totalorder %s261, %s263
      %p270 = scmp.eq.s32.totalorder %s29, 5
      %p271 = por %p269, %p270
      %p272 = scmp.ne.s32.totalorder %s263, %s264
      %p273 = scmp.eq.s32.totalorder %s29, 0
      %p274 = por %p272, %p273
      %p275 = scmp.ne.s32.totalorder %s263, %s264
      %p276 = scmp.eq.s32.totalorder %s30, 5
      %p277 = por %p275, %p276
      %p279 = scmp.ne.s32.totalorder %s264, %s278
      %p280 = scmp.eq.s32.totalorder %s30, 0
      %p281 = por %p279, %p280
      %s283 = sadd.s32 %s282, 1
      %p286 = scmp.eq.s32.totalorder %s24, 5
      %p287 = scmp.ne.s32.totalorder %s282, %s284
      %p288 = scmp.eq.s32.totalorder %s24, 0
      %p289 = por %p287, %p288
      %p290 = scmp.ne.s32.totalorder %s282, %s284
      %p291 = scmp.eq.s32.totalorder %s29, 5
      %p292 = por %p290, %p291
      %p293 = scmp.ne.s32.totalorder %s284, %s285
      %p294 = scmp.eq.s32.totalorder %s29, 0
      %p295 = por %p293, %p294
      %p296 = scmp.ne.s32.totalorder %s284, %s285
      %p297 = scmp.eq.s32.totalorder %s30, 5
      %p298 = por %p296, %p297
      %p300 = scmp.ne.s32.totalorder %s285, %s299
      %p301 = scmp.eq.s32.totalorder %s30, 0
      %p302 = por %p300, %p301
      %s304 = sadd.s32 %s303, 1
      %p307 = scmp.eq.s32.totalorder %s24, 5
      %p308 = scmp.ne.s32.totalorder %s303, %s305
      %p309 = scmp.eq.s32.totalorder %s24, 0
      %p310 = por %p308, %p309
      %p311 = scmp.ne.s32.totalorder %s303, %s305
      %p312 = scmp.eq.s32.totalorder %s29, 5
      %p313 = por %p311, %p312
      %p314 = scmp.ne.s32.totalorder %s305, %s306
      %p315 = scmp.eq.s32.totalorder %s29, 0
      %p316 = por %p314, %p315
      %p317 = scmp.ne.s32.totalorder %s305, %s306
      %p318 = scmp.eq.s32.totalorder %s30, 5
      %p319 = por %p317, %p318
      %p321 = scmp.ne.s32.totalorder %s306, %s320
      %p322 = scmp.eq.s32.totalorder %s30, 0
      %p323 = por %p321, %p322
      %s324 = ssub.s32 %s31, %s43
      %p325 = scmp.eq.s32.totalorder %s324, 0
      %s327 = sadd.s32 %s326, 1
      %s328 = scalar_select %p325, %s326, %s327
      %p331 = pneg %p325
      %p332 = scmp.eq.s32.totalorder %s24, 5
      %p333 = por %p331, %p332
      %p334 = scmp.ne.s32.totalorder %s326, %s329
      %p335 = scmp.eq.s32.totalorder %s24, 0
      %p336 = por %p334, %p335
      %p337 = scmp.ne.s32.totalorder %s326, %s329
      %p338 = scmp.eq.s32.totalorder %s29, 5
      %p339 = por %p337, %p338
      %p340 = scmp.ne.s32.totalorder %s329, %s330
      %p341 = scmp.eq.s32.totalorder %s29, 0
      %p342 = por %p340, %p341
      %p343 = scmp.ne.s32.totalorder %s329, %s330
      %p344 = scmp.eq.s32.totalorder %s30, 5
      %p345 = por %p343, %p344
      %p347 = scmp.ne.s32.totalorder %s330, %s346
      %p348 = scmp.eq.s32.totalorder %s30, 0
      %p349 = por %p347, %p348
      %p350 = scmp.le.s32.totalorder 1, %s24
      %p351 = scmp.lt.s32.totalorder %s24, 7
      %p352 = pnand %p350, %p351
      %p353 = pneg %p352
      // Predicated region
      $region9: #{tpu_custom_call.1} parent=5 // pred_check
        _
      $region10: #{tpu_custom_call.1} parent=5 // pred_check_branch
        %355 = sbr.rel (%p352) target = $region12
      $region11: #{tpu_custom_call.1} parent=5 // pred_region
        %s356 = ssub.s32 %s24, 1
        // Predicated region
        $region13: #{tpu_custom_call.1} parent=11 // pred_check
          %p357 = pneg %p85
        $region14: #{tpu_custom_call.1} parent=11 // pred_check_branch
          %359 = sbr.rel (%p357) target = $region16
        $region15: #{tpu_custom_call.1} parent=11 // pred_region
          _
        $region16: #{tpu_custom_call.1} parent=11 // pred_fallthru
          _
        // Predicated region
        $region17: #{tpu_custom_call.1} parent=11 // pred_check
          %p360 = pneg %p106
        $region18: #{tpu_custom_call.1} parent=11 // pred_check_branch
          %362 = sbr.rel (%p360) target = $region20
        $region19: #{tpu_custom_call.1} parent=11 // pred_region
          _
        $region20: #{tpu_custom_call.1} parent=11 // pred_fallthru
          _
        // Predicated region
        $region21: #{tpu_custom_call.1} parent=11 // pred_check
          %p363 = pneg %p127
        $region22: #{tpu_custom_call.1} parent=11 // pred_check_branch
          %365 = sbr.rel (%p363) target = $region24
        $region23: #{tpu_custom_call.1} parent=11 // pred_region
          _
        $region24: #{tpu_custom_call.1} parent=11 // pred_fallthru
          _
        // Predicated region
        $region25: #{tpu_custom_call.1} parent=11 // pred_check
          %p366 = pneg %p148
        $region26: #{tpu_custom_call.1} parent=11 // pred_check_branch
          %368 = sbr.rel (%p366) target = $region28
        $region27: #{tpu_custom_call.1} parent=11 // pred_region
          _
        $region28: #{tpu_custom_call.1} parent=11 // pred_fallthru
          _
        // Predicated region
        $region29: #{tpu_custom_call.1} parent=11 // pred_check
          %p369 = pneg %p169
        $region30: #{tpu_custom_call.1} parent=11 // pred_check_branch
          %371 = sbr.rel (%p369) target = $region32
        $region31: #{tpu_custom_call.1} parent=11 // pred_region
          %373 = vsyncadd [#allocation4], 0
          %s374 = sshll.u32 %s5, 4
          %s375 = int_to_ptr.hbm [resolvable:$true] %s374
          %s376 = sshll.u32 [#allocation3], 4
          %s377 = int_to_ptr.vmem [resolvable:$true] %s376
          %382 = dma.hbm_to_vmem [thread:$0]  %s375, 8192, %s377, [#allocation4], 512, 512, 32
        $region32: #{tpu_custom_call.1} parent=11 // pred_fallthru
          _
        // Predicated region
        $region33: #{tpu_custom_call.1} parent=11 // pred_check
          %p383 = pneg %p190
        $region34: #{tpu_custom_call.1} parent=11 // pred_check_branch
          %385 = sbr.rel (%p383) target = $region36
        $region35: #{tpu_custom_call.1} parent=11 // pred_region
          _
        $region36: #{tpu_custom_call.1} parent=11 // pred_fallthru
          _
        // Predicated region
        $region37: #{tpu_custom_call.1} parent=11 // pred_check
          %p386 = pneg %p211
        $region38: #{tpu_custom_call.1} parent=11 // pred_check_branch
          %388 = sbr.rel (%p386) target = $region40
        $region39: #{tpu_custom_call.1} parent=11 // pred_region
          %390 = vsyncadd [#allocation7], 0
          %s391 = sshll.u32 %s7, 4
          %s392 = int_to_ptr.hbm [resolvable:$true] %s391
          %s393 = sshll.u32 [#allocation6], 4
          %s394 = int_to_ptr.vmem [resolvable:$true] %s393
          %399 = dma.hbm_to_vmem [thread:$0]  %s392, 32768, %s394, [#allocation7], 256, 256, 16
        $region40: #{tpu_custom_call.1} parent=11 // pred_fallthru
          _
        // Predicated region
        $region41: #{tpu_custom_call.1} parent=11 // pred_check
          %p400 = pneg %p232
        $region42: #{tpu_custom_call.1} parent=11 // pred_check_branch
          %402 = sbr.rel (%p400) target = $region44
        $region43: #{tpu_custom_call.1} parent=11 // pred_region
          _
        $region44: #{tpu_custom_call.1} parent=11 // pred_fallthru
          _
        // Predicated region
        $region45: #{tpu_custom_call.1} parent=11 // pred_check
          %p403 = pneg %p253
        $region46: #{tpu_custom_call.1} parent=11 // pred_check_branch
          %405 = sbr.rel (%p403) target = $region48
        $region47: #{tpu_custom_call.1} parent=11 // pred_region
          %407 = vsyncadd [#allocation7], 0
          %s408 = sshll.u32 %s9, 4
          %s409 = int_to_ptr.hbm [resolvable:$true] %s408
          %s410 = sshll.u32 [#allocation8], 4
          %s411 = int_to_ptr.vmem [resolvable:$true] %s410
          %416 = dma.hbm_to_vmem [thread:$0]  %s409, 8192, %s411, [#allocation7], 128, 128, 8
        $region48: #{tpu_custom_call.1} parent=11 // pred_fallthru
          _
        // Predicated region
        $region49: #{tpu_custom_call.1} parent=11 // pred_check
          %p417 = pneg %p274
        $region50: #{tpu_custom_call.1} parent=11 // pred_check_branch
          %419 = sbr.rel (%p417) target = $region52
        $region51: #{tpu_custom_call.1} parent=11 // pred_region
          _
        $region52: #{tpu_custom_call.1} parent=11 // pred_fallthru
          _
        // Predicated region
        $region53: #{tpu_custom_call.1} parent=11 // pred_check
          %p420 = pneg %p295
        $region54: #{tpu_custom_call.1} parent=11 // pred_check_branch
          %422 = sbr.rel (%p420) target = $region56
        $region55: #{tpu_custom_call.1} parent=11 // pred_region
          _
        $region56: #{tpu_custom_call.1} parent=11 // pred_fallthru
          _
        // Predicated region
        $region57: #{tpu_custom_call.1} parent=11 // pred_check
          %p423 = pneg %p316
        $region58: #{tpu_custom_call.1} parent=11 // pred_check_branch
          %425 = sbr.rel (%p423) target = $region60
        $region59: #{tpu_custom_call.1} parent=11 // pred_region
          _
        $region60: #{tpu_custom_call.1} parent=11 // pred_fallthru
          _
      $region12: #{tpu_custom_call.1} parent=5 // pred_fallthru
        _
      %p426 = scmp.lt.s32.totalorder %s24, 6
      // Predicated region
      $region61: #{tpu_custom_call.1} parent=5 // pred_check
        %p427 = pneg %p426
      $region62: #{tpu_custom_call.1} parent=5 // pred_check_branch
        %429 = sbr.rel (%p427) target = $region64
      $region63: #{tpu_custom_call.1} parent=5 // pred_region
        // Predicated region
        $region65: #{tpu_custom_call.1} parent=63 // pred_check
          %p430 = pneg %p58
        $region66: #{tpu_custom_call.1} parent=63 // pred_check_branch
          %432 = sbr.rel (%p430) target = $region68
        $region67: #{tpu_custom_call.1} parent=63 // pred_region
          %s433 = smul.u32 4, %s32
          %p434 = scmp.lt.s32.totalorder %s31, 1
          %s435 = scalar_select %p434, %s31, 1
          %p436 = scmp.lt.s32.totalorder %s433, 11
          %s437 = scalar_select %p436, %s433, 11
          %s438 = smul.addr %s435, 12
          %s439 = sadd.s32 %s437, %s438
          %s440 = smul.addr %s439, 8
          %s441 = scalar_lea.vmem %s0, %s440
          %s442 = smul.u32 4, %s32
        $region68: #{tpu_custom_call.1} parent=63 // pred_fallthru
          _
      $region64: #{tpu_custom_call.1} parent=5 // pred_fallthru
        _
      %p443 = scmp.le.s32.totalorder 1, %s24
      %p444 = scmp.lt.s32.totalorder %s24, 7
      %p445 = pnand %p443, %p444
      %p446 = pneg %p445
      // Predicated region
      $region69: #{tpu_custom_call.1} parent=5 // pred_check
        _
      $region70: #{tpu_custom_call.1} parent=5 // pred_check_branch
        %448 = sbr.rel (%p445) target = $region72
      $region71: #{tpu_custom_call.1} parent=5 // pred_region
        %s449 = ssub.s32 %s24, 1
        // Predicated region
        $region73: #{tpu_custom_call.1} parent=71 // pred_check
          %p450 = pneg %p169
        $region74: #{tpu_custom_call.1} parent=71 // pred_check_branch
          %452 = sbr.rel (%p450) target = $region76
        $region75: #{tpu_custom_call.1} parent=71 // pred_region
          %454 = dma.done [#allocation4], 8192
        $region76: #{tpu_custom_call.1} parent=71 // pred_fallthru
          _
        // Predicated region
        $region77: #{tpu_custom_call.1} parent=71 // pred_check
          %p455 = pneg %p211
        $region78: #{tpu_custom_call.1} parent=71 // pred_check_branch
          %457 = sbr.rel (%p455) target = $region80
        $region79: #{tpu_custom_call.1} parent=71 // pred_region
          %459 = dma.done [#allocation7], 32768
        $region80: #{tpu_custom_call.1} parent=71 // pred_fallthru
          _
        // Predicated region
        $region81: #{tpu_custom_call.1} parent=71 // pred_check
          %p460 = pneg %p253
        $region82: #{tpu_custom_call.1} parent=71 // pred_check_branch
          %462 = sbr.rel (%p460) target = $region84
        $region83: #{tpu_custom_call.1} parent=71 // pred_region
          %464 = dma.done [#allocation7], 8192
        $region84: #{tpu_custom_call.1} parent=71 // pred_fallthru
          _
        %s465 = smul.u32 4, %s34
        %p466 = scmp.lt.s32.totalorder %s33, 1
        %s467 = scalar_select %p466, %s33, 1
        %p468 = scmp.lt.s32.totalorder %s465, 11
        %s469 = scalar_select %p468, %s465, 11
        %s470 = smul.addr %s467, 12
        %s471 = sadd.s32 %s469, %s470
        %s472 = smul.addr %s471, 8
        %s473 = scalar_lea.vmem %s0, %s472
        %p474 = pneg %p64
        %p475 = pneg %p61
        %p476 = pneg %p85
        %p477 = pneg %p82
        %p478 = pneg %p106
        %p479 = pneg %p103
        %p480 = pneg %p127
        %p481 = pneg %p124
        %p482 = pneg %p148
        %p483 = pneg %p145
        %p484 = pneg %p169
        %p485 = pneg %p166
        %p486 = pneg %p190
        %p487 = pneg %p187
        %p488 = pneg %p211
        %p489 = pneg %p208
        %p490 = pneg %p232
        %p491 = pneg %p229
        %p492 = pneg %p253
        %p493 = pneg %p250
        %p494 = pneg %p274
        %p495 = pneg %p271
        %p496 = pneg %p295
        %p497 = pneg %p292
        %p498 = pneg %p316
        %p499 = pneg %p313
        %p500 = pneg %p342
        %p501 = pneg %p339
        %s502 = sand.u32 %s329, 1
        %s503 = scalar_lea.sflag [#allocation5], %s502
        %s504 = sand.u32 %s329, 1
        %s505 = scalar_lea.vmem [#allocation9], %s504
        %s506 = smul.u32 4, %s34
        %p507 = scmp.lt.s32.totalorder %s33, 1
        %s508 = scalar_select %p507, %s33, 1
        %p509 = scmp.lt.s32.totalorder %s506, 11
        %s510 = scalar_select %p509, %s506, 11
        %s511 = smul.addr %s508, 12
        %s512 = sadd.s32 %s510, %s511
        %s513 = smul.addr %s512, 8
        %s514 = scalar_lea.vmem %s0, %s513
        %s515 = smul.u32 4, %s34
        %p517 = scmp.eq.s32.totalorder %s34, 0
        // Predicated region
        $region85: #{tpu_custom_call.1} parent=71 // pred_check
          %p518 = pneg %p517
        $region86: #{tpu_custom_call.1} parent=71 // pred_check_branch
          %520 = sbr.rel (%p518) target = $region88
        $region87: #{tpu_custom_call.1} parent=71 // pred_region
          %521 = vst [vmem:[#allocation2] sm:$0xff] -inf
        $region88: #{tpu_custom_call.1} parent=71 // pred_fallthru
          _
        %v522 = vld [vmem:[%s514] sm:$0xff]
        %v523 = vld [vmem:[%s514 + $0x8] sm:$0xff]
        %v524 = vld [vmem:[%s514 + $0x10] sm:$0xff]
        %v525 = vld [vmem:[%s514 + $0x18] sm:$0xff]
        %v526 = vld [vmem:[%s1] sm:$0xff]
        %v527 = vld [vmem:[%s2] sm:$0x1]
        %v529 = vperm.slane %v527, 0
        %vm531 = vcmask 64512
        %v533 = vsel %vm531, %v522, 0
        %v536 = vsel %vm531, %v523, 0
        %v539 = vsel %vm531, %v524, 0
        %v542 = vsel %vm531, %v525, 0
        %544 = vmatpush.msra.mxu0 0.0
        %545 = vmatpush.msra.mxu0 0.0
        %546 = vmatpush.msra.mxu0 0.0
        %547 = vmatpush.msra.mxu0 0.0
        %548 = vmatpush.msra.mxu0 0.0
        %549 = vmatpush.msra.mxu0 0.0
        %550 = vmatpush.msra.mxu0 0.0
        %551 = vmatpush.msra.mxu0 0.0
        %552 = vmatpush.msra.mxu0 0.0
        %553 = vmatpush.msra.mxu0 0.0
        %554 = vmatpush.msra.mxu0 0.0
        %555 = vmatpush.msra.mxu0 0.0
        %556 = vmatpush.msra.mxu0 0.0
        %557 = vmatpush.msra.mxu0 0.0
        %558 = vmatpush.msra.mxu0 0.0
        %559 = vmatpush.msra.mxu0 %v526
        %560 = vmatmul.f32.gmra.mxu0 %v533
        %v561 = vpop.f32.mrf.mxu0
        %v562 = vadd.f32 %v529, %v561
        %563 = vmatmul.f32.gmra.mxu0 %v536
        %v564 = vpop.f32.mrf.mxu0
        %v565 = vadd.f32 %v529, %v564
        %566 = vmatmul.f32.gmra.mxu0 %v539
        %v567 = vpop.f32.mrf.mxu0
        %v568 = vadd.f32 %v529, %v567
        %569 = vmatmul.f32.gmra.mxu0 %v542
        %v570 = vpop.f32.mrf.mxu0
        %v571 = vadd.f32 %v529, %v570
        %572 = vdwg.mxu0
        %v573 = vmax.f32 %v562, 0.0
        %v574 = vmax.f32 %v565, 0.0
        %v575 = vmax.f32 %v568, 0.0
        %v576 = vmax.f32 %v571, 0.0
        %v577 = vpack.c.bf16 %v574, %v573
        %v578 = vpack.c.bf16 %v576, %v575
        %v579 = vld [vmem:[%s3] sm:$0xf]
        %v580 = vld [vmem:[%s3 + $0x4] sm:$0xf]
        %v581 = vld [vmem:[%s3 + $0x8] sm:$0xf]
        %v582 = vld [vmem:[%s3 + $0xc] sm:$0xf]
        %v583 = vld [vmem:[%s3 + $0x10] sm:$0xf]
        %v584 = vld [vmem:[%s3 + $0x14] sm:$0xf]
        %v585 = vld [vmem:[%s3 + $0x18] sm:$0xf]
        %v586 = vld [vmem:[%s3 + $0x1c] sm:$0xf]
        %v587 = vld [vmem:[%s4] sm:$0x1]
        %v589 = vperm.slane %v587, 0
        %v599 = vunpack.c.l.b16 %v579
        %v600 = vunpack.c.l.b16 %v580
        %v601 = vunpack.c.l.b16 %v581
        %v602 = vunpack.c.l.b16 %v582
        %v603 = vunpack.c.l.b16 %v583
        %v604 = vunpack.c.l.b16 %v584
        %v605 = vunpack.c.l.b16 %v585
        %v606 = vunpack.c.l.b16 %v586
        %v607 = vpack.c.b16 %v600, %v599
        %v608 = vpack.c.b16 %v602, %v601
        %v609 = vpack.c.b16 %v604, %v603
        %v610 = vpack.c.b16 %v606, %v605
        %vm615 = vcmask 523264
        %v617 = vsel %vm615, %v577, 0
        %v620 = vsel %vm615, %v578, 0
        %622 = vmatpush.bf16.msra.mxu0 0
        %623 = vmatpush.bf16.msra.mxu0 0
        %624 = vmatpush.bf16.msra.mxu0 0
        %625 = vmatpush.bf16.msra.mxu0 0
        %626 = vmatpush.bf16.msra.mxu0 %v610
        %627 = vmatpush.bf16.msra.mxu0 %v609
        %628 = vmatpush.bf16.msra.mxu0 %v608
        %629 = vmatpush.bf16.msra.mxu0 %v607
        %630 = vmatmul.bf16.gmra.mxu0 %v617
        %v631 = vpop.f32.mrf.mxu0
        %v632 = vadd.f32 %v589, %v631
        %v633 = vpop.f32.mrf.mxu0
        %v634 = vadd.f32 %v589, %v633
        %635 = vmatmul.bf16.gmra.mxu0 %v620
        %v636 = vpop.f32.mrf.mxu0
        %v637 = vadd.f32 %v589, %v636
        %v638 = vpop.f32.mrf.mxu0
        %v639 = vadd.f32 %v589, %v638
        %640 = vdwg.mxu0
        %v641 = vmax.f32 %v632, 0.0
        %v642 = vmax.f32 %v634, 0.0
        %v643 = vmax.f32 %v637, 0.0
        %v644 = vmax.f32 %v639, 0.0
        %v645 = vpack.c.bf16 %v642, %v641
        %v646 = vpack.c.bf16 %v644, %v643
        %v647 = vld [vmem:[#allocation3] sm:$0xff]
        %v648 = vld [vmem:[#allocation3 + $0x8] sm:$0xff]
        %v649 = vld [vmem:[#allocation3 + $0x10] sm:$0xff]
        %v650 = vld [vmem:[#allocation3 + $0x18] sm:$0xff]
        %v651 = vld [vmem:[#allocation3 + $0x20] sm:$0xff]
        %v652 = vld [vmem:[#allocation3 + $0x28] sm:$0xff]
        %v653 = vld [vmem:[#allocation3 + $0x30] sm:$0xff]
        %v654 = vld [vmem:[#allocation3 + $0x38] sm:$0xff]
        %v655 = vld [vmem:[#allocation3 + $0x40] sm:$0xff]
        %v656 = vld [vmem:[#allocation3 + $0x48] sm:$0xff]
        %v657 = vld [vmem:[#allocation3 + $0x50] sm:$0xff]
        %v658 = vld [vmem:[#allocation3 + $0x58] sm:$0xff]
        %v659 = vld [vmem:[#allocation3 + $0x60] sm:$0xff]
        %v660 = vld [vmem:[#allocation3 + $0x68] sm:$0xff]
        %v661 = vld [vmem:[#allocation3 + $0x70] sm:$0xff]
        %v662 = vld [vmem:[#allocation3 + $0x78] sm:$0xff]
        %v663 = vld [vmem:[#allocation3 + $0x80] sm:$0xff]
        %v664 = vld [vmem:[#allocation3 + $0x88] sm:$0xff]
        %v665 = vld [vmem:[#allocation3 + $0x90] sm:$0xff]
        %v666 = vld [vmem:[#allocation3 + $0x98] sm:$0xff]
        %v667 = vld [vmem:[#allocation3 + $0xa0] sm:$0xff]
        %v668 = vld [vmem:[#allocation3 + $0xa8] sm:$0xff]
        %v669 = vld [vmem:[#allocation3 + $0xb0] sm:$0xff]
        %v670 = vld [vmem:[#allocation3 + $0xb8] sm:$0xff]
        %v671 = vld [vmem:[#allocation3 + $0xc0] sm:$0xff]
        %v672 = vld [vmem:[#allocation3 + $0xc8] sm:$0xff]
        %v673 = vld [vmem:[#allocation3 + $0xd0] sm:$0xff]
        %v674 = vld [vmem:[#allocation3 + $0xd8] sm:$0xff]
        %v675 = vld [vmem:[#allocation3 + $0xe0] sm:$0xff]
        %v676 = vld [vmem:[#allocation3 + $0xe8] sm:$0xff]
        %v677 = vld [vmem:[#allocation3 + $0xf0] sm:$0xff]
        %v678 = vld [vmem:[#allocation3 + $0xf8] sm:$0xff]
        %v679 = vld [vmem:[#allocation3 + $0x100] sm:$0xff]
        %v680 = vld [vmem:[#allocation3 + $0x108] sm:$0xff]
        %v681 = vld [vmem:[#allocation3 + $0x110] sm:$0xff]
        %v682 = vld [vmem:[#allocation3 + $0x118] sm:$0xff]
        %v683 = vld [vmem:[#allocation3 + $0x120] sm:$0xff]
        %v684 = vld [vmem:[#allocation3 + $0x128] sm:$0xff]
        %v685 = vld [vmem:[#allocation3 + $0x130] sm:$0xff]
        %v686 = vld [vmem:[#allocation3 + $0x138] sm:$0xff]
        %v687 = vld [vmem:[#allocation3 + $0x140] sm:$0xff]
        %v688 = vld [vmem:[#allocation3 + $0x148] sm:$0xff]
        %v689 = vld [vmem:[#allocation3 + $0x150] sm:$0xff]
        %v690 = vld [vmem:[#allocation3 + $0x158] sm:$0xff]
        %v691 = vld [vmem:[#allocation3 + $0x160] sm:$0xff]
        %v692 = vld [vmem:[#allocation3 + $0x168] sm:$0xff]
        %v693 = vld [vmem:[#allocation3 + $0x170] sm:$0xff]
        %v694 = vld [vmem:[#allocation3 + $0x178] sm:$0xff]
        %v695 = vld [vmem:[#allocation3 + $0x180] sm:$0xff]
        %v696 = vld [vmem:[#allocation3 + $0x188] sm:$0xff]
        %v697 = vld [vmem:[#allocation3 + $0x190] sm:$0xff]
        %v698 = vld [vmem:[#allocation3 + $0x198] sm:$0xff]
        %v699 = vld [vmem:[#allocation3 + $0x1a0] sm:$0xff]
        %v700 = vld [vmem:[#allocation3 + $0x1a8] sm:$0xff]
        %v701 = vld [vmem:[#allocation3 + $0x1b0] sm:$0xff]
        %v702 = vld [vmem:[#allocation3 + $0x1b8] sm:$0xff]
        %v703 = vld [vmem:[#allocation3 + $0x1c0] sm:$0xff]
        %v704 = vld [vmem:[#allocation3 + $0x1c8] sm:$0xff]
        %v705 = vld [vmem:[#allocation3 + $0x1d0] sm:$0xff]
        %v706 = vld [vmem:[#allocation3 + $0x1d8] sm:$0xff]
        %v707 = vld [vmem:[#allocation3 + $0x1e0] sm:$0xff]
        %v708 = vld [vmem:[#allocation3 + $0x1e8] sm:$0xff]
        %v709 = vld [vmem:[#allocation3 + $0x1f0] sm:$0xff]
        %v710 = vld [vmem:[#allocation3 + $0x1f8] sm:$0xff]
        %v775 = vunpack.c.l.b16 %v647
        %v776 = vunpack.c.h.b16 %v647
        %v777 = vunpack.c.l.b16 %v648
        %v778 = vunpack.c.h.b16 %v648
        %v779 = vunpack.c.l.b16 %v649
        %v780 = vunpack.c.h.b16 %v649
        %v781 = vunpack.c.l.b16 %v650
        %v782 = vunpack.c.h.b16 %v650
        %v783 = vunpack.c.l.b16 %v651
        %v784 = vunpack.c.h.b16 %v651
        %v785 = vunpack.c.l.b16 %v652
        %v786 = vunpack.c.h.b16 %v652
        %v787 = vunpack.c.l.b16 %v653
        %v788 = vunpack.c.h.b16 %v653
        %v789 = vunpack.c.l.b16 %v654
        %v790 = vunpack.c.h.b16 %v654
        %v791 = vunpack.c.l.b16 %v655
        %v792 = vunpack.c.h.b16 %v655
        %v793 = vunpack.c.l.b16 %v656
        %v794 = vunpack.c.h.b16 %v656
        %v795 = vunpack.c.l.b16 %v657
        %v796 = vunpack.c.h.b16 %v657
        %v797 = vunpack.c.l.b16 %v658
        %v798 = vunpack.c.h.b16 %v658
        %v799 = vunpack.c.l.b16 %v659
        %v800 = vunpack.c.h.b16 %v659
        %v801 = vunpack.c.l.b16 %v660
        %v802 = vunpack.c.h.b16 %v660
        %v803 = vunpack.c.l.b16 %v661
        %v804 = vunpack.c.h.b16 %v661
        %v805 = vunpack.c.l.b16 %v662
        %v806 = vunpack.c.h.b16 %v662
        %v807 = vunpack.c.l.b16 %v663
        %v808 = vunpack.c.h.b16 %v663
        %v809 = vunpack.c.l.b16 %v664
        %v810 = vunpack.c.h.b16 %v664
        %v811 = vunpack.c.l.b16 %v665
        %v812 = vunpack.c.h.b16 %v665
        %v813 = vunpack.c.l.b16 %v666
        %v814 = vunpack.c.h.b16 %v666
        %v815 = vunpack.c.l.b16 %v667
        %v816 = vunpack.c.h.b16 %v667
        %v817 = vunpack.c.l.b16 %v668
        %v818 = vunpack.c.h.b16 %v668
        %v819 = vunpack.c.l.b16 %v669
        %v820 = vunpack.c.h.b16 %v669
        %v821 = vunpack.c.l.b16 %v670
        %v822 = vunpack.c.h.b16 %v670
        %v823 = vunpack.c.l.b16 %v671
        %v824 = vunpack.c.h.b16 %v671
        %v825 = vunpack.c.l.b16 %v672
        %v826 = vunpack.c.h.b16 %v672
        %v827 = vunpack.c.l.b16 %v673
        %v828 = vunpack.c.h.b16 %v673
        %v829 = vunpack.c.l.b16 %v674
        %v830 = vunpack.c.h.b16 %v674
        %v831 = vunpack.c.l.b16 %v675
        %v832 = vunpack.c.h.b16 %v675
        %v833 = vunpack.c.l.b16 %v676
        %v834 = vunpack.c.h.b16 %v676
        %v835 = vunpack.c.l.b16 %v677
        %v836 = vunpack.c.h.b16 %v677
        %v837 = vunpack.c.l.b16 %v678
        %v838 = vunpack.c.h.b16 %v678
        %v839 = vunpack.c.l.b16 %v679
        %v840 = vunpack.c.h.b16 %v679
        %v841 = vunpack.c.l.b16 %v680
        %v842 = vunpack.c.h.b16 %v680
        %v843 = vunpack.c.l.b16 %v681
        %v844 = vunpack.c.h.b16 %v681
        %v845 = vunpack.c.l.b16 %v682
        %v846 = vunpack.c.h.b16 %v682
        %v847 = vunpack.c.l.b16 %v683
        %v848 = vunpack.c.h.b16 %v683
        %v849 = vunpack.c.l.b16 %v684
        %v850 = vunpack.c.h.b16 %v684
        %v851 = vunpack.c.l.b16 %v685
        %v852 = vunpack.c.h.b16 %v685
        %v853 = vunpack.c.l.b16 %v686
        %v854 = vunpack.c.h.b16 %v686
        %v855 = vunpack.c.l.b16 %v687
        %v856 = vunpack.c.h.b16 %v687
        %v857 = vunpack.c.l.b16 %v688
        %v858 = vunpack.c.h.b16 %v688
        %v859 = vunpack.c.l.b16 %v689
        %v860 = vunpack.c.h.b16 %v689
        %v861 = vunpack.c.l.b16 %v690
        %v862 = vunpack.c.h.b16 %v690
        %v863 = vunpack.c.l.b16 %v691
        %v864 = vunpack.c.h.b16 %v691
        %v865 = vunpack.c.l.b16 %v692
        %v866 = vunpack.c.h.b16 %v692
        %v867 = vunpack.c.l.b16 %v693
        %v868 = vunpack.c.h.b16 %v693
        %v869 = vunpack.c.l.b16 %v694
        %v870 = vunpack.c.h.b16 %v694
        %v871 = vunpack.c.l.b16 %v695
        %v872 = vunpack.c.h.b16 %v695
        %v873 = vunpack.c.l.b16 %v696
        %v874 = vunpack.c.h.b16 %v696
        %v875 = vunpack.c.l.b16 %v697
        %v876 = vunpack.c.h.b16 %v697
        %v877 = vunpack.c.l.b16 %v698
        %v878 = vunpack.c.h.b16 %v698
        %v879 = vunpack.c.l.b16 %v699
        %v880 = vunpack.c.h.b16 %v699
        %v881 = vunpack.c.l.b16 %v700
        %v882 = vunpack.c.h.b16 %v700
        %v883 = vunpack.c.l.b16 %v701
        %v884 = vunpack.c.h.b16 %v701
        %v885 = vunpack.c.l.b16 %v702
        %v886 = vunpack.c.h.b16 %v702
        %v887 = vunpack.c.l.b16 %v703
        %v888 = vunpack.c.h.b16 %v703
        %v889 = vunpack.c.l.b16 %v704
        %v890 = vunpack.c.h.b16 %v704
        %v891 = vunpack.c.l.b16 %v705
        %v892 = vunpack.c.h.b16 %v705
        %v893 = vunpack.c.l.b16 %v706
        %v894 = vunpack.c.h.b16 %v706
        %v895 = vunpack.c.l.b16 %v707
        %v896 = vunpack.c.h.b16 %v707
        %v897 = vunpack.c.l.b16 %v708
        %v898 = vunpack.c.h.b16 %v708
        %v899 = vunpack.c.l.b16 %v709
        %v900 = vunpack.c.h.b16 %v709
        %v901 = vunpack.c.l.b16 %v710
        %v902 = vunpack.c.h.b16 %v710
        %v903 = vpack.c.b16 %v783, %v775
        %v904 = vpack.c.b16 %v784, %v776
        %v905 = vpack.c.b16 %v785, %v777
        %v906 = vpack.c.b16 %v786, %v778
        %v907 = vpack.c.b16 %v787, %v779
        %v908 = vpack.c.b16 %v788, %v780
        %v909 = vpack.c.b16 %v789, %v781
        %v910 = vpack.c.b16 %v790, %v782
        %v911 = vpack.c.b16 %v799, %v791
        %v912 = vpack.c.b16 %v800, %v792
        %v913 = vpack.c.b16 %v801, %v793
        %v914 = vpack.c.b16 %v802, %v794
        %v915 = vpack.c.b16 %v803, %v795
        %v916 = vpack.c.b16 %v804, %v796
        %v917 = vpack.c.b16 %v805, %v797
        %v918 = vpack.c.b16 %v806, %v798
        %v919 = vpack.c.b16 %v815, %v807
        %v920 = vpack.c.b16 %v816, %v808
        %v921 = vpack.c.b16 %v817, %v809
        %v922 = vpack.c.b16 %v818, %v810
        %v923 = vpack.c.b16 %v819, %v811
        %v924 = vpack.c.b16 %v820, %v812
        %v925 = vpack.c.b16 %v821, %v813
        %v926 = vpack.c.b16 %v822, %v814
        %v927 = vpack.c.b16 %v831, %v823
        %v928 = vpack.c.b16 %v832, %v824
        %v929 = vpack.c.b16 %v833, %v825
        %v930 = vpack.c.b16 %v834, %v826
        %v931 = vpack.c.b16 %v835, %v827
        %v932 = vpack.c.b16 %v836, %v828
        %v933 = vpack.c.b16 %v837, %v829
        %v934 = vpack.c.b16 %v838, %v830
        %v935 = vpack.c.b16 %v847, %v839
        %v936 = vpack.c.b16 %v848, %v840
        %v937 = vpack.c.b16 %v849, %v841
        %v938 = vpack.c.b16 %v850, %v842
        %v939 = vpack.c.b16 %v851, %v843
        %v940 = vpack.c.b16 %v852, %v844
        %v941 = vpack.c.b16 %v853, %v845
        %v942 = vpack.c.b16 %v854, %v846
        %v943 = vpack.c.b16 %v863, %v855
        %v944 = vpack.c.b16 %v864, %v856
        %v945 = vpack.c.b16 %v865, %v857
        %v946 = vpack.c.b16 %v866, %v858
        %v947 = vpack.c.b16 %v867, %v859
        %v948 = vpack.c.b16 %v868, %v860
        %v949 = vpack.c.b16 %v869, %v861
        %v950 = vpack.c.b16 %v870, %v862
        %v951 = vpack.c.b16 %v879, %v871
        %v952 = vpack.c.b16 %v880, %v872
        %v953 = vpack.c.b16 %v881, %v873
        %v954 = vpack.c.b16 %v882, %v874
        %v955 = vpack.c.b16 %v883, %v875
        %v956 = vpack.c.b16 %v884, %v876
        %v957 = vpack.c.b16 %v885, %v877
        %v958 = vpack.c.b16 %v886, %v878
        %v959 = vpack.c.b16 %v895, %v887
        %v960 = vpack.c.b16 %v896, %v888
        %v961 = vpack.c.b16 %v897, %v889
        %v962 = vpack.c.b16 %v898, %v890
        %v963 = vpack.c.b16 %v899, %v891
        %v964 = vpack.c.b16 %v900, %v892
        %v965 = vpack.c.b16 %v901, %v893
        %v966 = vpack.c.b16 %v902, %v894
        %1031 = vmatpush.bf16.msra.mxu0 %v959
        %1032 = vmatpush.bf16.msra.mxu0 %v951
        %1033 = vmatpush.bf16.msra.mxu0 %v943
        %1034 = vmatpush.bf16.msra.mxu0 %v935
        %1035 = vmatpush.bf16.msra.mxu0 %v927
        %1036 = vmatpush.bf16.msra.mxu0 %v919
        %1037 = vmatpush.bf16.msra.mxu0 %v911
        %1038 = vmatpush.bf16.msra.mxu0 %v903
        %1039 = vmatmul.bf16.gmra.mxu0 %v645
        %v1040 = vpop.f32.mrf.mxu0
        %v1041 = vadd.f32 0.0, %v1040
        %v1042 = vpop.f32.mrf.mxu0
        %v1043 = vadd.f32 0.0, %v1042
        %1044 = vmatmul.bf16.gmra.mxu0 %v646
        %v1045 = vpop.f32.mrf.mxu0
        %v1046 = vadd.f32 0.0, %v1045
        %v1047 = vpop.f32.mrf.mxu0
        %v1048 = vadd.f32 0.0, %v1047
        %1049 = vdwg.mxu0
        %1050 = vmatpush.bf16.msra.mxu0 %v960
        %1051 = vmatpush.bf16.msra.mxu0 %v952
        %1052 = vmatpush.bf16.msra.mxu0 %v944
        %1053 = vmatpush.bf16.msra.mxu0 %v936
        %1054 = vmatpush.bf16.msra.mxu0 %v928
        %1055 = vmatpush.bf16.msra.mxu0 %v920
        %1056 = vmatpush.bf16.msra.mxu0 %v912
        %1057 = vmatpush.bf16.msra.mxu0 %v904
        %1058 = vmatmul.bf16.gmra.mxu0 %v645
        %v1059 = vpop.f32.mrf.mxu0
        %v1060 = vadd.f32 0.0, %v1059
        %v1061 = vpop.f32.mrf.mxu0
        %v1062 = vadd.f32 0.0, %v1061
        %1063 = vmatmul.bf16.gmra.mxu0 %v646
        %v1064 = vpop.f32.mrf.mxu0
        %v1065 = vadd.f32 0.0, %v1064
        %v1066 = vpop.f32.mrf.mxu0
        %v1067 = vadd.f32 0.0, %v1066
        %1068 = vdwg.mxu0
        %1069 = vmatpush.bf16.msra.mxu0 %v961
        %1070 = vmatpush.bf16.msra.mxu0 %v953
        %1071 = vmatpush.bf16.msra.mxu0 %v945
        %1072 = vmatpush.bf16.msra.mxu0 %v937
        %1073 = vmatpush.bf16.msra.mxu0 %v929
        %1074 = vmatpush.bf16.msra.mxu0 %v921
        %1075 = vmatpush.bf16.msra.mxu0 %v913
        %1076 = vmatpush.bf16.msra.mxu0 %v905
        %1077 = vmatmul.bf16.gmra.mxu0 %v645
        %v1078 = vpop.f32.mrf.mxu0
        %v1079 = vadd.f32 0.0, %v1078
        %v1080 = vpop.f32.mrf.mxu0
        %v1081 = vadd.f32 0.0, %v1080
        %1082 = vmatmul.bf16.gmra.mxu0 %v646
        %v1083 = vpop.f32.mrf.mxu0
        %v1084 = vadd.f32 0.0, %v1083
        %v1085 = vpop.f32.mrf.mxu0
        %v1086 = vadd.f32 0.0, %v1085
        %1087 = vdwg.mxu0
        %1088 = vmatpush.bf16.msra.mxu0 %v962
        %1089 = vmatpush.bf16.msra.mxu0 %v954
        %1090 = vmatpush.bf16.msra.mxu0 %v946
        %1091 = vmatpush.bf16.msra.mxu0 %v938
        %1092 = vmatpush.bf16.msra.mxu0 %v930
        %1093 = vmatpush.bf16.msra.mxu0 %v922
        %1094 = vmatpush.bf16.msra.mxu0 %v914
        %1095 = vmatpush.bf16.msra.mxu0 %v906
        %1096 = vmatmul.bf16.gmra.mxu0 %v645
        %v1097 = vpop.f32.mrf.mxu0
        %v1098 = vadd.f32 0.0, %v1097
        %v1099 = vpop.f32.mrf.mxu0
        %v1100 = vadd.f32 0.0, %v1099
        %1101 = vmatmul.bf16.gmra.mxu0 %v646
        %v1102 = vpop.f32.mrf.mxu0
        %v1103 = vadd.f32 0.0, %v1102
        %v1104 = vpop.f32.mrf.mxu0
        %v1105 = vadd.f32 0.0, %v1104
        %1106 = vdwg.mxu0
        %1107 = vmatpush.bf16.msra.mxu0 %v963
        %1108 = vmatpush.bf16.msra.mxu0 %v955
        %1109 = vmatpush.bf16.msra.mxu0 %v947
        %1110 = vmatpush.bf16.msra.mxu0 %v939
        %1111 = vmatpush.bf16.msra.mxu0 %v931
        %1112 = vmatpush.bf16.msra.mxu0 %v923
        %1113 = vmatpush.bf16.msra.mxu0 %v915
        %1114 = vmatpush.bf16.msra.mxu0 %v907
        %1115 = vmatmul.bf16.gmra.mxu0 %v645
        %v1116 = vpop.f32.mrf.mxu0
        %v1117 = vadd.f32 0.0, %v1116
        %v1118 = vpop.f32.mrf.mxu0
        %v1119 = vadd.f32 0.0, %v1118
        %1120 = vmatmul.bf16.gmra.mxu0 %v646
        %v1121 = vpop.f32.mrf.mxu0
        %v1122 = vadd.f32 0.0, %v1121
        %v1123 = vpop.f32.mrf.mxu0
        %v1124 = vadd.f32 0.0, %v1123
        %1125 = vdwg.mxu0
        %1126 = vmatpush.bf16.msra.mxu0 %v964
        %1127 = vmatpush.bf16.msra.mxu0 %v956
        %1128 = vmatpush.bf16.msra.mxu0 %v948
        %1129 = vmatpush.bf16.msra.mxu0 %v940
        %1130 = vmatpush.bf16.msra.mxu0 %v932
        %1131 = vmatpush.bf16.msra.mxu0 %v924
        %1132 = vmatpush.bf16.msra.mxu0 %v916
        %1133 = vmatpush.bf16.msra.mxu0 %v908
        %1134 = vmatmul.bf16.gmra.mxu0 %v645
        %v1135 = vpop.f32.mrf.mxu0
        %v1136 = vadd.f32 0.0, %v1135
        %v1137 = vpop.f32.mrf.mxu0
        %v1138 = vadd.f32 0.0, %v1137
        %1139 = vmatmul.bf16.gmra.mxu0 %v646
        %v1140 = vpop.f32.mrf.mxu0
        %v1141 = vadd.f32 0.0, %v1140
        %v1142 = vpop.f32.mrf.mxu0
        %v1143 = vadd.f32 0.0, %v1142
        %1144 = vdwg.mxu0
        %1145 = vmatpush.bf16.msra.mxu0 %v965
        %1146 = vmatpush.bf16.msra.mxu0 %v957
        %1147 = vmatpush.bf16.msra.mxu0 %v949
        %1148 = vmatpush.bf16.msra.mxu0 %v941
        %1149 = vmatpush.bf16.msra.mxu0 %v933
        %1150 = vmatpush.bf16.msra.mxu0 %v925
        %1151 = vmatpush.bf16.msra.mxu0 %v917
        %1152 = vmatpush.bf16.msra.mxu0 %v909
        %1153 = vmatmul.bf16.gmra.mxu0 %v645
        %v1154 = vpop.f32.mrf.mxu0
        %v1155 = vadd.f32 0.0, %v1154
        %v1156 = vpop.f32.mrf.mxu0
        %v1157 = vadd.f32 0.0, %v1156
        %1158 = vmatmul.bf16.gmra.mxu0 %v646
        %v1159 = vpop.f32.mrf.mxu0
        %v1160 = vadd.f32 0.0, %v1159
        %v1161 = vpop.f32.mrf.mxu0
        %v1162 = vadd.f32 0.0, %v1161
        %1163 = vdwg.mxu0
        %1164 = vmatpush.bf16.msra.mxu0 %v966
        %1165 = vmatpush.bf16.msra.mxu0 %v958
        %1166 = vmatpush.bf16.msra.mxu0 %v950
        %1167 = vmatpush.bf16.msra.mxu0 %v942
        %1168 = vmatpush.bf16.msra.mxu0 %v934
        %1169 = vmatpush.bf16.msra.mxu0 %v926
        %1170 = vmatpush.bf16.msra.mxu0 %v918
        %1171 = vmatpush.bf16.msra.mxu0 %v910
        %1172 = vmatmul.bf16.gmra.mxu0 %v645
        %v1173 = vpop.f32.mrf.mxu0
        %v1174 = vadd.f32 0.0, %v1173
        %v1175 = vpop.f32.mrf.mxu0
        %v1176 = vadd.f32 0.0, %v1175
        %1177 = vmatmul.bf16.gmra.mxu0 %v646
        %v1178 = vpop.f32.mrf.mxu0
        %v1179 = vadd.f32 0.0, %v1178
        %v1180 = vpop.f32.mrf.mxu0
        %v1181 = vadd.f32 0.0, %v1180
        %1182 = vdwg.mxu0
        %p1183 = scmp.ne.s32.totalorder %s34, 2
        // Predicated region
        $region89: #{tpu_custom_call.1} parent=71 // pred_check
          %p1184 = pneg %p1183
        $region90: #{tpu_custom_call.1} parent=71 // pred_check_branch
          %1186 = sbr.rel (%p1184) target = $region92
        $region91: #{tpu_custom_call.1} parent=71 // pred_region
          %v1187 = vld [vmem:[#allocation2] sm:$0xff]
          %v1188 = vmax.f32 %v1041, %v1043
          %v1189 = vmax.f32 %v1188, %v1046
          %v1190 = vmax.f32 %v1189, %v1048
          %v1191 = vrot.slane %v1190, 4
          %v1192 = vmax.f32 %v1190, %v1191
          %v1193 = vrot.slane %v1192, 2
          %v1194 = vmax.f32 %v1192, %v1193
          %v1195 = vrot.slane %v1194, 1
          %v1196 = vmax.f32 %v1194, %v1195
          %v1197 = vmax.f32 %v1060, %v1062
          %v1198 = vmax.f32 %v1197, %v1065
          %v1199 = vmax.f32 %v1198, %v1067
          %v1200 = vrot.slane %v1199, 4
          %v1201 = vmax.f32 %v1199, %v1200
          %v1202 = vrot.slane %v1201, 2
          %v1203 = vmax.f32 %v1201, %v1202
          %v1204 = vrot.slane %v1203, 1
          %v1205 = vmax.f32 %v1203, %v1204
          %v1206 = vmax.f32 %v1079, %v1081
          %v1207 = vmax.f32 %v1206, %v1084
          %v1208 = vmax.f32 %v1207, %v1086
          %v1209 = vrot.slane %v1208, 4
          %v1210 = vmax.f32 %v1208, %v1209
          %v1211 = vrot.slane %v1210, 2
          %v1212 = vmax.f32 %v1210, %v1211
          %v1213 = vrot.slane %v1212, 1
          %v1214 = vmax.f32 %v1212, %v1213
          %v1215 = vmax.f32 %v1098, %v1100
          %v1216 = vmax.f32 %v1215, %v1103
          %v1217 = vmax.f32 %v1216, %v1105
          %v1218 = vrot.slane %v1217, 4
          %v1219 = vmax.f32 %v1217, %v1218
          %v1220 = vrot.slane %v1219, 2
          %v1221 = vmax.f32 %v1219, %v1220
          %v1222 = vrot.slane %v1221, 1
          %v1223 = vmax.f32 %v1221, %v1222
          %v1224 = vmax.f32 %v1117, %v1119
          %v1225 = vmax.f32 %v1224, %v1122
          %v1226 = vmax.f32 %v1225, %v1124
          %v1227 = vrot.slane %v1226, 4
          %v1228 = vmax.f32 %v1226, %v1227
          %v1229 = vrot.slane %v1228, 2
          %v1230 = vmax.f32 %v1228, %v1229
          %v1231 = vrot.slane %v1230, 1
          %v1232 = vmax.f32 %v1230, %v1231
          %v1233 = vmax.f32 %v1136, %v1138
          %v1234 = vmax.f32 %v1233, %v1141
          %v1235 = vmax.f32 %v1234, %v1143
          %v1236 = vrot.slane %v1235, 4
          %v1237 = vmax.f32 %v1235, %v1236
          %v1238 = vrot.slane %v1237, 2
          %v1239 = vmax.f32 %v1237, %v1238
          %v1240 = vrot.slane %v1239, 1
          %v1241 = vmax.f32 %v1239, %v1240
          %v1242 = vmax.f32 %v1155, %v1157
          %v1243 = vmax.f32 %v1242, %v1160
          %v1244 = vmax.f32 %v1243, %v1162
          %v1245 = vrot.slane %v1244, 4
          %v1246 = vmax.f32 %v1244, %v1245
          %v1247 = vrot.slane %v1246, 2
          %v1248 = vmax.f32 %v1246, %v1247
          %v1249 = vrot.slane %v1248, 1
          %v1250 = vmax.f32 %v1248, %v1249
          %v1251 = vmax.f32 %v1174, %v1176
          %v1252 = vmax.f32 %v1251, %v1179
          %v1253 = vmax.f32 %v1252, %v1181
          %v1254 = vrot.slane %v1253, 4
          %v1255 = vmax.f32 %v1253, %v1254
          %v1256 = vrot.slane %v1255, 2
          %v1257 = vmax.f32 %v1255, %v1256
          %v1258 = vrot.slane %v1257, 1
          %v1259 = vmax.f32 %v1257, %v1258
          %v1268 = vrot.slane %v1205, 7
          %v1269 = vrot.slane %v1214, 6
          %v1270 = vrot.slane %v1223, 5
          %v1271 = vrot.slane %v1232, 4
          %v1272 = vrot.slane %v1241, 3
          %v1273 = vrot.slane %v1250, 2
          %v1274 = vrot.slane %v1259, 1
          %vm1275 = vcmask 1040384
          %v1276 = vsel %vm1275, %v1196, %v1268
          %vm1277 = vcmask 1042434
          %v1278 = vsel %vm1277, %v1269, %v1270
          %vm1279 = vcmask 1041408
          %v1280 = vsel %vm1279, %v1276, %v1278
          %vm1281 = vcmask 1044484
          %v1282 = vsel %vm1281, %v1271, %v1272
          %vm1283 = vcmask 1046534
          %v1284 = vsel %vm1283, %v1273, %v1274
          %vm1285 = vcmask 1045508
          %v1286 = vsel %vm1285, %v1282, %v1284
          %vm1287 = vcmask 1043456
          %v1288 = vsel %vm1287, %v1280, %v1286
          %v1290 = vmax.f32 %v1187, %v1288
          %1291 = vst [vmem:[#allocation2] sm:$0xff] %v1290
        $region92: #{tpu_custom_call.1} parent=71 // pred_fallthru
          _
        %p1292 = scmp.eq.s32.totalorder %s34, 2
        // Predicated region
        $region93: #{tpu_custom_call.1} parent=71 // pred_check
          %p1293 = pneg %p1292
        $region94: #{tpu_custom_call.1} parent=71 // pred_check_branch
          %1295 = sbr.rel (%p1293) target = $region96
        $region95: #{tpu_custom_call.1} parent=71 // pred_region
          %s1296 = smul.u32 %s34, 32
          %v1297 = vlaneseq
          %v1298 = vshrl.u32 %v1297, 7
          %v1299 = vadd.s32 %v1298, 8
          %v1300 = vadd.s32 %v1298, 16
          %v1301 = vadd.s32 %v1298, 24
          %v1302 = vstv %s1296
          %v1303 = vadd.s32 %v1302, %v1298
          %v1304 = vadd.s32 %v1302, %v1299
          %v1305 = vadd.s32 %v1302, %v1300
          %v1306 = vadd.s32 %v1302, %v1301
          %vm1307 = vcmp.lt.s32.totalorder %v1303, 80
          %vm1308 = vcmp.lt.s32.totalorder %v1304, 80
          %vm1309 = vcmp.lt.s32.totalorder %v1305, 80
          %vm1310 = vcmp.lt.s32.totalorder %v1306, 80
          %v1311 = vsel %vm1307, 1, 0
          %v1312 = vsel %vm1308, 1, 0
          %v1313 = vsel %vm1309, 1, 0
          %v1314 = vsel %vm1310, 1, 0
          %vm1315 = vcmp.eq.s32.totalorder %v1311, 1
          %vm1316 = vcmp.eq.s32.totalorder %v1312, 1
          %vm1317 = vcmp.eq.s32.totalorder %v1313, 1
          %vm1318 = vcmp.eq.s32.totalorder %v1314, 1
          %v1319 = vsel %vm1315, %v1041, -inf
          %v1320 = vsel %vm1315, %v1060, -inf
          %v1321 = vsel %vm1315, %v1079, -inf
          %v1322 = vsel %vm1315, %v1098, -inf
          %v1323 = vsel %vm1315, %v1117, -inf
          %v1324 = vsel %vm1315, %v1136, -inf
          %v1325 = vsel %vm1315, %v1155, -inf
          %v1326 = vsel %vm1315, %v1174, -inf
          %v1327 = vsel %vm1316, %v1043, -inf
          %v1328 = vsel %vm1316, %v1062, -inf
          %v1329 = vsel %vm1316, %v1081, -inf
          %v1330 = vsel %vm1316, %v1100, -inf
          %v1331 = vsel %vm1316, %v1119, -inf
          %v1332 = vsel %vm1316, %v1138, -inf
          %v1333 = vsel %vm1316, %v1157, -inf
          %v1334 = vsel %vm1316, %v1176, -inf
          %v1335 = vsel %vm1317, %v1046, -inf
          %v1336 = vsel %vm1317, %v1065, -inf
          %v1337 = vsel %vm1317, %v1084, -inf
          %v1338 = vsel %vm1317, %v1103, -inf
          %v1339 = vsel %vm1317, %v1122, -inf
          %v1340 = vsel %vm1317, %v1141, -inf
          %v1341 = vsel %vm1317, %v1160, -inf
          %v1342 = vsel %vm1317, %v1179, -inf
          %v1343 = vsel %vm1318, %v1048, -inf
          %v1344 = vsel %vm1318, %v1067, -inf
          %v1345 = vsel %vm1318, %v1086, -inf
          %v1346 = vsel %vm1318, %v1105, -inf
          %v1347 = vsel %vm1318, %v1124, -inf
          %v1348 = vsel %vm1318, %v1143, -inf
          %v1349 = vsel %vm1318, %v1162, -inf
          %v1350 = vsel %vm1318, %v1181, -inf
          %v1351 = vld [vmem:[#allocation2] sm:$0xff]
          %v1352 = vmax.f32 %v1319, %v1327
          %v1353 = vmax.f32 %v1352, %v1335
          %v1354 = vmax.f32 %v1353, %v1343
          %v1355 = vrot.slane %v1354, 4
          %v1356 = vmax.f32 %v1354, %v1355
          %v1357 = vrot.slane %v1356, 2
          %v1358 = vmax.f32 %v1356, %v1357
          %v1359 = vrot.slane %v1358, 1
          %v1360 = vmax.f32 %v1358, %v1359
          %v1361 = vmax.f32 %v1320, %v1328
          %v1362 = vmax.f32 %v1361, %v1336
          %v1363 = vmax.f32 %v1362, %v1344
          %v1364 = vrot.slane %v1363, 4
          %v1365 = vmax.f32 %v1363, %v1364
          %v1366 = vrot.slane %v1365, 2
          %v1367 = vmax.f32 %v1365, %v1366
          %v1368 = vrot.slane %v1367, 1
          %v1369 = vmax.f32 %v1367, %v1368
          %v1370 = vmax.f32 %v1321, %v1329
          %v1371 = vmax.f32 %v1370, %v1337
          %v1372 = vmax.f32 %v1371, %v1345
          %v1373 = vrot.slane %v1372, 4
          %v1374 = vmax.f32 %v1372, %v1373
          %v1375 = vrot.slane %v1374, 2
          %v1376 = vmax.f32 %v1374, %v1375
          %v1377 = vrot.slane %v1376, 1
          %v1378 = vmax.f32 %v1376, %v1377
          %v1379 = vmax.f32 %v1322, %v1330
          %v1380 = vmax.f32 %v1379, %v1338
          %v1381 = vmax.f32 %v1380, %v1346
          %v1382 = vrot.slane %v1381, 4
          %v1383 = vmax.f32 %v1381, %v1382
          %v1384 = vrot.slane %v1383, 2
          %v1385 = vmax.f32 %v1383, %v1384
          %v1386 = vrot.slane %v1385, 1
          %v1387 = vmax.f32 %v1385, %v1386
          %v1388 = vmax.f32 %v1323, %v1331
          %v1389 = vmax.f32 %v1388, %v1339
          %v1390 = vmax.f32 %v1389, %v1347
          %v1391 = vrot.slane %v1390, 4
          %v1392 = vmax.f32 %v1390, %v1391
          %v1393 = vrot.slane %v1392, 2
          %v1394 = vmax.f32 %v1392, %v1393
          %v1395 = vrot.slane %v1394, 1
          %v1396 = vmax.f32 %v1394, %v1395
          %v1397 = vmax.f32 %v1324, %v1332
          %v1398 = vmax.f32 %v1397, %v1340
          %v1399 = vmax.f32 %v1398, %v1348
          %v1400 = vrot.slane %v1399, 4
          %v1401 = vmax.f32 %v1399, %v1400
          %v1402 = vrot.slane %v1401, 2
          %v1403 = vmax.f32 %v1401, %v1402
          %v1404 = vrot.slane %v1403, 1
          %v1405 = vmax.f32 %v1403, %v1404
          %v1406 = vmax.f32 %v1325, %v1333
          %v1407 = vmax.f32 %v1406, %v1341
          %v1408 = vmax.f32 %v1407, %v1349
          %v1409 = vrot.slane %v1408, 4
          %v1410 = vmax.f32 %v1408, %v1409
          %v1411 = vrot.slane %v1410, 2
          %v1412 = vmax.f32 %v1410, %v1411
          %v1413 = vrot.slane %v1412, 1
          %v1414 = vmax.f32 %v1412, %v1413
          %v1415 = vmax.f32 %v1326, %v1334
          %v1416 = vmax.f32 %v1415, %v1342
          %v1417 = vmax.f32 %v1416, %v1350
          %v1418 = vrot.slane %v1417, 4
          %v1419 = vmax.f32 %v1417, %v1418
          %v1420 = vrot.slane %v1419, 2
          %v1421 = vmax.f32 %v1419, %v1420
          %v1422 = vrot.slane %v1421, 1
          %v1423 = vmax.f32 %v1421, %v1422
          %v1432 = vrot.slane %v1369, 7
          %v1433 = vrot.slane %v1378, 6
          %v1434 = vrot.slane %v1387, 5
          %v1435 = vrot.slane %v1396, 4
          %v1436 = vrot.slane %v1405, 3
          %v1437 = vrot.slane %v1414, 2
          %v1438 = vrot.slane %v1423, 1
          %vm1439 = vcmask 1040384
          %v1440 = vsel %vm1439, %v1360, %v1432
          %vm1441 = vcmask 1042434
          %v1442 = vsel %vm1441, %v1433, %v1434
          %vm1443 = vcmask 1041408
          %v1444 = vsel %vm1443, %v1440, %v1442
          %vm1445 = vcmask 1044484
          %v1446 = vsel %vm1445, %v1435, %v1436
          %vm1447 = vcmask 1046534
          %v1448 = vsel %vm1447, %v1437, %v1438
          %vm1449 = vcmask 1045508
          %v1450 = vsel %vm1449, %v1446, %v1448
          %vm1451 = vcmask 1043456
          %v1452 = vsel %vm1451, %v1444, %v1450
          %v1454 = vmax.f32 %v1351, %v1452
          %1455 = vst [vmem:[#allocation2] sm:$0xff] %v1454
          %v1456 = vld [vmem:[#allocation2] sm:$0xff]
          %v1457 = vld [vmem:[%s6] sm:$0xff]
          %v1458 = vadd.f32 %v1456, %v1457
          %v1459 = vmax.f32 %v1458, 0.0
          %v1461 = vperm.slane %v1459, 0
          %v1462 = vperm.slane %v1459, 1
          %v1463 = vperm.slane %v1459, 2
          %v1464 = vperm.slane %v1459, 3
          %v1465 = vperm.slane %v1459, 4
          %v1466 = vperm.slane %v1459, 5
          %v1467 = vperm.slane %v1459, 6
          %v1468 = vperm.slane %v1459, 7
          %v1477 = vpack.c.bf16 %v1461, %v1461
          %v1478 = vpack.c.bf16 %v1462, %v1462
          %v1479 = vpack.c.bf16 %v1463, %v1463
          %v1480 = vpack.c.bf16 %v1464, %v1464
          %v1481 = vpack.c.bf16 %v1465, %v1465
          %v1482 = vpack.c.bf16 %v1466, %v1466
          %v1483 = vpack.c.bf16 %v1467, %v1467
          %v1484 = vpack.c.bf16 %v1468, %v1468
          %v1485 = vld [vmem:[#allocation6] sm:$0xff]
          %v1486 = vld [vmem:[#allocation6 + $0x8] sm:$0xff]
          %v1487 = vld [vmem:[#allocation6 + $0x10] sm:$0xff]
          %v1488 = vld [vmem:[#allocation6 + $0x18] sm:$0xff]
          %v1489 = vld [vmem:[#allocation6 + $0x20] sm:$0xff]
          %v1490 = vld [vmem:[#allocation6 + $0x28] sm:$0xff]
          %v1491 = vld [vmem:[#allocation6 + $0x30] sm:$0xff]
          %v1492 = vld [vmem:[#allocation6 + $0x38] sm:$0xff]
          %v1493 = vld [vmem:[#allocation6 + $0x40] sm:$0xff]
          %v1494 = vld [vmem:[#allocation6 + $0x48] sm:$0xff]
          %v1495 = vld [vmem:[#allocation6 + $0x50] sm:$0xff]
          %v1496 = vld [vmem:[#allocation6 + $0x58] sm:$0xff]
          %v1497 = vld [vmem:[#allocation6 + $0x60] sm:$0xff]
          %v1498 = vld [vmem:[#allocation6 + $0x68] sm:$0xff]
          %v1499 = vld [vmem:[#allocation6 + $0x70] sm:$0xff]
          %v1500 = vld [vmem:[#allocation6 + $0x78] sm:$0xff]
          %v1501 = vld [vmem:[#allocation6 + $0x80] sm:$0xff]
          %v1502 = vld [vmem:[#allocation6 + $0x88] sm:$0xff]
          %v1503 = vld [vmem:[#allocation6 + $0x90] sm:$0xff]
          %v1504 = vld [vmem:[#allocation6 + $0x98] sm:$0xff]
          %v1505 = vld [vmem:[#allocation6 + $0xa0] sm:$0xff]
          %v1506 = vld [vmem:[#allocation6 + $0xa8] sm:$0xff]
          %v1507 = vld [vmem:[#allocation6 + $0xb0] sm:$0xff]
          %v1508 = vld [vmem:[#allocation6 + $0xb8] sm:$0xff]
          %v1509 = vld [vmem:[#allocation6 + $0xc0] sm:$0xff]
          %v1510 = vld [vmem:[#allocation6 + $0xc8] sm:$0xff]
          %v1511 = vld [vmem:[#allocation6 + $0xd0] sm:$0xff]
          %v1512 = vld [vmem:[#allocation6 + $0xd8] sm:$0xff]
          %v1513 = vld [vmem:[#allocation6 + $0xe0] sm:$0xff]
          %v1514 = vld [vmem:[#allocation6 + $0xe8] sm:$0xff]
          %v1515 = vld [vmem:[#allocation6 + $0xf0] sm:$0xff]
          %v1516 = vld [vmem:[#allocation6 + $0xf8] sm:$0xff]
          %v1517 = vld [vmem:[#allocation6 + $0x100] sm:$0xff]
          %v1518 = vld [vmem:[#allocation6 + $0x108] sm:$0xff]
          %v1519 = vld [vmem:[#allocation6 + $0x110] sm:$0xff]
          %v1520 = vld [vmem:[#allocation6 + $0x118] sm:$0xff]
          %v1521 = vld [vmem:[#allocation6 + $0x120] sm:$0xff]
          %v1522 = vld [vmem:[#allocation6 + $0x128] sm:$0xff]
          %v1523 = vld [vmem:[#allocation6 + $0x130] sm:$0xff]
          %v1524 = vld [vmem:[#allocation6 + $0x138] sm:$0xff]
          %v1525 = vld [vmem:[#allocation6 + $0x140] sm:$0xff]
          %v1526 = vld [vmem:[#allocation6 + $0x148] sm:$0xff]
          %v1527 = vld [vmem:[#allocation6 + $0x150] sm:$0xff]
          %v1528 = vld [vmem:[#allocation6 + $0x158] sm:$0xff]
          %v1529 = vld [vmem:[#allocation6 + $0x160] sm:$0xff]
          %v1530 = vld [vmem:[#allocation6 + $0x168] sm:$0xff]
          %v1531 = vld [vmem:[#allocation6 + $0x170] sm:$0xff]
          %v1532 = vld [vmem:[#allocation6 + $0x178] sm:$0xff]
          %v1533 = vld [vmem:[#allocation6 + $0x180] sm:$0xff]
          %v1534 = vld [vmem:[#allocation6 + $0x188] sm:$0xff]
          %v1535 = vld [vmem:[#allocation6 + $0x190] sm:$0xff]
          %v1536 = vld [vmem:[#allocation6 + $0x198] sm:$0xff]
          %v1537 = vld [vmem:[#allocation6 + $0x1a0] sm:$0xff]
          %v1538 = vld [vmem:[#allocation6 + $0x1a8] sm:$0xff]
          %v1539 = vld [vmem:[#allocation6 + $0x1b0] sm:$0xff]
          %v1540 = vld [vmem:[#allocation6 + $0x1b8] sm:$0xff]
          %v1541 = vld [vmem:[#allocation6 + $0x1c0] sm:$0xff]
          %v1542 = vld [vmem:[#allocation6 + $0x1c8] sm:$0xff]
          %v1543 = vld [vmem:[#allocation6 + $0x1d0] sm:$0xff]
          %v1544 = vld [vmem:[#allocation6 + $0x1d8] sm:$0xff]
          %v1545 = vld [vmem:[#allocation6 + $0x1e0] sm:$0xff]
          %v1546 = vld [vmem:[#allocation6 + $0x1e8] sm:$0xff]
          %v1547 = vld [vmem:[#allocation6 + $0x1f0] sm:$0xff]
          %v1548 = vld [vmem:[#allocation6 + $0x1f8] sm:$0xff]
          %v1549 = vld [vmem:[#allocation6 + $0x200] sm:$0xff]
          %v1550 = vld [vmem:[#allocation6 + $0x208] sm:$0xff]
          %v1551 = vld [vmem:[#allocation6 + $0x210] sm:$0xff]
          %v1552 = vld [vmem:[#allocation6 + $0x218] sm:$0xff]
          %v1553 = vld [vmem:[#allocation6 + $0x220] sm:$0xff]
          %v1554 = vld [vmem:[#allocation6 + $0x228] sm:$0xff]
          %v1555 = vld [vmem:[#allocation6 + $0x230] sm:$0xff]
          %v1556 = vld [vmem:[#allocation6 + $0x238] sm:$0xff]
          %v1557 = vld [vmem:[#allocation6 + $0x240] sm:$0xff]
          %v1558 = vld [vmem:[#allocation6 + $0x248] sm:$0xff]
          %v1559 = vld [vmem:[#allocation6 + $0x250] sm:$0xff]
          %v1560 = vld [vmem:[#allocation6 + $0x258] sm:$0xff]
          %v1561 = vld [vmem:[#allocation6 + $0x260] sm:$0xff]
          %v1562 = vld [vmem:[#allocation6 + $0x268] sm:$0xff]
          %v1563 = vld [vmem:[#allocation6 + $0x270] sm:$0xff]
          %v1564 = vld [vmem:[#allocation6 + $0x278] sm:$0xff]
          %v1565 = vld [vmem:[#allocation6 + $0x280] sm:$0xff]
          %v1566 = vld [vmem:[#allocation6 + $0x288] sm:$0xff]
          %v1567 = vld [vmem:[#allocation6 + $0x290] sm:$0xff]
          %v1568 = vld [vmem:[#allocation6 + $0x298] sm:$0xff]
          %v1569 = vld [vmem:[#allocation6 + $0x2a0] sm:$0xff]
          %v1570 = vld [vmem:[#allocation6 + $0x2a8] sm:$0xff]
          %v1571 = vld [vmem:[#allocation6 + $0x2b0] sm:$0xff]
          %v1572 = vld [vmem:[#allocation6 + $0x2b8] sm:$0xff]
          %v1573 = vld [vmem:[#allocation6 + $0x2c0] sm:$0xff]
          %v1574 = vld [vmem:[#allocation6 + $0x2c8] sm:$0xff]
          %v1575 = vld [vmem:[#allocation6 + $0x2d0] sm:$0xff]
          %v1576 = vld [vmem:[#allocation6 + $0x2d8] sm:$0xff]
          %v1577 = vld [vmem:[#allocation6 + $0x2e0] sm:$0xff]
          %v1578 = vld [vmem:[#allocation6 + $0x2e8] sm:$0xff]
          %v1579 = vld [vmem:[#allocation6 + $0x2f0] sm:$0xff]
          %v1580 = vld [vmem:[#allocation6 + $0x2f8] sm:$0xff]
          %v1581 = vld [vmem:[#allocation6 + $0x300] sm:$0xff]
          %v1582 = vld [vmem:[#allocation6 + $0x308] sm:$0xff]
          %v1583 = vld [vmem:[#allocation6 + $0x310] sm:$0xff]
          %v1584 = vld [vmem:[#allocation6 + $0x318] sm:$0xff]
          %v1585 = vld [vmem:[#allocation6 + $0x320] sm:$0xff]
          %v1586 = vld [vmem:[#allocation6 + $0x328] sm:$0xff]
          %v1587 = vld [vmem:[#allocation6 + $0x330] sm:$0xff]
          %v1588 = vld [vmem:[#allocation6 + $0x338] sm:$0xff]
          %v1589 = vld [vmem:[#allocation6 + $0x340] sm:$0xff]
          %v1590 = vld [vmem:[#allocation6 + $0x348] sm:$0xff]
          %v1591 = vld [vmem:[#allocation6 + $0x350] sm:$0xff]
          %v1592 = vld [vmem:[#allocation6 + $0x358] sm:$0xff]
          %v1593 = vld [vmem:[#allocation6 + $0x360] sm:$0xff]
          %v1594 = vld [vmem:[#allocation6 + $0x368] sm:$0xff]
          %v1595 = vld [vmem:[#allocation6 + $0x370] sm:$0xff]
          %v1596 = vld [vmem:[#allocation6 + $0x378] sm:$0xff]
          %v1597 = vld [vmem:[#allocation6 + $0x380] sm:$0xff]
          %v1598 = vld [vmem:[#allocation6 + $0x388] sm:$0xff]
          %v1599 = vld [vmem:[#allocation6 + $0x390] sm:$0xff]
          %v1600 = vld [vmem:[#allocation6 + $0x398] sm:$0xff]
          %v1601 = vld [vmem:[#allocation6 + $0x3a0] sm:$0xff]
          %v1602 = vld [vmem:[#allocation6 + $0x3a8] sm:$0xff]
          %v1603 = vld [vmem:[#allocation6 + $0x3b0] sm:$0xff]
          %v1604 = vld [vmem:[#allocation6 + $0x3b8] sm:$0xff]
          %v1605 = vld [vmem:[#allocation6 + $0x3c0] sm:$0xff]
          %v1606 = vld [vmem:[#allocation6 + $0x3c8] sm:$0xff]
          %v1607 = vld [vmem:[#allocation6 + $0x3d0] sm:$0xff]
          %v1608 = vld [vmem:[#allocation6 + $0x3d8] sm:$0xff]
          %v1609 = vld [vmem:[#allocation6 + $0x3e0] sm:$0xff]
          %v1610 = vld [vmem:[#allocation6 + $0x3e8] sm:$0xff]
          %v1611 = vld [vmem:[#allocation6 + $0x3f0] sm:$0xff]
          %v1612 = vld [vmem:[#allocation6 + $0x3f8] sm:$0xff]
          %v1613 = vld [vmem:[#allocation6 + $0x400] sm:$0xff]
          %v1614 = vld [vmem:[#allocation6 + $0x408] sm:$0xff]
          %v1615 = vld [vmem:[#allocation6 + $0x410] sm:$0xff]
          %v1616 = vld [vmem:[#allocation6 + $0x418] sm:$0xff]
          %v1617 = vld [vmem:[#allocation6 + $0x420] sm:$0xff]
          %v1618 = vld [vmem:[#allocation6 + $0x428] sm:$0xff]
          %v1619 = vld [vmem:[#allocation6 + $0x430] sm:$0xff]
          %v1620 = vld [vmem:[#allocation6 + $0x438] sm:$0xff]
          %v1621 = vld [vmem:[#allocation6 + $0x440] sm:$0xff]
          %v1622 = vld [vmem:[#allocation6 + $0x448] sm:$0xff]
          %v1623 = vld [vmem:[#allocation6 + $0x450] sm:$0xff]
          %v1624 = vld [vmem:[#allocation6 + $0x458] sm:$0xff]
          %v1625 = vld [vmem:[#allocation6 + $0x460] sm:$0xff]
          %v1626 = vld [vmem:[#allocation6 + $0x468] sm:$0xff]
          %v1627 = vld [vmem:[#allocation6 + $0x470] sm:$0xff]
          %v1628 = vld [vmem:[#allocation6 + $0x478] sm:$0xff]
          %v1629 = vld [vmem:[#allocation6 + $0x480] sm:$0xff]
          %v1630 = vld [vmem:[#allocation6 + $0x488] sm:$0xff]
          %v1631 = vld [vmem:[#allocation6 + $0x490] sm:$0xff]
          %v1632 = vld [vmem:[#allocation6 + $0x498] sm:$0xff]
          %v1633 = vld [vmem:[#allocation6 + $0x4a0] sm:$0xff]
          %v1634 = vld [vmem:[#allocation6 + $0x4a8] sm:$0xff]
          %v1635 = vld [vmem:[#allocation6 + $0x4b0] sm:$0xff]
          %v1636 = vld [vmem:[#allocation6 + $0x4b8] sm:$0xff]
          %v1637 = vld [vmem:[#allocation6 + $0x4c0] sm:$0xff]
          %v1638 = vld [vmem:[#allocation6 + $0x4c8] sm:$0xff]
          %v1639 = vld [vmem:[#allocation6 + $0x4d0] sm:$0xff]
          %v1640 = vld [vmem:[#allocation6 + $0x4d8] sm:$0xff]
          %v1641 = vld [vmem:[#allocation6 + $0x4e0] sm:$0xff]
          %v1642 = vld [vmem:[#allocation6 + $0x4e8] sm:$0xff]
          %v1643 = vld [vmem:[#allocation6 + $0x4f0] sm:$0xff]
          %v1644 = vld [vmem:[#allocation6 + $0x4f8] sm:$0xff]
          %v1645 = vld [vmem:[#allocation6 + $0x500] sm:$0xff]
          %v1646 = vld [vmem:[#allocation6 + $0x508] sm:$0xff]
          %v1647 = vld [vmem:[#allocation6 + $0x510] sm:$0xff]
          %v1648 = vld [vmem:[#allocation6 + $0x518] sm:$0xff]
          %v1649 = vld [vmem:[#allocation6 + $0x520] sm:$0xff]
          %v1650 = vld [vmem:[#allocation6 + $0x528] sm:$0xff]
          %v1651 = vld [vmem:[#allocation6 + $0x530] sm:$0xff]
          %v1652 = vld [vmem:[#allocation6 + $0x538] sm:$0xff]
          %v1653 = vld [vmem:[#allocation6 + $0x540] sm:$0xff]
          %v1654 = vld [vmem:[#allocation6 + $0x548] sm:$0xff]
          %v1655 = vld [vmem:[#allocation6 + $0x550] sm:$0xff]
          %v1656 = vld [vmem:[#allocation6 + $0x558] sm:$0xff]
          %v1657 = vld [vmem:[#allocation6 + $0x560] sm:$0xff]
          %v1658 = vld [vmem:[#allocation6 + $0x568] sm:$0xff]
          %v1659 = vld [vmem:[#allocation6 + $0x570] sm:$0xff]
          %v1660 = vld [vmem:[#allocation6 + $0x578] sm:$0xff]
          %v1661 = vld [vmem:[#allocation6 + $0x580] sm:$0xff]
          %v1662 = vld [vmem:[#allocation6 + $0x588] sm:$0xff]
          %v1663 = vld [vmem:[#allocation6 + $0x590] sm:$0xff]
          %v1664 = vld [vmem:[#allocation6 + $0x598] sm:$0xff]
          %v1665 = vld [vmem:[#allocation6 + $0x5a0] sm:$0xff]
          %v1666 = vld [vmem:[#allocation6 + $0x5a8] sm:$0xff]
          %v1667 = vld [vmem:[#allocation6 + $0x5b0] sm:$0xff]
          %v1668 = vld [vmem:[#allocation6 + $0x5b8] sm:$0xff]
          %v1669 = vld [vmem:[#allocation6 + $0x5c0] sm:$0xff]
          %v1670 = vld [vmem:[#allocation6 + $0x5c8] sm:$0xff]
          %v1671 = vld [vmem:[#allocation6 + $0x5d0] sm:$0xff]
          %v1672 = vld [vmem:[#allocation6 + $0x5d8] sm:$0xff]
          %v1673 = vld [vmem:[#allocation6 + $0x5e0] sm:$0xff]
          %v1674 = vld [vmem:[#allocation6 + $0x5e8] sm:$0xff]
          %v1675 = vld [vmem:[#allocation6 + $0x5f0] sm:$0xff]
          %v1676 = vld [vmem:[#allocation6 + $0x5f8] sm:$0xff]
          %v1677 = vld [vmem:[#allocation6 + $0x600] sm:$0xff]
          %v1678 = vld [vmem:[#allocation6 + $0x608] sm:$0xff]
          %v1679 = vld [vmem:[#allocation6 + $0x610] sm:$0xff]
          %v1680 = vld [vmem:[#allocation6 + $0x618] sm:$0xff]
          %v1681 = vld [vmem:[#allocation6 + $0x620] sm:$0xff]
          %v1682 = vld [vmem:[#allocation6 + $0x628] sm:$0xff]
          %v1683 = vld [vmem:[#allocation6 + $0x630] sm:$0xff]
          %v1684 = vld [vmem:[#allocation6 + $0x638] sm:$0xff]
          %v1685 = vld [vmem:[#allocation6 + $0x640] sm:$0xff]
          %v1686 = vld [vmem:[#allocation6 + $0x648] sm:$0xff]
          %v1687 = vld [vmem:[#allocation6 + $0x650] sm:$0xff]
          %v1688 = vld [vmem:[#allocation6 + $0x658] sm:$0xff]
          %v1689 = vld [vmem:[#allocation6 + $0x660] sm:$0xff]
          %v1690 = vld [vmem:[#allocation6 + $0x668] sm:$0xff]
          %v1691 = vld [vmem:[#allocation6 + $0x670] sm:$0xff]
          %v1692 = vld [vmem:[#allocation6 + $0x678] sm:$0xff]
          %v1693 = vld [vmem:[#allocation6 + $0x680] sm:$0xff]
          %v1694 = vld [vmem:[#allocation6 + $0x688] sm:$0xff]
          %v1695 = vld [vmem:[#allocation6 + $0x690] sm:$0xff]
          %v1696 = vld [vmem:[#allocation6 + $0x698] sm:$0xff]
          %v1697 = vld [vmem:[#allocation6 + $0x6a0] sm:$0xff]
          %v1698 = vld [vmem:[#allocation6 + $0x6a8] sm:$0xff]
          %v1699 = vld [vmem:[#allocation6 + $0x6b0] sm:$0xff]
          %v1700 = vld [vmem:[#allocation6 + $0x6b8] sm:$0xff]
          %v1701 = vld [vmem:[#allocation6 + $0x6c0] sm:$0xff]
          %v1702 = vld [vmem:[#allocation6 + $0x6c8] sm:$0xff]
          %v1703 = vld [vmem:[#allocation6 + $0x6d0] sm:$0xff]
          %v1704 = vld [vmem:[#allocation6 + $0x6d8] sm:$0xff]
          %v1705 = vld [vmem:[#allocation6 + $0x6e0] sm:$0xff]
          %v1706 = vld [vmem:[#allocation6 + $0x6e8] sm:$0xff]
          %v1707 = vld [vmem:[#allocation6 + $0x6f0] sm:$0xff]
          %v1708 = vld [vmem:[#allocation6 + $0x6f8] sm:$0xff]
          %v1709 = vld [vmem:[#allocation6 + $0x700] sm:$0xff]
          %v1710 = vld [vmem:[#allocation6 + $0x708] sm:$0xff]
          %v1711 = vld [vmem:[#allocation6 + $0x710] sm:$0xff]
          %v1712 = vld [vmem:[#allocation6 + $0x718] sm:$0xff]
          %v1713 = vld [vmem:[#allocation6 + $0x720] sm:$0xff]
          %v1714 = vld [vmem:[#allocation6 + $0x728] sm:$0xff]
          %v1715 = vld [vmem:[#allocation6 + $0x730] sm:$0xff]
          %v1716 = vld [vmem:[#allocation6 + $0x738] sm:$0xff]
          %v1717 = vld [vmem:[#allocation6 + $0x740] sm:$0xff]
          %v1718 = vld [vmem:[#allocation6 + $0x748] sm:$0xff]
          %v1719 = vld [vmem:[#allocation6 + $0x750] sm:$0xff]
          %v1720 = vld [vmem:[#allocation6 + $0x758] sm:$0xff]
          %v1721 = vld [vmem:[#allocation6 + $0x760] sm:$0xff]
          %v1722 = vld [vmem:[#allocation6 + $0x768] sm:$0xff]
          %v1723 = vld [vmem:[#allocation6 + $0x770] sm:$0xff]
          %v1724 = vld [vmem:[#allocation6 + $0x778] sm:$0xff]
          %v1725 = vld [vmem:[#allocation6 + $0x780] sm:$0xff]
          %v1726 = vld [vmem:[#allocation6 + $0x788] sm:$0xff]
          %v1727 = vld [vmem:[#allocation6 + $0x790] sm:$0xff]
          %v1728 = vld [vmem:[#allocation6 + $0x798] sm:$0xff]
          %v1729 = vld [vmem:[#allocation6 + $0x7a0] sm:$0xff]
          %v1730 = vld [vmem:[#allocation6 + $0x7a8] sm:$0xff]
          %v1731 = vld [vmem:[#allocation6 + $0x7b0] sm:$0xff]
          %v1732 = vld [vmem:[#allocation6 + $0x7b8] sm:$0xff]
          %v1733 = vld [vmem:[#allocation6 + $0x7c0] sm:$0xff]
          %v1734 = vld [vmem:[#allocation6 + $0x7c8] sm:$0xff]
          %v1735 = vld [vmem:[#allocation6 + $0x7d0] sm:$0xff]
          %v1736 = vld [vmem:[#allocation6 + $0x7d8] sm:$0xff]
          %v1737 = vld [vmem:[#allocation6 + $0x7e0] sm:$0xff]
          %v1738 = vld [vmem:[#allocation6 + $0x7e8] sm:$0xff]
          %v1739 = vld [vmem:[#allocation6 + $0x7f0] sm:$0xff]
          %v1740 = vld [vmem:[#allocation6 + $0x7f8] sm:$0xff]
          %v1741 = vld [vmem:[%s8] sm:$0xf]
          %v1998 = vunpack.c.l.b16 %v1485
          %v1999 = vunpack.c.h.b16 %v1485
          %v2000 = vunpack.c.l.b16 %v1486
          %v2001 = vunpack.c.h.b16 %v1486
          %v2002 = vunpack.c.l.b16 %v1487
          %v2003 = vunpack.c.h.b16 %v1487
          %v2004 = vunpack.c.l.b16 %v1488
          %v2005 = vunpack.c.h.b16 %v1488
          %v2006 = vunpack.c.l.b16 %v1489
          %v2007 = vunpack.c.h.b16 %v1489
          %v2008 = vunpack.c.l.b16 %v1490
          %v2009 = vunpack.c.h.b16 %v1490
          %v2010 = vunpack.c.l.b16 %v1491
          %v2011 = vunpack.c.h.b16 %v1491
          %v2012 = vunpack.c.l.b16 %v1492
          %v2013 = vunpack.c.h.b16 %v1492
          %v2014 = vunpack.c.l.b16 %v1493
          %v2015 = vunpack.c.h.b16 %v1493
          %v2016 = vunpack.c.l.b16 %v1494
          %v2017 = vunpack.c.h.b16 %v1494
          %v2018 = vunpack.c.l.b16 %v1495
          %v2019 = vunpack.c.h.b16 %v1495
          %v2020 = vunpack.c.l.b16 %v1496
          %v2021 = vunpack.c.h.b16 %v1496
          %v2022 = vunpack.c.l.b16 %v1497
          %v2023 = vunpack.c.h.b16 %v1497
          %v2024 = vunpack.c.l.b16 %v1498
          %v2025 = vunpack.c.h.b16 %v1498
          %v2026 = vunpack.c.l.b16 %v1499
          %v2027 = vunpack.c.h.b16 %v1499
          %v2028 = vunpack.c.l.b16 %v1500
          %v2029 = vunpack.c.h.b16 %v1500
          %v2030 = vunpack.c.l.b16 %v1501
          %v2031 = vunpack.c.h.b16 %v1501
          %v2032 = vunpack.c.l.b16 %v1502
          %v2033 = vunpack.c.h.b16 %v1502
          %v2034 = vunpack.c.l.b16 %v1503
          %v2035 = vunpack.c.h.b16 %v1503
          %v2036 = vunpack.c.l.b16 %v1504
          %v2037 = vunpack.c.h.b16 %v1504
          %v2038 = vunpack.c.l.b16 %v1505
          %v2039 = vunpack.c.h.b16 %v1505
          %v2040 = vunpack.c.l.b16 %v1506
          %v2041 = vunpack.c.h.b16 %v1506
          %v2042 = vunpack.c.l.b16 %v1507
          %v2043 = vunpack.c.h.b16 %v1507
          %v2044 = vunpack.c.l.b16 %v1508
          %v2045 = vunpack.c.h.b16 %v1508
          %v2046 = vunpack.c.l.b16 %v1509
          %v2047 = vunpack.c.h.b16 %v1509
          %v2048 = vunpack.c.l.b16 %v1510
          %v2049 = vunpack.c.h.b16 %v1510
          %v2050 = vunpack.c.l.b16 %v1511
          %v2051 = vunpack.c.h.b16 %v1511
          %v2052 = vunpack.c.l.b16 %v1512
          %v2053 = vunpack.c.h.b16 %v1512
          %v2054 = vunpack.c.l.b16 %v1513
          %v2055 = vunpack.c.h.b16 %v1513
          %v2056 = vunpack.c.l.b16 %v1514
          %v2057 = vunpack.c.h.b16 %v1514
          %v2058 = vunpack.c.l.b16 %v1515
          %v2059 = vunpack.c.h.b16 %v1515
          %v2060 = vunpack.c.l.b16 %v1516
          %v2061 = vunpack.c.h.b16 %v1516
          %v2062 = vunpack.c.l.b16 %v1517
          %v2063 = vunpack.c.h.b16 %v1517
          %v2064 = vunpack.c.l.b16 %v1518
          %v2065 = vunpack.c.h.b16 %v1518
          %v2066 = vunpack.c.l.b16 %v1519
          %v2067 = vunpack.c.h.b16 %v1519
          %v2068 = vunpack.c.l.b16 %v1520
          %v2069 = vunpack.c.h.b16 %v1520
          %v2070 = vunpack.c.l.b16 %v1521
          %v2071 = vunpack.c.h.b16 %v1521
          %v2072 = vunpack.c.l.b16 %v1522
          %v2073 = vunpack.c.h.b16 %v1522
          %v2074 = vunpack.c.l.b16 %v1523
          %v2075 = vunpack.c.h.b16 %v1523
          %v2076 = vunpack.c.l.b16 %v1524
          %v2077 = vunpack.c.h.b16 %v1524
          %v2078 = vunpack.c.l.b16 %v1525
          %v2079 = vunpack.c.h.b16 %v1525
          %v2080 = vunpack.c.l.b16 %v1526
          %v2081 = vunpack.c.h.b16 %v1526
          %v2082 = vunpack.c.l.b16 %v1527
          %v2083 = vunpack.c.h.b16 %v1527
          %v2084 = vunpack.c.l.b16 %v1528
          %v2085 = vunpack.c.h.b16 %v1528
          %v2086 = vunpack.c.l.b16 %v1529
          %v2087 = vunpack.c.h.b16 %v1529
          %v2088 = vunpack.c.l.b16 %v1530
          %v2089 = vunpack.c.h.b16 %v1530
          %v2090 = vunpack.c.l.b16 %v1531
          %v2091 = vunpack.c.h.b16 %v1531
          %v2092 = vunpack.c.l.b16 %v1532
          %v2093 = vunpack.c.h.b16 %v1532
          %v2094 = vunpack.c.l.b16 %v1533
          %v2095 = vunpack.c.h.b16 %v1533
          %v2096 = vunpack.c.l.b16 %v1534
          %v2097 = vunpack.c.h.b16 %v1534
          %v2098 = vunpack.c.l.b16 %v1535
          %v2099 = vunpack.c.h.b16 %v1535
          %v2100 = vunpack.c.l.b16 %v1536
          %v2101 = vunpack.c.h.b16 %v1536
          %v2102 = vunpack.c.l.b16 %v1537
          %v2103 = vunpack.c.h.b16 %v1537
          %v2104 = vunpack.c.l.b16 %v1538
          %v2105 = vunpack.c.h.b16 %v1538
          %v2106 = vunpack.c.l.b16 %v1539
          %v2107 = vunpack.c.h.b16 %v1539
          %v2108 = vunpack.c.l.b16 %v1540
          %v2109 = vunpack.c.h.b16 %v1540
          %v2110 = vunpack.c.l.b16 %v1541
          %v2111 = vunpack.c.h.b16 %v1541
          %v2112 = vunpack.c.l.b16 %v1542
          %v2113 = vunpack.c.h.b16 %v1542
          %v2114 = vunpack.c.l.b16 %v1543
          %v2115 = vunpack.c.h.b16 %v1543
          %v2116 = vunpack.c.l.b16 %v1544
          %v2117 = vunpack.c.h.b16 %v1544
          %v2118 = vunpack.c.l.b16 %v1545
          %v2119 = vunpack.c.h.b16 %v1545
          %v2120 = vunpack.c.l.b16 %v1546
          %v2121 = vunpack.c.h.b16 %v1546
          %v2122 = vunpack.c.l.b16 %v1547
          %v2123 = vunpack.c.h.b16 %v1547
          %v2124 = vunpack.c.l.b16 %v1548
          %v2125 = vunpack.c.h.b16 %v1548
          %v2126 = vunpack.c.l.b16 %v1549
          %v2127 = vunpack.c.h.b16 %v1549
          %v2128 = vunpack.c.l.b16 %v1550
          %v2129 = vunpack.c.h.b16 %v1550
          %v2130 = vunpack.c.l.b16 %v1551
          %v2131 = vunpack.c.h.b16 %v1551
          %v2132 = vunpack.c.l.b16 %v1552
          %v2133 = vunpack.c.h.b16 %v1552
          %v2134 = vunpack.c.l.b16 %v1553
          %v2135 = vunpack.c.h.b16 %v1553
          %v2136 = vunpack.c.l.b16 %v1554
          %v2137 = vunpack.c.h.b16 %v1554
          %v2138 = vunpack.c.l.b16 %v1555
          %v2139 = vunpack.c.h.b16 %v1555
          %v2140 = vunpack.c.l.b16 %v1556
          %v2141 = vunpack.c.h.b16 %v1556
          %v2142 = vunpack.c.l.b16 %v1557
          %v2143 = vunpack.c.h.b16 %v1557
          %v2144 = vunpack.c.l.b16 %v1558
          %v2145 = vunpack.c.h.b16 %v1558
          %v2146 = vunpack.c.l.b16 %v1559
          %v2147 = vunpack.c.h.b16 %v1559
          %v2148 = vunpack.c.l.b16 %v1560
          %v2149 = vunpack.c.h.b16 %v1560
          %v2150 = vunpack.c.l.b16 %v1561
          %v2151 = vunpack.c.h.b16 %v1561
          %v2152 = vunpack.c.l.b16 %v1562
          %v2153 = vunpack.c.h.b16 %v1562
          %v2154 = vunpack.c.l.b16 %v1563
          %v2155 = vunpack.c.h.b16 %v1563
          %v2156 = vunpack.c.l.b16 %v1564
          %v2157 = vunpack.c.h.b16 %v1564
          %v2158 = vunpack.c.l.b16 %v1565
          %v2159 = vunpack.c.h.b16 %v1565
          %v2160 = vunpack.c.l.b16 %v1566
          %v2161 = vunpack.c.h.b16 %v1566
          %v2162 = vunpack.c.l.b16 %v1567
          %v2163 = vunpack.c.h.b16 %v1567
          %v2164 = vunpack.c.l.b16 %v1568
          %v2165 = vunpack.c.h.b16 %v1568
          %v2166 = vunpack.c.l.b16 %v1569
          %v2167 = vunpack.c.h.b16 %v1569
          %v2168 = vunpack.c.l.b16 %v1570
          %v2169 = vunpack.c.h.b16 %v1570
          %v2170 = vunpack.c.l.b16 %v1571
          %v2171 = vunpack.c.h.b16 %v1571
          %v2172 = vunpack.c.l.b16 %v1572
          %v2173 = vunpack.c.h.b16 %v1572
          %v2174 = vunpack.c.l.b16 %v1573
          %v2175 = vunpack.c.h.b16 %v1573
          %v2176 = vunpack.c.l.b16 %v1574
          %v2177 = vunpack.c.h.b16 %v1574
          %v2178 = vunpack.c.l.b16 %v1575
          %v2179 = vunpack.c.h.b16 %v1575
          %v2180 = vunpack.c.l.b16 %v1576
          %v2181 = vunpack.c.h.b16 %v1576
          %v2182 = vunpack.c.l.b16 %v1577
          %v2183 = vunpack.c.h.b16 %v1577
          %v2184 = vunpack.c.l.b16 %v1578
          %v2185 = vunpack.c.h.b16 %v1578
          %v2186 = vunpack.c.l.b16 %v1579
          %v2187 = vunpack.c.h.b16 %v1579
          %v2188 = vunpack.c.l.b16 %v1580
          %v2189 = vunpack.c.h.b16 %v1580
          %v2190 = vunpack.c.l.b16 %v1581
          %v2191 = vunpack.c.h.b16 %v1581
          %v2192 = vunpack.c.l.b16 %v1582
          %v2193 = vunpack.c.h.b16 %v1582
          %v2194 = vunpack.c.l.b16 %v1583
          %v2195 = vunpack.c.h.b16 %v1583
          %v2196 = vunpack.c.l.b16 %v1584
          %v2197 = vunpack.c.h.b16 %v1584
          %v2198 = vunpack.c.l.b16 %v1585
          %v2199 = vunpack.c.h.b16 %v1585
          %v2200 = vunpack.c.l.b16 %v1586
          %v2201 = vunpack.c.h.b16 %v1586
          %v2202 = vunpack.c.l.b16 %v1587
          %v2203 = vunpack.c.h.b16 %v1587
          %v2204 = vunpack.c.l.b16 %v1588
          %v2205 = vunpack.c.h.b16 %v1588
          %v2206 = vunpack.c.l.b16 %v1589
          %v2207 = vunpack.c.h.b16 %v1589
          %v2208 = vunpack.c.l.b16 %v1590
          %v2209 = vunpack.c.h.b16 %v1590
          %v2210 = vunpack.c.l.b16 %v1591
          %v2211 = vunpack.c.h.b16 %v1591
          %v2212 = vunpack.c.l.b16 %v1592
          %v2213 = vunpack.c.h.b16 %v1592
          %v2214 = vunpack.c.l.b16 %v1593
          %v2215 = vunpack.c.h.b16 %v1593
          %v2216 = vunpack.c.l.b16 %v1594
          %v2217 = vunpack.c.h.b16 %v1594
          %v2218 = vunpack.c.l.b16 %v1595
          %v2219 = vunpack.c.h.b16 %v1595
          %v2220 = vunpack.c.l.b16 %v1596
          %v2221 = vunpack.c.h.b16 %v1596
          %v2222 = vunpack.c.l.b16 %v1597
          %v2223 = vunpack.c.h.b16 %v1597
          %v2224 = vunpack.c.l.b16 %v1598
          %v2225 = vunpack.c.h.b16 %v1598
          %v2226 = vunpack.c.l.b16 %v1599
          %v2227 = vunpack.c.h.b16 %v1599
          %v2228 = vunpack.c.l.b16 %v1600
          %v2229 = vunpack.c.h.b16 %v1600
          %v2230 = vunpack.c.l.b16 %v1601
          %v2231 = vunpack.c.h.b16 %v1601
          %v2232 = vunpack.c.l.b16 %v1602
          %v2233 = vunpack.c.h.b16 %v1602
          %v2234 = vunpack.c.l.b16 %v1603
          %v2235 = vunpack.c.h.b16 %v1603
          %v2236 = vunpack.c.l.b16 %v1604
          %v2237 = vunpack.c.h.b16 %v1604
          %v2238 = vunpack.c.l.b16 %v1605
          %v2239 = vunpack.c.h.b16 %v1605
          %v2240 = vunpack.c.l.b16 %v1606
          %v2241 = vunpack.c.h.b16 %v1606
          %v2242 = vunpack.c.l.b16 %v1607
          %v2243 = vunpack.c.h.b16 %v1607
          %v2244 = vunpack.c.l.b16 %v1608
          %v2245 = vunpack.c.h.b16 %v1608
          %v2246 = vunpack.c.l.b16 %v1609
          %v2247 = vunpack.c.h.b16 %v1609
          %v2248 = vunpack.c.l.b16 %v1610
          %v2249 = vunpack.c.h.b16 %v1610
          %v2250 = vunpack.c.l.b16 %v1611
          %v2251 = vunpack.c.h.b16 %v1611
          %v2252 = vunpack.c.l.b16 %v1612
          %v2253 = vunpack.c.h.b16 %v1612
          %v2254 = vunpack.c.l.b16 %v1613
          %v2255 = vunpack.c.h.b16 %v1613
          %v2256 = vunpack.c.l.b16 %v1614
          %v2257 = vunpack.c.h.b16 %v1614
          %v2258 = vunpack.c.l.b16 %v1615
          %v2259 = vunpack.c.h.b16 %v1615
          %v2260 = vunpack.c.l.b16 %v1616
          %v2261 = vunpack.c.h.b16 %v1616
          %v2262 = vunpack.c.l.b16 %v1617
          %v2263 = vunpack.c.h.b16 %v1617
          %v2264 = vunpack.c.l.b16 %v1618
          %v2265 = vunpack.c.h.b16 %v1618
          %v2266 = vunpack.c.l.b16 %v1619
          %v2267 = vunpack.c.h.b16 %v1619
          %v2268 = vunpack.c.l.b16 %v1620
          %v2269 = vunpack.c.h.b16 %v1620
          %v2270 = vunpack.c.l.b16 %v1621
          %v2271 = vunpack.c.h.b16 %v1621
          %v2272 = vunpack.c.l.b16 %v1622
          %v2273 = vunpack.c.h.b16 %v1622
          %v2274 = vunpack.c.l.b16 %v1623
          %v2275 = vunpack.c.h.b16 %v1623
          %v2276 = vunpack.c.l.b16 %v1624
          %v2277 = vunpack.c.h.b16 %v1624
          %v2278 = vunpack.c.l.b16 %v1625
          %v2279 = vunpack.c.h.b16 %v1625
          %v2280 = vunpack.c.l.b16 %v1626
          %v2281 = vunpack.c.h.b16 %v1626
          %v2282 = vunpack.c.l.b16 %v1627
          %v2283 = vunpack.c.h.b16 %v1627
          %v2284 = vunpack.c.l.b16 %v1628
          %v2285 = vunpack.c.h.b16 %v1628
          %v2286 = vunpack.c.l.b16 %v1629
          %v2287 = vunpack.c.h.b16 %v1629
          %v2288 = vunpack.c.l.b16 %v1630
          %v2289 = vunpack.c.h.b16 %v1630
          %v2290 = vunpack.c.l.b16 %v1631
          %v2291 = vunpack.c.h.b16 %v1631
          %v2292 = vunpack.c.l.b16 %v1632
          %v2293 = vunpack.c.h.b16 %v1632
          %v2294 = vunpack.c.l.b16 %v1633
          %v2295 = vunpack.c.h.b16 %v1633
          %v2296 = vunpack.c.l.b16 %v1634
          %v2297 = vunpack.c.h.b16 %v1634
          %v2298 = vunpack.c.l.b16 %v1635
          %v2299 = vunpack.c.h.b16 %v1635
          %v2300 = vunpack.c.l.b16 %v1636
          %v2301 = vunpack.c.h.b16 %v1636
          %v2302 = vunpack.c.l.b16 %v1637
          %v2303 = vunpack.c.h.b16 %v1637
          %v2304 = vunpack.c.l.b16 %v1638
          %v2305 = vunpack.c.h.b16 %v1638
          %v2306 = vunpack.c.l.b16 %v1639
          %v2307 = vunpack.c.h.b16 %v1639
          %v2308 = vunpack.c.l.b16 %v1640
          %v2309 = vunpack.c.h.b16 %v1640
          %v2310 = vunpack.c.l.b16 %v1641
          %v2311 = vunpack.c.h.b16 %v1641
          %v2312 = vunpack.c.l.b16 %v1642
          %v2313 = vunpack.c.h.b16 %v1642
          %v2314 = vunpack.c.l.b16 %v1643
          %v2315 = vunpack.c.h.b16 %v1643
          %v2316 = vunpack.c.l.b16 %v1644
          %v2317 = vunpack.c.h.b16 %v1644
          %v2318 = vunpack.c.l.b16 %v1645
          %v2319 = vunpack.c.h.b16 %v1645
          %v2320 = vunpack.c.l.b16 %v1646
          %v2321 = vunpack.c.h.b16 %v1646
          %v2322 = vunpack.c.l.b16 %v1647
          %v2323 = vunpack.c.h.b16 %v1647
          %v2324 = vunpack.c.l.b16 %v1648
          %v2325 = vunpack.c.h.b16 %v1648
          %v2326 = vunpack.c.l.b16 %v1649
          %v2327 = vunpack.c.h.b16 %v1649
          %v2328 = vunpack.c.l.b16 %v1650
          %v2329 = vunpack.c.h.b16 %v1650
          %v2330 = vunpack.c.l.b16 %v1651
          %v2331 = vunpack.c.h.b16 %v1651
          %v2332 = vunpack.c.l.b16 %v1652
          %v2333 = vunpack.c.h.b16 %v1652
          %v2334 = vunpack.c.l.b16 %v1653
          %v2335 = vunpack.c.h.b16 %v1653
          %v2336 = vunpack.c.l.b16 %v1654
          %v2337 = vunpack.c.h.b16 %v1654
          %v2338 = vunpack.c.l.b16 %v1655
          %v2339 = vunpack.c.h.b16 %v1655
          %v2340 = vunpack.c.l.b16 %v1656
          %v2341 = vunpack.c.h.b16 %v1656
          %v2342 = vunpack.c.l.b16 %v1657
          %v2343 = vunpack.c.h.b16 %v1657
          %v2344 = vunpack.c.l.b16 %v1658
          %v2345 = vunpack.c.h.b16 %v1658
          %v2346 = vunpack.c.l.b16 %v1659
          %v2347 = vunpack.c.h.b16 %v1659
          %v2348 = vunpack.c.l.b16 %v1660
          %v2349 = vunpack.c.h.b16 %v1660
          %v2350 = vunpack.c.l.b16 %v1661
          %v2351 = vunpack.c.h.b16 %v1661
          %v2352 = vunpack.c.l.b16 %v1662
          %v2353 = vunpack.c.h.b16 %v1662
          %v2354 = vunpack.c.l.b16 %v1663
          %v2355 = vunpack.c.h.b16 %v1663
          %v2356 = vunpack.c.l.b16 %v1664
          %v2357 = vunpack.c.h.b16 %v1664
          %v2358 = vunpack.c.l.b16 %v1665
          %v2359 = vunpack.c.h.b16 %v1665
          %v2360 = vunpack.c.l.b16 %v1666
          %v2361 = vunpack.c.h.b16 %v1666
          %v2362 = vunpack.c.l.b16 %v1667
          %v2363 = vunpack.c.h.b16 %v1667
          %v2364 = vunpack.c.l.b16 %v1668
          %v2365 = vunpack.c.h.b16 %v1668
          %v2366 = vunpack.c.l.b16 %v1669
          %v2367 = vunpack.c.h.b16 %v1669
          %v2368 = vunpack.c.l.b16 %v1670
          %v2369 = vunpack.c.h.b16 %v1670
          %v2370 = vunpack.c.l.b16 %v1671
          %v2371 = vunpack.c.h.b16 %v1671
          %v2372 = vunpack.c.l.b16 %v1672
          %v2373 = vunpack.c.h.b16 %v1672
          %v2374 = vunpack.c.l.b16 %v1673
          %v2375 = vunpack.c.h.b16 %v1673
          %v2376 = vunpack.c.l.b16 %v1674
          %v2377 = vunpack.c.h.b16 %v1674
          %v2378 = vunpack.c.l.b16 %v1675
          %v2379 = vunpack.c.h.b16 %v1675
          %v2380 = vunpack.c.l.b16 %v1676
          %v2381 = vunpack.c.h.b16 %v1676
          %v2382 = vunpack.c.l.b16 %v1677
          %v2383 = vunpack.c.h.b16 %v1677
          %v2384 = vunpack.c.l.b16 %v1678
          %v2385 = vunpack.c.h.b16 %v1678
          %v2386 = vunpack.c.l.b16 %v1679
          %v2387 = vunpack.c.h.b16 %v1679
          %v2388 = vunpack.c.l.b16 %v1680
          %v2389 = vunpack.c.h.b16 %v1680
          %v2390 = vunpack.c.l.b16 %v1681
          %v2391 = vunpack.c.h.b16 %v1681
          %v2392 = vunpack.c.l.b16 %v1682
          %v2393 = vunpack.c.h.b16 %v1682
          %v2394 = vunpack.c.l.b16 %v1683
          %v2395 = vunpack.c.h.b16 %v1683
          %v2396 = vunpack.c.l.b16 %v1684
          %v2397 = vunpack.c.h.b16 %v1684
          %v2398 = vunpack.c.l.b16 %v1685
          %v2399 = vunpack.c.h.b16 %v1685
          %v2400 = vunpack.c.l.b16 %v1686
          %v2401 = vunpack.c.h.b16 %v1686
          %v2402 = vunpack.c.l.b16 %v1687
          %v2403 = vunpack.c.h.b16 %v1687
          %v2404 = vunpack.c.l.b16 %v1688
          %v2405 = vunpack.c.h.b16 %v1688
          %v2406 = vunpack.c.l.b16 %v1689
          %v2407 = vunpack.c.h.b16 %v1689
          %v2408 = vunpack.c.l.b16 %v1690
          %v2409 = vunpack.c.h.b16 %v1690
          %v2410 = vunpack.c.l.b16 %v1691
          %v2411 = vunpack.c.h.b16 %v1691
          %v2412 = vunpack.c.l.b16 %v1692
          %v2413 = vunpack.c.h.b16 %v1692
          %v2414 = vunpack.c.l.b16 %v1693
          %v2415 = vunpack.c.h.b16 %v1693
          %v2416 = vunpack.c.l.b16 %v1694
          %v2417 = vunpack.c.h.b16 %v1694
          %v2418 = vunpack.c.l.b16 %v1695
          %v2419 = vunpack.c.h.b16 %v1695
          %v2420 = vunpack.c.l.b16 %v1696
          %v2421 = vunpack.c.h.b16 %v1696
          %v2422 = vunpack.c.l.b16 %v1697
          %v2423 = vunpack.c.h.b16 %v1697
          %v2424 = vunpack.c.l.b16 %v1698
          %v2425 = vunpack.c.h.b16 %v1698
          %v2426 = vunpack.c.l.b16 %v1699
          %v2427 = vunpack.c.h.b16 %v1699
          %v2428 = vunpack.c.l.b16 %v1700
          %v2429 = vunpack.c.h.b16 %v1700
          %v2430 = vunpack.c.l.b16 %v1701
          %v2431 = vunpack.c.h.b16 %v1701
          %v2432 = vunpack.c.l.b16 %v1702
          %v2433 = vunpack.c.h.b16 %v1702
          %v2434 = vunpack.c.l.b16 %v1703
          %v2435 = vunpack.c.h.b16 %v1703
          %v2436 = vunpack.c.l.b16 %v1704
          %v2437 = vunpack.c.h.b16 %v1704
          %v2438 = vunpack.c.l.b16 %v1705
          %v2439 = vunpack.c.h.b16 %v1705
          %v2440 = vunpack.c.l.b16 %v1706
          %v2441 = vunpack.c.h.b16 %v1706
          %v2442 = vunpack.c.l.b16 %v1707
          %v2443 = vunpack.c.h.b16 %v1707
          %v2444 = vunpack.c.l.b16 %v1708
          %v2445 = vunpack.c.h.b16 %v1708
          %v2446 = vunpack.c.l.b16 %v1709
          %v2447 = vunpack.c.h.b16 %v1709
          %v2448 = vunpack.c.l.b16 %v1710
          %v2449 = vunpack.c.h.b16 %v1710
          %v2450 = vunpack.c.l.b16 %v1711
          %v2451 = vunpack.c.h.b16 %v1711
          %v2452 = vunpack.c.l.b16 %v1712
          %v2453 = vunpack.c.h.b16 %v1712
          %v2454 = vunpack.c.l.b16 %v1713
          %v2455 = vunpack.c.h.b16 %v1713
          %v2456 = vunpack.c.l.b16 %v1714
          %v2457 = vunpack.c.h.b16 %v1714
          %v2458 = vunpack.c.l.b16 %v1715
          %v2459 = vunpack.c.h.b16 %v1715
          %v2460 = vunpack.c.l.b16 %v1716
          %v2461 = vunpack.c.h.b16 %v1716
          %v2462 = vunpack.c.l.b16 %v1717
          %v2463 = vunpack.c.h.b16 %v1717
          %v2464 = vunpack.c.l.b16 %v1718
          %v2465 = vunpack.c.h.b16 %v1718
          %v2466 = vunpack.c.l.b16 %v1719
          %v2467 = vunpack.c.h.b16 %v1719
          %v2468 = vunpack.c.l.b16 %v1720
          %v2469 = vunpack.c.h.b16 %v1720
          %v2470 = vunpack.c.l.b16 %v1721
          %v2471 = vunpack.c.h.b16 %v1721
          %v2472 = vunpack.c.l.b16 %v1722
          %v2473 = vunpack.c.h.b16 %v1722
          %v2474 = vunpack.c.l.b16 %v1723
          %v2475 = vunpack.c.h.b16 %v1723
          %v2476 = vunpack.c.l.b16 %v1724
          %v2477 = vunpack.c.h.b16 %v1724
          %v2478 = vunpack.c.l.b16 %v1725
          %v2479 = vunpack.c.h.b16 %v1725
          %v2480 = vunpack.c.l.b16 %v1726
          %v2481 = vunpack.c.h.b16 %v1726
          %v2482 = vunpack.c.l.b16 %v1727
          %v2483 = vunpack.c.h.b16 %v1727
          %v2484 = vunpack.c.l.b16 %v1728
          %v2485 = vunpack.c.h.b16 %v1728
          %v2486 = vunpack.c.l.b16 %v1729
          %v2487 = vunpack.c.h.b16 %v1729
          %v2488 = vunpack.c.l.b16 %v1730
          %v2489 = vunpack.c.h.b16 %v1730
          %v2490 = vunpack.c.l.b16 %v1731
          %v2491 = vunpack.c.h.b16 %v1731
          %v2492 = vunpack.c.l.b16 %v1732
          %v2493 = vunpack.c.h.b16 %v1732
          %v2494 = vunpack.c.l.b16 %v1733
          %v2495 = vunpack.c.h.b16 %v1733
          %v2496 = vunpack.c.l.b16 %v1734
          %v2497 = vunpack.c.h.b16 %v1734
          %v2498 = vunpack.c.l.b16 %v1735
          %v2499 = vunpack.c.h.b16 %v1735
          %v2500 = vunpack.c.l.b16 %v1736
          %v2501 = vunpack.c.h.b16 %v1736
          %v2502 = vunpack.c.l.b16 %v1737
          %v2503 = vunpack.c.h.b16 %v1737
          %v2504 = vunpack.c.l.b16 %v1738
          %v2505 = vunpack.c.h.b16 %v1738
          %v2506 = vunpack.c.l.b16 %v1739
          %v2507 = vunpack.c.h.b16 %v1739
          %v2508 = vunpack.c.l.b16 %v1740
          %v2509 = vunpack.c.h.b16 %v1740
          %v2510 = vpack.c.b16 %v2002, %v1998
          %v2511 = vpack.c.b16 %v2003, %v1999
          %v2512 = vpack.c.b16 %v2004, %v2000
          %v2513 = vpack.c.b16 %v2005, %v2001
          %v2514 = vpack.c.b16 %v2010, %v2006
          %v2515 = vpack.c.b16 %v2011, %v2007
          %v2516 = vpack.c.b16 %v2012, %v2008
          %v2517 = vpack.c.b16 %v2013, %v2009
          %v2518 = vpack.c.b16 %v2018, %v2014
          %v2519 = vpack.c.b16 %v2019, %v2015
          %v2520 = vpack.c.b16 %v2020, %v2016
          %v2521 = vpack.c.b16 %v2021, %v2017
          %v2522 = vpack.c.b16 %v2026, %v2022
          %v2523 = vpack.c.b16 %v2027, %v2023
          %v2524 = vpack.c.b16 %v2028, %v2024
          %v2525 = vpack.c.b16 %v2029, %v2025
          %v2526 = vpack.c.b16 %v2034, %v2030
          %v2527 = vpack.c.b16 %v2035, %v2031
          %v2528 = vpack.c.b16 %v2036, %v2032
          %v2529 = vpack.c.b16 %v2037, %v2033
          %v2530 = vpack.c.b16 %v2042, %v2038
          %v2531 = vpack.c.b16 %v2043, %v2039
          %v2532 = vpack.c.b16 %v2044, %v2040
          %v2533 = vpack.c.b16 %v2045, %v2041
          %v2534 = vpack.c.b16 %v2050, %v2046
          %v2535 = vpack.c.b16 %v2051, %v2047
          %v2536 = vpack.c.b16 %v2052, %v2048
          %v2537 = vpack.c.b16 %v2053, %v2049
          %v2538 = vpack.c.b16 %v2058, %v2054
          %v2539 = vpack.c.b16 %v2059, %v2055
          %v2540 = vpack.c.b16 %v2060, %v2056
          %v2541 = vpack.c.b16 %v2061, %v2057
          %v2542 = vpack.c.b16 %v2066, %v2062
          %v2543 = vpack.c.b16 %v2067, %v2063
          %v2544 = vpack.c.b16 %v2068, %v2064
          %v2545 = vpack.c.b16 %v2069, %v2065
          %v2546 = vpack.c.b16 %v2074, %v2070
          %v2547 = vpack.c.b16 %v2075, %v2071
          %v2548 = vpack.c.b16 %v2076, %v2072
          %v2549 = vpack.c.b16 %v2077, %v2073
          %v2550 = vpack.c.b16 %v2082, %v2078
          %v2551 = vpack.c.b16 %v2083, %v2079
          %v2552 = vpack.c.b16 %v2084, %v2080
          %v2553 = vpack.c.b16 %v2085, %v2081
          %v2554 = vpack.c.b16 %v2090, %v2086
          %v2555 = vpack.c.b16 %v2091, %v2087
          %v2556 = vpack.c.b16 %v2092, %v2088
          %v2557 = vpack.c.b16 %v2093, %v2089
          %v2558 = vpack.c.b16 %v2098, %v2094
          %v2559 = vpack.c.b16 %v2099, %v2095
          %v2560 = vpack.c.b16 %v2100, %v2096
          %v2561 = vpack.c.b16 %v2101, %v2097
          %v2562 = vpack.c.b16 %v2106, %v2102
          %v2563 = vpack.c.b16 %v2107, %v2103
          %v2564 = vpack.c.b16 %v2108, %v2104
          %v2565 = vpack.c.b16 %v2109, %v2105
          %v2566 = vpack.c.b16 %v2114, %v2110
          %v2567 = vpack.c.b16 %v2115, %v2111
          %v2568 = vpack.c.b16 %v2116, %v2112
          %v2569 = vpack.c.b16 %v2117, %v2113
          %v2570 = vpack.c.b16 %v2122, %v2118
          %v2571 = vpack.c.b16 %v2123, %v2119
          %v2572 = vpack.c.b16 %v2124, %v2120
          %v2573 = vpack.c.b16 %v2125, %v2121
          %v2574 = vpack.c.b16 %v2130, %v2126
          %v2575 = vpack.c.b16 %v2131, %v2127
          %v2576 = vpack.c.b16 %v2132, %v2128
          %v2577 = vpack.c.b16 %v2133, %v2129
          %v2578 = vpack.c.b16 %v2138, %v2134
          %v2579 = vpack.c.b16 %v2139, %v2135
          %v2580 = vpack.c.b16 %v2140, %v2136
          %v2581 = vpack.c.b16 %v2141, %v2137
          %v2582 = vpack.c.b16 %v2146, %v2142
          %v2583 = vpack.c.b16 %v2147, %v2143
          %v2584 = vpack.c.b16 %v2148, %v2144
          %v2585 = vpack.c.b16 %v2149, %v2145
          %v2586 = vpack.c.b16 %v2154, %v2150
          %v2587 = vpack.c.b16 %v2155, %v2151
          %v2588 = vpack.c.b16 %v2156, %v2152
          %v2589 = vpack.c.b16 %v2157, %v2153
          %v2590 = vpack.c.b16 %v2162, %v2158
          %v2591 = vpack.c.b16 %v2163, %v2159
          %v2592 = vpack.c.b16 %v2164, %v2160
          %v2593 = vpack.c.b16 %v2165, %v2161
          %v2594 = vpack.c.b16 %v2170, %v2166
          %v2595 = vpack.c.b16 %v2171, %v2167
          %v2596 = vpack.c.b16 %v2172, %v2168
          %v2597 = vpack.c.b16 %v2173, %v2169
          %v2598 = vpack.c.b16 %v2178, %v2174
          %v2599 = vpack.c.b16 %v2179, %v2175
          %v2600 = vpack.c.b16 %v2180, %v2176
          %v2601 = vpack.c.b16 %v2181, %v2177
          %v2602 = vpack.c.b16 %v2186, %v2182
          %v2603 = vpack.c.b16 %v2187, %v2183
          %v2604 = vpack.c.b16 %v2188, %v2184
          %v2605 = vpack.c.b16 %v2189, %v2185
          %v2606 = vpack.c.b16 %v2194, %v2190
          %v2607 = vpack.c.b16 %v2195, %v2191
          %v2608 = vpack.c.b16 %v2196, %v2192
          %v2609 = vpack.c.b16 %v2197, %v2193
          %v2610 = vpack.c.b16 %v2202, %v2198
          %v2611 = vpack.c.b16 %v2203, %v2199
          %v2612 = vpack.c.b16 %v2204, %v2200
          %v2613 = vpack.c.b16 %v2205, %v2201
          %v2614 = vpack.c.b16 %v2210, %v2206
          %v2615 = vpack.c.b16 %v2211, %v2207
          %v2616 = vpack.c.b16 %v2212, %v2208
          %v2617 = vpack.c.b16 %v2213, %v2209
          %v2618 = vpack.c.b16 %v2218, %v2214
          %v2619 = vpack.c.b16 %v2219, %v2215
          %v2620 = vpack.c.b16 %v2220, %v2216
          %v2621 = vpack.c.b16 %v2221, %v2217
          %v2622 = vpack.c.b16 %v2226, %v2222
          %v2623 = vpack.c.b16 %v2227, %v2223
          %v2624 = vpack.c.b16 %v2228, %v2224
          %v2625 = vpack.c.b16 %v2229, %v2225
          %v2626 = vpack.c.b16 %v2234, %v2230
          %v2627 = vpack.c.b16 %v2235, %v2231
          %v2628 = vpack.c.b16 %v2236, %v2232
          %v2629 = vpack.c.b16 %v2237, %v2233
          %v2630 = vpack.c.b16 %v2242, %v2238
          %v2631 = vpack.c.b16 %v2243, %v2239
          %v2632 = vpack.c.b16 %v2244, %v2240
          %v2633 = vpack.c.b16 %v2245, %v2241
          %v2634 = vpack.c.b16 %v2250, %v2246
          %v2635 = vpack.c.b16 %v2251, %v2247
          %v2636 = vpack.c.b16 %v2252, %v2248
          %v2637 = vpack.c.b16 %v2253, %v2249
          %v2638 = vpack.c.b16 %v2258, %v2254
          %v2639 = vpack.c.b16 %v2259, %v2255
          %v2640 = vpack.c.b16 %v2260, %v2256
          %v2641 = vpack.c.b16 %v2261, %v2257
          %v2642 = vpack.c.b16 %v2266, %v2262
          %v2643 = vpack.c.b16 %v2267, %v2263
          %v2644 = vpack.c.b16 %v2268, %v2264
          %v2645 = vpack.c.b16 %v2269, %v2265
          %v2646 = vpack.c.b16 %v2274, %v2270
          %v2647 = vpack.c.b16 %v2275, %v2271
          %v2648 = vpack.c.b16 %v2276, %v2272
          %v2649 = vpack.c.b16 %v2277, %v2273
          %v2650 = vpack.c.b16 %v2282, %v2278
          %v2651 = vpack.c.b16 %v2283, %v2279
          %v2652 = vpack.c.b16 %v2284, %v2280
          %v2653 = vpack.c.b16 %v2285, %v2281
          %v2654 = vpack.c.b16 %v2290, %v2286
          %v2655 = vpack.c.b16 %v2291, %v2287
          %v2656 = vpack.c.b16 %v2292, %v2288
          %v2657 = vpack.c.b16 %v2293, %v2289
          %v2658 = vpack.c.b16 %v2298, %v2294
          %v2659 = vpack.c.b16 %v2299, %v2295
          %v2660 = vpack.c.b16 %v2300, %v2296
          %v2661 = vpack.c.b16 %v2301, %v2297
          %v2662 = vpack.c.b16 %v2306, %v2302
          %v2663 = vpack.c.b16 %v2307, %v2303
          %v2664 = vpack.c.b16 %v2308, %v2304
          %v2665 = vpack.c.b16 %v2309, %v2305
          %v2666 = vpack.c.b16 %v2314, %v2310
          %v2667 = vpack.c.b16 %v2315, %v2311
          %v2668 = vpack.c.b16 %v2316, %v2312
          %v2669 = vpack.c.b16 %v2317, %v2313
          %v2670 = vpack.c.b16 %v2322, %v2318
          %v2671 = vpack.c.b16 %v2323, %v2319
          %v2672 = vpack.c.b16 %v2324, %v2320
          %v2673 = vpack.c.b16 %v2325, %v2321
          %v2674 = vpack.c.b16 %v2330, %v2326
          %v2675 = vpack.c.b16 %v2331, %v2327
          %v2676 = vpack.c.b16 %v2332, %v2328
          %v2677 = vpack.c.b16 %v2333, %v2329
          %v2678 = vpack.c.b16 %v2338, %v2334
          %v2679 = vpack.c.b16 %v2339, %v2335
          %v2680 = vpack.c.b16 %v2340, %v2336
          %v2681 = vpack.c.b16 %v2341, %v2337
          %v2682 = vpack.c.b16 %v2346, %v2342
          %v2683 = vpack.c.b16 %v2347, %v2343
          %v2684 = vpack.c.b16 %v2348, %v2344
          %v2685 = vpack.c.b16 %v2349, %v2345
          %v2686 = vpack.c.b16 %v2354, %v2350
          %v2687 = vpack.c.b16 %v2355, %v2351
          %v2688 = vpack.c.b16 %v2356, %v2352
          %v2689 = vpack.c.b16 %v2357, %v2353
          %v2690 = vpack.c.b16 %v2362, %v2358
          %v2691 = vpack.c.b16 %v2363, %v2359
          %v2692 = vpack.c.b16 %v2364, %v2360
          %v2693 = vpack.c.b16 %v2365, %v2361
          %v2694 = vpack.c.b16 %v2370, %v2366
          %v2695 = vpack.c.b16 %v2371, %v2367
          %v2696 = vpack.c.b16 %v2372, %v2368
          %v2697 = vpack.c.b16 %v2373, %v2369
          %v2698 = vpack.c.b16 %v2378, %v2374
          %v2699 = vpack.c.b16 %v2379, %v2375
          %v2700 = vpack.c.b16 %v2380, %v2376
          %v2701 = vpack.c.b16 %v2381, %v2377
          %v2702 = vpack.c.b16 %v2386, %v2382
          %v2703 = vpack.c.b16 %v2387, %v2383
          %v2704 = vpack.c.b16 %v2388, %v2384
          %v2705 = vpack.c.b16 %v2389, %v2385
          %v2706 = vpack.c.b16 %v2394, %v2390
          %v2707 = vpack.c.b16 %v2395, %v2391
          %v2708 = vpack.c.b16 %v2396, %v2392
          %v2709 = vpack.c.b16 %v2397, %v2393
          %v2710 = vpack.c.b16 %v2402, %v2398
          %v2711 = vpack.c.b16 %v2403, %v2399
          %v2712 = vpack.c.b16 %v2404, %v2400
          %v2713 = vpack.c.b16 %v2405, %v2401
          %v2714 = vpack.c.b16 %v2410, %v2406
          %v2715 = vpack.c.b16 %v2411, %v2407
          %v2716 = vpack.c.b16 %v2412, %v2408
          %v2717 = vpack.c.b16 %v2413, %v2409
          %v2718 = vpack.c.b16 %v2418, %v2414
          %v2719 = vpack.c.b16 %v2419, %v2415
          %v2720 = vpack.c.b16 %v2420, %v2416
          %v2721 = vpack.c.b16 %v2421, %v2417
          %v2722 = vpack.c.b16 %v2426, %v2422
          %v2723 = vpack.c.b16 %v2427, %v2423
          %v2724 = vpack.c.b16 %v2428, %v2424
          %v2725 = vpack.c.b16 %v2429, %v2425
          %v2726 = vpack.c.b16 %v2434, %v2430
          %v2727 = vpack.c.b16 %v2435, %v2431
          %v2728 = vpack.c.b16 %v2436, %v2432
          %v2729 = vpack.c.b16 %v2437, %v2433
          %v2730 = vpack.c.b16 %v2442, %v2438
          %v2731 = vpack.c.b16 %v2443, %v2439
          %v2732 = vpack.c.b16 %v2444, %v2440
          %v2733 = vpack.c.b16 %v2445, %v2441
          %v2734 = vpack.c.b16 %v2450, %v2446
          %v2735 = vpack.c.b16 %v2451, %v2447
          %v2736 = vpack.c.b16 %v2452, %v2448
          %v2737 = vpack.c.b16 %v2453, %v2449
          %v2738 = vpack.c.b16 %v2458, %v2454
          %v2739 = vpack.c.b16 %v2459, %v2455
          %v2740 = vpack.c.b16 %v2460, %v2456
          %v2741 = vpack.c.b16 %v2461, %v2457
          %v2742 = vpack.c.b16 %v2466, %v2462
          %v2743 = vpack.c.b16 %v2467, %v2463
          %v2744 = vpack.c.b16 %v2468, %v2464
          %v2745 = vpack.c.b16 %v2469, %v2465
          %v2746 = vpack.c.b16 %v2474, %v2470
          %v2747 = vpack.c.b16 %v2475, %v2471
          %v2748 = vpack.c.b16 %v2476, %v2472
          %v2749 = vpack.c.b16 %v2477, %v2473
          %v2750 = vpack.c.b16 %v2482, %v2478
          %v2751 = vpack.c.b16 %v2483, %v2479
          %v2752 = vpack.c.b16 %v2484, %v2480
          %v2753 = vpack.c.b16 %v2485, %v2481
          %v2754 = vpack.c.b16 %v2490, %v2486
          %v2755 = vpack.c.b16 %v2491, %v2487
          %v2756 = vpack.c.b16 %v2492, %v2488
          %v2757 = vpack.c.b16 %v2493, %v2489
          %v2758 = vpack.c.b16 %v2498, %v2494
          %v2759 = vpack.c.b16 %v2499, %v2495
          %v2760 = vpack.c.b16 %v2500, %v2496
          %v2761 = vpack.c.b16 %v2501, %v2497
          %v2762 = vpack.c.b16 %v2506, %v2502
          %v2763 = vpack.c.b16 %v2507, %v2503
          %v2764 = vpack.c.b16 %v2508, %v2504
          %v2765 = vpack.c.b16 %v2509, %v2505
          %v3023 = vperm.slane %v1741, 0
          %v3024 = vperm.slane %v1741, 1
          %v3025 = vperm.slane %v1741, 2
          %v3026 = vperm.slane %v1741, 3
          %3031 = vmatpush.bf16.msra.mxu0 %v2538
          %3032 = vmatpush.bf16.msra.mxu0 %v2534
          %3033 = vmatpush.bf16.msra.mxu0 %v2530
          %3034 = vmatpush.bf16.msra.mxu0 %v2526
          %3035 = vmatpush.bf16.msra.mxu0 %v2522
          %3036 = vmatpush.bf16.msra.mxu0 %v2518
          %3037 = vmatpush.bf16.msra.mxu0 %v2514
          %3038 = vmatpush.bf16.msra.mxu0 %v2510
          %3039 = vmatmul.bf16.gmra.mxu0 %v1477
          %v3040 = vpop.f32.mrf.mxu0
          %v3041 = vadd.f32 %v3023, %v3040
          %v3042 = vpop.f32.mrf.mxu0
          %3043 = vdwg.mxu0
          %3044 = vmatpush.bf16.msra.mxu0 %v2570
          %3045 = vmatpush.bf16.msra.mxu0 %v2566
          %3046 = vmatpush.bf16.msra.mxu0 %v2562
          %3047 = vmatpush.bf16.msra.mxu0 %v2558
          %3048 = vmatpush.bf16.msra.mxu0 %v2554
          %3049 = vmatpush.bf16.msra.mxu0 %v2550
          %3050 = vmatpush.bf16.msra.mxu0 %v2546
          %3051 = vmatpush.bf16.msra.mxu0 %v2542
          %3052 = vmatmul.bf16.gmra.mxu0 %v1478
          %v3053 = vpop.f32.mrf.mxu0
          %v3054 = vadd.f32 %v3041, %v3053
          %v3055 = vpop.f32.mrf.mxu0
          %3056 = vdwg.mxu0
          %3057 = vmatpush.bf16.msra.mxu0 %v2602
          %3058 = vmatpush.bf16.msra.mxu0 %v2598
          %3059 = vmatpush.bf16.msra.mxu0 %v2594
          %3060 = vmatpush.bf16.msra.mxu0 %v2590
          %3061 = vmatpush.bf16.msra.mxu0 %v2586
          %3062 = vmatpush.bf16.msra.mxu0 %v2582
          %3063 = vmatpush.bf16.msra.mxu0 %v2578
          %3064 = vmatpush.bf16.msra.mxu0 %v2574
          %3065 = vmatmul.bf16.gmra.mxu0 %v1479
          %v3066 = vpop.f32.mrf.mxu0
          %v3067 = vadd.f32 %v3054, %v3066
          %v3068 = vpop.f32.mrf.mxu0
          %3069 = vdwg.mxu0
          %3070 = vmatpush.bf16.msra.mxu0 %v2634
          %3071 = vmatpush.bf16.msra.mxu0 %v2630
          %3072 = vmatpush.bf16.msra.mxu0 %v2626
          %3073 = vmatpush.bf16.msra.mxu0 %v2622
          %3074 = vmatpush.bf16.msra.mxu0 %v2618
          %3075 = vmatpush.bf16.msra.mxu0 %v2614
          %3076 = vmatpush.bf16.msra.mxu0 %v2610
          %3077 = vmatpush.bf16.msra.mxu0 %v2606
          %3078 = vmatmul.bf16.gmra.mxu0 %v1480
          %v3079 = vpop.f32.mrf.mxu0
          %v3080 = vadd.f32 %v3067, %v3079
          %v3081 = vpop.f32.mrf.mxu0
          %3082 = vdwg.mxu0
          %3083 = vmatpush.bf16.msra.mxu0 %v2666
          %3084 = vmatpush.bf16.msra.mxu0 %v2662
          %3085 = vmatpush.bf16.msra.mxu0 %v2658
          %3086 = vmatpush.bf16.msra.mxu0 %v2654
          %3087 = vmatpush.bf16.msra.mxu0 %v2650
          %3088 = vmatpush.bf16.msra.mxu0 %v2646
          %3089 = vmatpush.bf16.msra.mxu0 %v2642
          %3090 = vmatpush.bf16.msra.mxu0 %v2638
          %3091 = vmatmul.bf16.gmra.mxu0 %v1481
          %v3092 = vpop.f32.mrf.mxu0
          %v3093 = vadd.f32 %v3080, %v3092
          %v3094 = vpop.f32.mrf.mxu0
          %3095 = vdwg.mxu0
          %3096 = vmatpush.bf16.msra.mxu0 %v2698
          %3097 = vmatpush.bf16.msra.mxu0 %v2694
          %3098 = vmatpush.bf16.msra.mxu0 %v2690
          %3099 = vmatpush.bf16.msra.mxu0 %v2686
          %3100 = vmatpush.bf16.msra.mxu0 %v2682
          %3101 = vmatpush.bf16.msra.mxu0 %v2678
          %3102 = vmatpush.bf16.msra.mxu0 %v2674
          %3103 = vmatpush.bf16.msra.mxu0 %v2670
          %3104 = vmatmul.bf16.gmra.mxu0 %v1482
          %v3105 = vpop.f32.mrf.mxu0
          %v3106 = vadd.f32 %v3093, %v3105
          %v3107 = vpop.f32.mrf.mxu0
          %3108 = vdwg.mxu0
          %3109 = vmatpush.bf16.msra.mxu0 %v2730
          %3110 = vmatpush.bf16.msra.mxu0 %v2726
          %3111 = vmatpush.bf16.msra.mxu0 %v2722
          %3112 = vmatpush.bf16.msra.mxu0 %v2718
          %3113 = vmatpush.bf16.msra.mxu0 %v2714
          %3114 = vmatpush.bf16.msra.mxu0 %v2710
          %3115 = vmatpush.bf16.msra.mxu0 %v2706
          %3116 = vmatpush.bf16.msra.mxu0 %v2702
          %3117 = vmatmul.bf16.gmra.mxu0 %v1483
          %v3118 = vpop.f32.mrf.mxu0
          %v3119 = vadd.f32 %v3106, %v3118
          %v3120 = vpop.f32.mrf.mxu0
          %3121 = vdwg.mxu0
          %3122 = vmatpush.bf16.msra.mxu0 %v2762
          %3123 = vmatpush.bf16.msra.mxu0 %v2758
          %3124 = vmatpush.bf16.msra.mxu0 %v2754
          %3125 = vmatpush.bf16.msra.mxu0 %v2750
          %3126 = vmatpush.bf16.msra.mxu0 %v2746
          %3127 = vmatpush.bf16.msra.mxu0 %v2742
          %3128 = vmatpush.bf16.msra.mxu0 %v2738
          %3129 = vmatpush.bf16.msra.mxu0 %v2734
          %3130 = vmatmul.bf16.gmra.mxu0 %v1484
          %v3131 = vpop.f32.mrf.mxu0
          %v3132 = vadd.f32 %v3119, %v3131
          %v3133 = vpop.f32.mrf.mxu0
          %3134 = vdwg.mxu0
          %3135 = vmatpush.bf16.msra.mxu0 %v2539
          %3136 = vmatpush.bf16.msra.mxu0 %v2535
          %3137 = vmatpush.bf16.msra.mxu0 %v2531
          %3138 = vmatpush.bf16.msra.mxu0 %v2527
          %3139 = vmatpush.bf16.msra.mxu0 %v2523
          %3140 = vmatpush.bf16.msra.mxu0 %v2519
          %3141 = vmatpush.bf16.msra.mxu0 %v2515
          %3142 = vmatpush.bf16.msra.mxu0 %v2511
          %3143 = vmatmul.bf16.gmra.mxu0 %v1477
          %v3144 = vpop.f32.mrf.mxu0
          %v3145 = vadd.f32 %v3024, %v3144
          %v3146 = vpop.f32.mrf.mxu0
          %3147 = vdwg.mxu0
          %3148 = vmatpush.bf16.msra.mxu0 %v2571
          %3149 = vmatpush.bf16.msra.mxu0 %v2567
          %3150 = vmatpush.bf16.msra.mxu0 %v2563
          %3151 = vmatpush.bf16.msra.mxu0 %v2559
          %3152 = vmatpush.bf16.msra.mxu0 %v2555
          %3153 = vmatpush.bf16.msra.mxu0 %v2551
          %3154 = vmatpush.bf16.msra.mxu0 %v2547
          %3155 = vmatpush.bf16.msra.mxu0 %v2543
          %3156 = vmatmul.bf16.gmra.mxu0 %v1478
          %v3157 = vpop.f32.mrf.mxu0
          %v3158 = vadd.f32 %v3145, %v3157
          %v3159 = vpop.f32.mrf.mxu0
          %3160 = vdwg.mxu0
          %3161 = vmatpush.bf16.msra.mxu0 %v2603
          %3162 = vmatpush.bf16.msra.mxu0 %v2599
          %3163 = vmatpush.bf16.msra.mxu0 %v2595
          %3164 = vmatpush.bf16.msra.mxu0 %v2591
          %3165 = vmatpush.bf16.msra.mxu0 %v2587
          %3166 = vmatpush.bf16.msra.mxu0 %v2583
          %3167 = vmatpush.bf16.msra.mxu0 %v2579
          %3168 = vmatpush.bf16.msra.mxu0 %v2575
          %3169 = vmatmul.bf16.gmra.mxu0 %v1479
          %v3170 = vpop.f32.mrf.mxu0
          %v3171 = vadd.f32 %v3158, %v3170
          %v3172 = vpop.f32.mrf.mxu0
          %3173 = vdwg.mxu0
          %3174 = vmatpush.bf16.msra.mxu0 %v2635
          %3175 = vmatpush.bf16.msra.mxu0 %v2631
          %3176 = vmatpush.bf16.msra.mxu0 %v2627
          %3177 = vmatpush.bf16.msra.mxu0 %v2623
          %3178 = vmatpush.bf16.msra.mxu0 %v2619
          %3179 = vmatpush.bf16.msra.mxu0 %v2615
          %3180 = vmatpush.bf16.msra.mxu0 %v2611
          %3181 = vmatpush.bf16.msra.mxu0 %v2607
          %3182 = vmatmul.bf16.gmra.mxu0 %v1480
          %v3183 = vpop.f32.mrf.mxu0
          %v3184 = vadd.f32 %v3171, %v3183
          %v3185 = vpop.f32.mrf.mxu0
          %3186 = vdwg.mxu0
          %3187 = vmatpush.bf16.msra.mxu0 %v2667
          %3188 = vmatpush.bf16.msra.mxu0 %v2663
          %3189 = vmatpush.bf16.msra.mxu0 %v2659
          %3190 = vmatpush.bf16.msra.mxu0 %v2655
          %3191 = vmatpush.bf16.msra.mxu0 %v2651
          %3192 = vmatpush.bf16.msra.mxu0 %v2647
          %3193 = vmatpush.bf16.msra.mxu0 %v2643
          %3194 = vmatpush.bf16.msra.mxu0 %v2639
          %3195 = vmatmul.bf16.gmra.mxu0 %v1481
          %v3196 = vpop.f32.mrf.mxu0
          %v3197 = vadd.f32 %v3184, %v3196
          %v3198 = vpop.f32.mrf.mxu0
          %3199 = vdwg.mxu0
          %3200 = vmatpush.bf16.msra.mxu0 %v2699
          %3201 = vmatpush.bf16.msra.mxu0 %v2695
          %3202 = vmatpush.bf16.msra.mxu0 %v2691
          %3203 = vmatpush.bf16.msra.mxu0 %v2687
          %3204 = vmatpush.bf16.msra.mxu0 %v2683
          %3205 = vmatpush.bf16.msra.mxu0 %v2679
          %3206 = vmatpush.bf16.msra.mxu0 %v2675
          %3207 = vmatpush.bf16.msra.mxu0 %v2671
          %3208 = vmatmul.bf16.gmra.mxu0 %v1482
          %v3209 = vpop.f32.mrf.mxu0
          %v3210 = vadd.f32 %v3197, %v3209
          %v3211 = vpop.f32.mrf.mxu0
          %3212 = vdwg.mxu0
          %3213 = vmatpush.bf16.msra.mxu0 %v2731
          %3214 = vmatpush.bf16.msra.mxu0 %v2727
          %3215 = vmatpush.bf16.msra.mxu0 %v2723
          %3216 = vmatpush.bf16.msra.mxu0 %v2719
          %3217 = vmatpush.bf16.msra.mxu0 %v2715
          %3218 = vmatpush.bf16.msra.mxu0 %v2711
          %3219 = vmatpush.bf16.msra.mxu0 %v2707
          %3220 = vmatpush.bf16.msra.mxu0 %v2703
          %3221 = vmatmul.bf16.gmra.mxu0 %v1483
          %v3222 = vpop.f32.mrf.mxu0
          %v3223 = vadd.f32 %v3210, %v3222
          %v3224 = vpop.f32.mrf.mxu0
          %3225 = vdwg.mxu0
          %3226 = vmatpush.bf16.msra.mxu0 %v2763
          %3227 = vmatpush.bf16.msra.mxu0 %v2759
          %3228 = vmatpush.bf16.msra.mxu0 %v2755
          %3229 = vmatpush.bf16.msra.mxu0 %v2751
          %3230 = vmatpush.bf16.msra.mxu0 %v2747
          %3231 = vmatpush.bf16.msra.mxu0 %v2743
          %3232 = vmatpush.bf16.msra.mxu0 %v2739
          %3233 = vmatpush.bf16.msra.mxu0 %v2735
          %3234 = vmatmul.bf16.gmra.mxu0 %v1484
          %v3235 = vpop.f32.mrf.mxu0
          %v3236 = vadd.f32 %v3223, %v3235
          %v3237 = vpop.f32.mrf.mxu0
          %3238 = vdwg.mxu0
          %3239 = vmatpush.bf16.msra.mxu0 %v2540
          %3240 = vmatpush.bf16.msra.mxu0 %v2536
          %3241 = vmatpush.bf16.msra.mxu0 %v2532
          %3242 = vmatpush.bf16.msra.mxu0 %v2528
          %3243 = vmatpush.bf16.msra.mxu0 %v2524
          %3244 = vmatpush.bf16.msra.mxu0 %v2520
          %3245 = vmatpush.bf16.msra.mxu0 %v2516
          %3246 = vmatpush.bf16.msra.mxu0 %v2512
          %3247 = vmatmul.bf16.gmra.mxu0 %v1477
          %v3248 = vpop.f32.mrf.mxu0
          %v3249 = vadd.f32 %v3025, %v3248
          %v3250 = vpop.f32.mrf.mxu0
          %3251 = vdwg.mxu0
          %3252 = vmatpush.bf16.msra.mxu0 %v2572
          %3253 = vmatpush.bf16.msra.mxu0 %v2568
          %3254 = vmatpush.bf16.msra.mxu0 %v2564
          %3255 = vmatpush.bf16.msra.mxu0 %v2560
          %3256 = vmatpush.bf16.msra.mxu0 %v2556
          %3257 = vmatpush.bf16.msra.mxu0 %v2552
          %3258 = vmatpush.bf16.msra.mxu0 %v2548
          %3259 = vmatpush.bf16.msra.mxu0 %v2544
          %3260 = vmatmul.bf16.gmra.mxu0 %v1478
          %v3261 = vpop.f32.mrf.mxu0
          %v3262 = vadd.f32 %v3249, %v3261
          %v3263 = vpop.f32.mrf.mxu0
          %3264 = vdwg.mxu0
          %3265 = vmatpush.bf16.msra.mxu0 %v2604
          %3266 = vmatpush.bf16.msra.mxu0 %v2600
          %3267 = vmatpush.bf16.msra.mxu0 %v2596
          %3268 = vmatpush.bf16.msra.mxu0 %v2592
          %3269 = vmatpush.bf16.msra.mxu0 %v2588
          %3270 = vmatpush.bf16.msra.mxu0 %v2584
          %3271 = vmatpush.bf16.msra.mxu0 %v2580
          %3272 = vmatpush.bf16.msra.mxu0 %v2576
          %3273 = vmatmul.bf16.gmra.mxu0 %v1479
          %v3274 = vpop.f32.mrf.mxu0
          %v3275 = vadd.f32 %v3262, %v3274
          %v3276 = vpop.f32.mrf.mxu0
          %3277 = vdwg.mxu0
          %3278 = vmatpush.bf16.msra.mxu0 %v2636
          %3279 = vmatpush.bf16.msra.mxu0 %v2632
          %3280 = vmatpush.bf16.msra.mxu0 %v2628
          %3281 = vmatpush.bf16.msra.mxu0 %v2624
          %3282 = vmatpush.bf16.msra.mxu0 %v2620
          %3283 = vmatpush.bf16.msra.mxu0 %v2616
          %3284 = vmatpush.bf16.msra.mxu0 %v2612
          %3285 = vmatpush.bf16.msra.mxu0 %v2608
          %3286 = vmatmul.bf16.gmra.mxu0 %v1480
          %v3287 = vpop.f32.mrf.mxu0
          %v3288 = vadd.f32 %v3275, %v3287
          %v3289 = vpop.f32.mrf.mxu0
          %3290 = vdwg.mxu0
          %3291 = vmatpush.bf16.msra.mxu0 %v2668
          %3292 = vmatpush.bf16.msra.mxu0 %v2664
          %3293 = vmatpush.bf16.msra.mxu0 %v2660
          %3294 = vmatpush.bf16.msra.mxu0 %v2656
          %3295 = vmatpush.bf16.msra.mxu0 %v2652
          %3296 = vmatpush.bf16.msra.mxu0 %v2648
          %3297 = vmatpush.bf16.msra.mxu0 %v2644
          %3298 = vmatpush.bf16.msra.mxu0 %v2640
          %3299 = vmatmul.bf16.gmra.mxu0 %v1481
          %v3300 = vpop.f32.mrf.mxu0
          %v3301 = vadd.f32 %v3288, %v3300
          %v3302 = vpop.f32.mrf.mxu0
          %3303 = vdwg.mxu0
          %3304 = vmatpush.bf16.msra.mxu0 %v2700
          %3305 = vmatpush.bf16.msra.mxu0 %v2696
          %3306 = vmatpush.bf16.msra.mxu0 %v2692
          %3307 = vmatpush.bf16.msra.mxu0 %v2688
          %3308 = vmatpush.bf16.msra.mxu0 %v2684
          %3309 = vmatpush.bf16.msra.mxu0 %v2680
          %3310 = vmatpush.bf16.msra.mxu0 %v2676
          %3311 = vmatpush.bf16.msra.mxu0 %v2672
          %3312 = vmatmul.bf16.gmra.mxu0 %v1482
          %v3313 = vpop.f32.mrf.mxu0
          %v3314 = vadd.f32 %v3301, %v3313
          %v3315 = vpop.f32.mrf.mxu0
          %3316 = vdwg.mxu0
          %3317 = vmatpush.bf16.msra.mxu0 %v2732
          %3318 = vmatpush.bf16.msra.mxu0 %v2728
          %3319 = vmatpush.bf16.msra.mxu0 %v2724
          %3320 = vmatpush.bf16.msra.mxu0 %v2720
          %3321 = vmatpush.bf16.msra.mxu0 %v2716
          %3322 = vmatpush.bf16.msra.mxu0 %v2712
          %3323 = vmatpush.bf16.msra.mxu0 %v2708
          %3324 = vmatpush.bf16.msra.mxu0 %v2704
          %3325 = vmatmul.bf16.gmra.mxu0 %v1483
          %v3326 = vpop.f32.mrf.mxu0
          %v3327 = vadd.f32 %v3314, %v3326
          %v3328 = vpop.f32.mrf.mxu0
          %3329 = vdwg.mxu0
          %3330 = vmatpush.bf16.msra.mxu0 %v2764
          %3331 = vmatpush.bf16.msra.mxu0 %v2760
          %3332 = vmatpush.bf16.msra.mxu0 %v2756
          %3333 = vmatpush.bf16.msra.mxu0 %v2752
          %3334 = vmatpush.bf16.msra.mxu0 %v2748
          %3335 = vmatpush.bf16.msra.mxu0 %v2744
          %3336 = vmatpush.bf16.msra.mxu0 %v2740
          %3337 = vmatpush.bf16.msra.mxu0 %v2736
          %3338 = vmatmul.bf16.gmra.mxu0 %v1484
          %v3339 = vpop.f32.mrf.mxu0
          %v3340 = vadd.f32 %v3327, %v3339
          %v3341 = vpop.f32.mrf.mxu0
          %3342 = vdwg.mxu0
          %3343 = vmatpush.bf16.msra.mxu0 %v2541
          %3344 = vmatpush.bf16.msra.mxu0 %v2537
          %3345 = vmatpush.bf16.msra.mxu0 %v2533
          %3346 = vmatpush.bf16.msra.mxu0 %v2529
          %3347 = vmatpush.bf16.msra.mxu0 %v2525
          %3348 = vmatpush.bf16.msra.mxu0 %v2521
          %3349 = vmatpush.bf16.msra.mxu0 %v2517
          %3350 = vmatpush.bf16.msra.mxu0 %v2513
          %3351 = vmatmul.bf16.gmra.mxu0 %v1477
          %v3352 = vpop.f32.mrf.mxu0
          %v3353 = vadd.f32 %v3026, %v3352
          %v3354 = vpop.f32.mrf.mxu0
          %3355 = vdwg.mxu0
          %3356 = vmatpush.bf16.msra.mxu0 %v2573
          %3357 = vmatpush.bf16.msra.mxu0 %v2569
          %3358 = vmatpush.bf16.msra.mxu0 %v2565
          %3359 = vmatpush.bf16.msra.mxu0 %v2561
          %3360 = vmatpush.bf16.msra.mxu0 %v2557
          %3361 = vmatpush.bf16.msra.mxu0 %v2553
          %3362 = vmatpush.bf16.msra.mxu0 %v2549
          %3363 = vmatpush.bf16.msra.mxu0 %v2545
          %3364 = vmatmul.bf16.gmra.mxu0 %v1478
          %v3365 = vpop.f32.mrf.mxu0
          %v3366 = vadd.f32 %v3353, %v3365
          %v3367 = vpop.f32.mrf.mxu0
          %3368 = vdwg.mxu0
          %3369 = vmatpush.bf16.msra.mxu0 %v2605
          %3370 = vmatpush.bf16.msra.mxu0 %v2601
          %3371 = vmatpush.bf16.msra.mxu0 %v2597
          %3372 = vmatpush.bf16.msra.mxu0 %v2593
          %3373 = vmatpush.bf16.msra.mxu0 %v2589
          %3374 = vmatpush.bf16.msra.mxu0 %v2585
          %3375 = vmatpush.bf16.msra.mxu0 %v2581
          %3376 = vmatpush.bf16.msra.mxu0 %v2577
          %3377 = vmatmul.bf16.gmra.mxu0 %v1479
          %v3378 = vpop.f32.mrf.mxu0
          %v3379 = vadd.f32 %v3366, %v3378
          %v3380 = vpop.f32.mrf.mxu0
          %3381 = vdwg.mxu0
          %3382 = vmatpush.bf16.msra.mxu0 %v2637
          %3383 = vmatpush.bf16.msra.mxu0 %v2633
          %3384 = vmatpush.bf16.msra.mxu0 %v2629
          %3385 = vmatpush.bf16.msra.mxu0 %v2625
          %3386 = vmatpush.bf16.msra.mxu0 %v2621
          %3387 = vmatpush.bf16.msra.mxu0 %v2617
          %3388 = vmatpush.bf16.msra.mxu0 %v2613
          %3389 = vmatpush.bf16.msra.mxu0 %v2609
          %3390 = vmatmul.bf16.gmra.mxu0 %v1480
          %v3391 = vpop.f32.mrf.mxu0
          %v3392 = vadd.f32 %v3379, %v3391
          %v3393 = vpop.f32.mrf.mxu0
          %3394 = vdwg.mxu0
          %3395 = vmatpush.bf16.msra.mxu0 %v2669
          %3396 = vmatpush.bf16.msra.mxu0 %v2665
          %3397 = vmatpush.bf16.msra.mxu0 %v2661
          %3398 = vmatpush.bf16.msra.mxu0 %v2657
          %3399 = vmatpush.bf16.msra.mxu0 %v2653
          %3400 = vmatpush.bf16.msra.mxu0 %v2649
          %3401 = vmatpush.bf16.msra.mxu0 %v2645
          %3402 = vmatpush.bf16.msra.mxu0 %v2641
          %3403 = vmatmul.bf16.gmra.mxu0 %v1481
          %v3404 = vpop.f32.mrf.mxu0
          %v3405 = vadd.f32 %v3392, %v3404
          %v3406 = vpop.f32.mrf.mxu0
          %3407 = vdwg.mxu0
          %3408 = vmatpush.bf16.msra.mxu0 %v2701
          %3409 = vmatpush.bf16.msra.mxu0 %v2697
          %3410 = vmatpush.bf16.msra.mxu0 %v2693
          %3411 = vmatpush.bf16.msra.mxu0 %v2689
          %3412 = vmatpush.bf16.msra.mxu0 %v2685
          %3413 = vmatpush.bf16.msra.mxu0 %v2681
          %3414 = vmatpush.bf16.msra.mxu0 %v2677
          %3415 = vmatpush.bf16.msra.mxu0 %v2673
          %3416 = vmatmul.bf16.gmra.mxu0 %v1482
          %v3417 = vpop.f32.mrf.mxu0
          %v3418 = vadd.f32 %v3405, %v3417
          %v3419 = vpop.f32.mrf.mxu0
          %3420 = vdwg.mxu0
          %3421 = vmatpush.bf16.msra.mxu0 %v2733
          %3422 = vmatpush.bf16.msra.mxu0 %v2729
          %3423 = vmatpush.bf16.msra.mxu0 %v2725
          %3424 = vmatpush.bf16.msra.mxu0 %v2721
          %3425 = vmatpush.bf16.msra.mxu0 %v2717
          %3426 = vmatpush.bf16.msra.mxu0 %v2713
          %3427 = vmatpush.bf16.msra.mxu0 %v2709
          %3428 = vmatpush.bf16.msra.mxu0 %v2705
          %3429 = vmatmul.bf16.gmra.mxu0 %v1483
          %v3430 = vpop.f32.mrf.mxu0
          %v3431 = vadd.f32 %v3418, %v3430
          %v3432 = vpop.f32.mrf.mxu0
          %3433 = vdwg.mxu0
          %3434 = vmatpush.bf16.msra.mxu0 %v2765
          %3435 = vmatpush.bf16.msra.mxu0 %v2761
          %3436 = vmatpush.bf16.msra.mxu0 %v2757
          %3437 = vmatpush.bf16.msra.mxu0 %v2753
          %3438 = vmatpush.bf16.msra.mxu0 %v2749
          %3439 = vmatpush.bf16.msra.mxu0 %v2745
          %3440 = vmatpush.bf16.msra.mxu0 %v2741
          %3441 = vmatpush.bf16.msra.mxu0 %v2737
          %3442 = vmatmul.bf16.gmra.mxu0 %v1484
          %v3443 = vpop.f32.mrf.mxu0
          %v3444 = vadd.f32 %v3431, %v3443
          %v3445 = vpop.f32.mrf.mxu0
          %3446 = vdwg.mxu0
          %v3447 = vmax.f32 %v3132, 0.0
          %v3448 = vmax.f32 %v3236, 0.0
          %v3449 = vmax.f32 %v3340, 0.0
          %v3450 = vmax.f32 %v3444, 0.0
          %v3451 = vpack.c.bf16 %v3447, %v3447
          %v3452 = vpack.c.bf16 %v3448, %v3448
          %v3453 = vpack.c.bf16 %v3449, %v3449
          %v3454 = vpack.c.bf16 %v3450, %v3450
          %v3455 = vld [vmem:[#allocation8] sm:$0xff]
          %v3456 = vld [vmem:[#allocation8 + $0x8] sm:$0xff]
          %v3457 = vld [vmem:[#allocation8 + $0x10] sm:$0xff]
          %v3458 = vld [vmem:[#allocation8 + $0x18] sm:$0xff]
          %v3459 = vld [vmem:[#allocation8 + $0x20] sm:$0xff]
          %v3460 = vld [vmem:[#allocation8 + $0x28] sm:$0xff]
          %v3461 = vld [vmem:[#allocation8 + $0x30] sm:$0xff]
          %v3462 = vld [vmem:[#allocation8 + $0x38] sm:$0xff]
          %v3463 = vld [vmem:[#allocation8 + $0x40] sm:$0xff]
          %v3464 = vld [vmem:[#allocation8 + $0x48] sm:$0xff]
          %v3465 = vld [vmem:[#allocation8 + $0x50] sm:$0xff]
          %v3466 = vld [vmem:[#allocation8 + $0x58] sm:$0xff]
          %v3467 = vld [vmem:[#allocation8 + $0x60] sm:$0xff]
          %v3468 = vld [vmem:[#allocation8 + $0x68] sm:$0xff]
          %v3469 = vld [vmem:[#allocation8 + $0x70] sm:$0xff]
          %v3470 = vld [vmem:[#allocation8 + $0x78] sm:$0xff]
          %v3471 = vld [vmem:[#allocation8 + $0x80] sm:$0xff]
          %v3472 = vld [vmem:[#allocation8 + $0x88] sm:$0xff]
          %v3473 = vld [vmem:[#allocation8 + $0x90] sm:$0xff]
          %v3474 = vld [vmem:[#allocation8 + $0x98] sm:$0xff]
          %v3475 = vld [vmem:[#allocation8 + $0xa0] sm:$0xff]
          %v3476 = vld [vmem:[#allocation8 + $0xa8] sm:$0xff]
          %v3477 = vld [vmem:[#allocation8 + $0xb0] sm:$0xff]
          %v3478 = vld [vmem:[#allocation8 + $0xb8] sm:$0xff]
          %v3479 = vld [vmem:[#allocation8 + $0xc0] sm:$0xff]
          %v3480 = vld [vmem:[#allocation8 + $0xc8] sm:$0xff]
          %v3481 = vld [vmem:[#allocation8 + $0xd0] sm:$0xff]
          %v3482 = vld [vmem:[#allocation8 + $0xd8] sm:$0xff]
          %v3483 = vld [vmem:[#allocation8 + $0xe0] sm:$0xff]
          %v3484 = vld [vmem:[#allocation8 + $0xe8] sm:$0xff]
          %v3485 = vld [vmem:[#allocation8 + $0xf0] sm:$0xff]
          %v3486 = vld [vmem:[#allocation8 + $0xf8] sm:$0xff]
          %v3487 = vld [vmem:[#allocation8 + $0x100] sm:$0xff]
          %v3488 = vld [vmem:[#allocation8 + $0x108] sm:$0xff]
          %v3489 = vld [vmem:[#allocation8 + $0x110] sm:$0xff]
          %v3490 = vld [vmem:[#allocation8 + $0x118] sm:$0xff]
          %v3491 = vld [vmem:[#allocation8 + $0x120] sm:$0xff]
          %v3492 = vld [vmem:[#allocation8 + $0x128] sm:$0xff]
          %v3493 = vld [vmem:[#allocation8 + $0x130] sm:$0xff]
          %v3494 = vld [vmem:[#allocation8 + $0x138] sm:$0xff]
          %v3495 = vld [vmem:[#allocation8 + $0x140] sm:$0xff]
          %v3496 = vld [vmem:[#allocation8 + $0x148] sm:$0xff]
          %v3497 = vld [vmem:[#allocation8 + $0x150] sm:$0xff]
          %v3498 = vld [vmem:[#allocation8 + $0x158] sm:$0xff]
          %v3499 = vld [vmem:[#allocation8 + $0x160] sm:$0xff]
          %v3500 = vld [vmem:[#allocation8 + $0x168] sm:$0xff]
          %v3501 = vld [vmem:[#allocation8 + $0x170] sm:$0xff]
          %v3502 = vld [vmem:[#allocation8 + $0x178] sm:$0xff]
          %v3503 = vld [vmem:[#allocation8 + $0x180] sm:$0xff]
          %v3504 = vld [vmem:[#allocation8 + $0x188] sm:$0xff]
          %v3505 = vld [vmem:[#allocation8 + $0x190] sm:$0xff]
          %v3506 = vld [vmem:[#allocation8 + $0x198] sm:$0xff]
          %v3507 = vld [vmem:[#allocation8 + $0x1a0] sm:$0xff]
          %v3508 = vld [vmem:[#allocation8 + $0x1a8] sm:$0xff]
          %v3509 = vld [vmem:[#allocation8 + $0x1b0] sm:$0xff]
          %v3510 = vld [vmem:[#allocation8 + $0x1b8] sm:$0xff]
          %v3511 = vld [vmem:[#allocation8 + $0x1c0] sm:$0xff]
          %v3512 = vld [vmem:[#allocation8 + $0x1c8] sm:$0xff]
          %v3513 = vld [vmem:[#allocation8 + $0x1d0] sm:$0xff]
          %v3514 = vld [vmem:[#allocation8 + $0x1d8] sm:$0xff]
          %v3515 = vld [vmem:[#allocation8 + $0x1e0] sm:$0xff]
          %v3516 = vld [vmem:[#allocation8 + $0x1e8] sm:$0xff]
          %v3517 = vld [vmem:[#allocation8 + $0x1f0] sm:$0xff]
          %v3518 = vld [vmem:[#allocation8 + $0x1f8] sm:$0xff]
          %v3519 = vld [vmem:[%s10] sm:$0x3]
          %v3584 = vunpack.c.l.b16 %v3455
          %v3585 = vunpack.c.h.b16 %v3455
          %v3586 = vunpack.c.l.b16 %v3456
          %v3587 = vunpack.c.h.b16 %v3456
          %v3588 = vunpack.c.l.b16 %v3457
          %v3589 = vunpack.c.h.b16 %v3457
          %v3590 = vunpack.c.l.b16 %v3458
          %v3591 = vunpack.c.h.b16 %v3458
          %v3592 = vunpack.c.l.b16 %v3459
          %v3593 = vunpack.c.h.b16 %v3459
          %v3594 = vunpack.c.l.b16 %v3460
          %v3595 = vunpack.c.h.b16 %v3460
          %v3596 = vunpack.c.l.b16 %v3461
          %v3597 = vunpack.c.h.b16 %v3461
          %v3598 = vunpack.c.l.b16 %v3462
          %v3599 = vunpack.c.h.b16 %v3462
          %v3600 = vunpack.c.l.b16 %v3463
          %v3601 = vunpack.c.h.b16 %v3463
          %v3602 = vunpack.c.l.b16 %v3464
          %v3603 = vunpack.c.h.b16 %v3464
          %v3604 = vunpack.c.l.b16 %v3465
          %v3605 = vunpack.c.h.b16 %v3465
          %v3606 = vunpack.c.l.b16 %v3466
          %v3607 = vunpack.c.h.b16 %v3466
          %v3608 = vunpack.c.l.b16 %v3467
          %v3609 = vunpack.c.h.b16 %v3467
          %v3610 = vunpack.c.l.b16 %v3468
          %v3611 = vunpack.c.h.b16 %v3468
          %v3612 = vunpack.c.l.b16 %v3469
          %v3613 = vunpack.c.h.b16 %v3469
          %v3614 = vunpack.c.l.b16 %v3470
          %v3615 = vunpack.c.h.b16 %v3470
          %v3616 = vunpack.c.l.b16 %v3471
          %v3617 = vunpack.c.h.b16 %v3471
          %v3618 = vunpack.c.l.b16 %v3472
          %v3619 = vunpack.c.h.b16 %v3472
          %v3620 = vunpack.c.l.b16 %v3473
          %v3621 = vunpack.c.h.b16 %v3473
          %v3622 = vunpack.c.l.b16 %v3474
          %v3623 = vunpack.c.h.b16 %v3474
          %v3624 = vunpack.c.l.b16 %v3475
          %v3625 = vunpack.c.h.b16 %v3475
          %v3626 = vunpack.c.l.b16 %v3476
          %v3627 = vunpack.c.h.b16 %v3476
          %v3628 = vunpack.c.l.b16 %v3477
          %v3629 = vunpack.c.h.b16 %v3477
          %v3630 = vunpack.c.l.b16 %v3478
          %v3631 = vunpack.c.h.b16 %v3478
          %v3632 = vunpack.c.l.b16 %v3479
          %v3633 = vunpack.c.h.b16 %v3479
          %v3634 = vunpack.c.l.b16 %v3480
          %v3635 = vunpack.c.h.b16 %v3480
          %v3636 = vunpack.c.l.b16 %v3481
          %v3637 = vunpack.c.h.b16 %v3481
          %v3638 = vunpack.c.l.b16 %v3482
          %v3639 = vunpack.c.h.b16 %v3482
          %v3640 = vunpack.c.l.b16 %v3483
          %v3641 = vunpack.c.h.b16 %v3483
          %v3642 = vunpack.c.l.b16 %v3484
          %v3643 = vunpack.c.h.b16 %v3484
          %v3644 = vunpack.c.l.b16 %v3485
          %v3645 = vunpack.c.h.b16 %v3485
          %v3646 = vunpack.c.l.b16 %v3486
          %v3647 = vunpack.c.h.b16 %v3486
          %v3648 = vunpack.c.l.b16 %v3487
          %v3649 = vunpack.c.h.b16 %v3487
          %v3650 = vunpack.c.l.b16 %v3488
          %v3651 = vunpack.c.h.b16 %v3488
          %v3652 = vunpack.c.l.b16 %v3489
          %v3653 = vunpack.c.h.b16 %v3489
          %v3654 = vunpack.c.l.b16 %v3490
          %v3655 = vunpack.c.h.b16 %v3490
          %v3656 = vunpack.c.l.b16 %v3491
          %v3657 = vunpack.c.h.b16 %v3491
          %v3658 = vunpack.c.l.b16 %v3492
          %v3659 = vunpack.c.h.b16 %v3492
          %v3660 = vunpack.c.l.b16 %v3493
          %v3661 = vunpack.c.h.b16 %v3493
          %v3662 = vunpack.c.l.b16 %v3494
          %v3663 = vunpack.c.h.b16 %v3494
          %v3664 = vunpack.c.l.b16 %v3495
          %v3665 = vunpack.c.h.b16 %v3495
          %v3666 = vunpack.c.l.b16 %v3496
          %v3667 = vunpack.c.h.b16 %v3496
          %v3668 = vunpack.c.l.b16 %v3497
          %v3669 = vunpack.c.h.b16 %v3497
          %v3670 = vunpack.c.l.b16 %v3498
          %v3671 = vunpack.c.h.b16 %v3498
          %v3672 = vunpack.c.l.b16 %v3499
          %v3673 = vunpack.c.h.b16 %v3499
          %v3674 = vunpack.c.l.b16 %v3500
          %v3675 = vunpack.c.h.b16 %v3500
          %v3676 = vunpack.c.l.b16 %v3501
          %v3677 = vunpack.c.h.b16 %v3501
          %v3678 = vunpack.c.l.b16 %v3502
          %v3679 = vunpack.c.h.b16 %v3502
          %v3680 = vunpack.c.l.b16 %v3503
          %v3681 = vunpack.c.h.b16 %v3503
          %v3682 = vunpack.c.l.b16 %v3504
          %v3683 = vunpack.c.h.b16 %v3504
          %v3684 = vunpack.c.l.b16 %v3505
          %v3685 = vunpack.c.h.b16 %v3505
          %v3686 = vunpack.c.l.b16 %v3506
          %v3687 = vunpack.c.h.b16 %v3506
          %v3688 = vunpack.c.l.b16 %v3507
          %v3689 = vunpack.c.h.b16 %v3507
          %v3690 = vunpack.c.l.b16 %v3508
          %v3691 = vunpack.c.h.b16 %v3508
          %v3692 = vunpack.c.l.b16 %v3509
          %v3693 = vunpack.c.h.b16 %v3509
          %v3694 = vunpack.c.l.b16 %v3510
          %v3695 = vunpack.c.h.b16 %v3510
          %v3696 = vunpack.c.l.b16 %v3511
          %v3697 = vunpack.c.h.b16 %v3511
          %v3698 = vunpack.c.l.b16 %v3512
          %v3699 = vunpack.c.h.b16 %v3512
          %v3700 = vunpack.c.l.b16 %v3513
          %v3701 = vunpack.c.h.b16 %v3513
          %v3702 = vunpack.c.l.b16 %v3514
          %v3703 = vunpack.c.h.b16 %v3514
          %v3704 = vunpack.c.l.b16 %v3515
          %v3705 = vunpack.c.h.b16 %v3515
          %v3706 = vunpack.c.l.b16 %v3516
          %v3707 = vunpack.c.h.b16 %v3516
          %v3708 = vunpack.c.l.b16 %v3517
          %v3709 = vunpack.c.h.b16 %v3517
          %v3710 = vunpack.c.l.b16 %v3518
          %v3711 = vunpack.c.h.b16 %v3518
          %v3712 = vpack.c.b16 %v3586, %v3584
          %v3713 = vpack.c.b16 %v3587, %v3585
          %v3714 = vpack.c.b16 %v3590, %v3588
          %v3715 = vpack.c.b16 %v3591, %v3589
          %v3716 = vpack.c.b16 %v3594, %v3592
          %v3717 = vpack.c.b16 %v3595, %v3593
          %v3718 = vpack.c.b16 %v3598, %v3596
          %v3719 = vpack.c.b16 %v3599, %v3597
          %v3720 = vpack.c.b16 %v3602, %v3600
          %v3721 = vpack.c.b16 %v3603, %v3601
          %v3722 = vpack.c.b16 %v3606, %v3604
          %v3723 = vpack.c.b16 %v3607, %v3605
          %v3724 = vpack.c.b16 %v3610, %v3608
          %v3725 = vpack.c.b16 %v3611, %v3609
          %v3726 = vpack.c.b16 %v3614, %v3612
          %v3727 = vpack.c.b16 %v3615, %v3613
          %v3728 = vpack.c.b16 %v3618, %v3616
          %v3729 = vpack.c.b16 %v3619, %v3617
          %v3730 = vpack.c.b16 %v3622, %v3620
          %v3731 = vpack.c.b16 %v3623, %v3621
          %v3732 = vpack.c.b16 %v3626, %v3624
          %v3733 = vpack.c.b16 %v3627, %v3625
          %v3734 = vpack.c.b16 %v3630, %v3628
          %v3735 = vpack.c.b16 %v3631, %v3629
          %v3736 = vpack.c.b16 %v3634, %v3632
          %v3737 = vpack.c.b16 %v3635, %v3633
          %v3738 = vpack.c.b16 %v3638, %v3636
          %v3739 = vpack.c.b16 %v3639, %v3637
          %v3740 = vpack.c.b16 %v3642, %v3640
          %v3741 = vpack.c.b16 %v3643, %v3641
          %v3742 = vpack.c.b16 %v3646, %v3644
          %v3743 = vpack.c.b16 %v3647, %v3645
          %v3744 = vpack.c.b16 %v3650, %v3648
          %v3745 = vpack.c.b16 %v3651, %v3649
          %v3746 = vpack.c.b16 %v3654, %v3652
          %v3747 = vpack.c.b16 %v3655, %v3653
          %v3748 = vpack.c.b16 %v3658, %v3656
          %v3749 = vpack.c.b16 %v3659, %v3657
          %v3750 = vpack.c.b16 %v3662, %v3660
          %v3751 = vpack.c.b16 %v3663, %v3661
          %v3752 = vpack.c.b16 %v3666, %v3664
          %v3753 = vpack.c.b16 %v3667, %v3665
          %v3754 = vpack.c.b16 %v3670, %v3668
          %v3755 = vpack.c.b16 %v3671, %v3669
          %v3756 = vpack.c.b16 %v3674, %v3672
          %v3757 = vpack.c.b16 %v3675, %v3673
          %v3758 = vpack.c.b16 %v3678, %v3676
          %v3759 = vpack.c.b16 %v3679, %v3677
          %v3760 = vpack.c.b16 %v3682, %v3680
          %v3761 = vpack.c.b16 %v3683, %v3681
          %v3762 = vpack.c.b16 %v3686, %v3684
          %v3763 = vpack.c.b16 %v3687, %v3685
          %v3764 = vpack.c.b16 %v3690, %v3688
          %v3765 = vpack.c.b16 %v3691, %v3689
          %v3766 = vpack.c.b16 %v3694, %v3692
          %v3767 = vpack.c.b16 %v3695, %v3693
          %v3768 = vpack.c.b16 %v3698, %v3696
          %v3769 = vpack.c.b16 %v3699, %v3697
          %v3770 = vpack.c.b16 %v3702, %v3700
          %v3771 = vpack.c.b16 %v3703, %v3701
          %v3772 = vpack.c.b16 %v3706, %v3704
          %v3773 = vpack.c.b16 %v3707, %v3705
          %v3774 = vpack.c.b16 %v3710, %v3708
          %v3775 = vpack.c.b16 %v3711, %v3709
          %v3841 = vperm.slane %v3519, 0
          %v3842 = vperm.slane %v3519, 1
          %3845 = vmatpush.bf16.msra.mxu0 %v3726
          %3846 = vmatpush.bf16.msra.mxu0 %v3724
          %3847 = vmatpush.bf16.msra.mxu0 %v3722
          %3848 = vmatpush.bf16.msra.mxu0 %v3720
          %3849 = vmatpush.bf16.msra.mxu0 %v3718
          %3850 = vmatpush.bf16.msra.mxu0 %v3716
          %3851 = vmatpush.bf16.msra.mxu0 %v3714
          %3852 = vmatpush.bf16.msra.mxu0 %v3712
          %3853 = vmatmul.bf16.gmra.mxu0 %v3451
          %v3854 = vpop.f32.mrf.mxu0
          %v3855 = vadd.f32 %v3841, %v3854
          %v3856 = vpop.f32.mrf.mxu0
          %3857 = vdwg.mxu0
          %3858 = vmatpush.bf16.msra.mxu0 %v3742
          %3859 = vmatpush.bf16.msra.mxu0 %v3740
          %3860 = vmatpush.bf16.msra.mxu0 %v3738
          %3861 = vmatpush.bf16.msra.mxu0 %v3736
          %3862 = vmatpush.bf16.msra.mxu0 %v3734
          %3863 = vmatpush.bf16.msra.mxu0 %v3732
          %3864 = vmatpush.bf16.msra.mxu0 %v3730
          %3865 = vmatpush.bf16.msra.mxu0 %v3728
          %3866 = vmatmul.bf16.gmra.mxu0 %v3452
          %v3867 = vpop.f32.mrf.mxu0
          %v3868 = vadd.f32 %v3855, %v3867
          %v3869 = vpop.f32.mrf.mxu0
          %3870 = vdwg.mxu0
          %3871 = vmatpush.bf16.msra.mxu0 %v3758
          %3872 = vmatpush.bf16.msra.mxu0 %v3756
          %3873 = vmatpush.bf16.msra.mxu0 %v3754
          %3874 = vmatpush.bf16.msra.mxu0 %v3752
          %3875 = vmatpush.bf16.msra.mxu0 %v3750
          %3876 = vmatpush.bf16.msra.mxu0 %v3748
          %3877 = vmatpush.bf16.msra.mxu0 %v3746
          %3878 = vmatpush.bf16.msra.mxu0 %v3744
          %3879 = vmatmul.bf16.gmra.mxu0 %v3453
          %v3880 = vpop.f32.mrf.mxu0
          %v3881 = vadd.f32 %v3868, %v3880
          %v3882 = vpop.f32.mrf.mxu0
          %3883 = vdwg.mxu0
          %3884 = vmatpush.bf16.msra.mxu0 %v3774
          %3885 = vmatpush.bf16.msra.mxu0 %v3772
          %3886 = vmatpush.bf16.msra.mxu0 %v3770
          %3887 = vmatpush.bf16.msra.mxu0 %v3768
          %3888 = vmatpush.bf16.msra.mxu0 %v3766
          %3889 = vmatpush.bf16.msra.mxu0 %v3764
          %3890 = vmatpush.bf16.msra.mxu0 %v3762
          %3891 = vmatpush.bf16.msra.mxu0 %v3760
          %3892 = vmatmul.bf16.gmra.mxu0 %v3454
          %v3893 = vpop.f32.mrf.mxu0
          %v3894 = vadd.f32 %v3881, %v3893
          %v3895 = vpop.f32.mrf.mxu0
          %3896 = vdwg.mxu0
          %3897 = vmatpush.bf16.msra.mxu0 %v3727
          %3898 = vmatpush.bf16.msra.mxu0 %v3725
          %3899 = vmatpush.bf16.msra.mxu0 %v3723
          %3900 = vmatpush.bf16.msra.mxu0 %v3721
          %3901 = vmatpush.bf16.msra.mxu0 %v3719
          %3902 = vmatpush.bf16.msra.mxu0 %v3717
          %3903 = vmatpush.bf16.msra.mxu0 %v3715
          %3904 = vmatpush.bf16.msra.mxu0 %v3713
          %3905 = vmatmul.bf16.gmra.mxu0 %v3451
          %v3906 = vpop.f32.mrf.mxu0
          %v3907 = vadd.f32 %v3842, %v3906
          %v3908 = vpop.f32.mrf.mxu0
          %3909 = vdwg.mxu0
          %3910 = vmatpush.bf16.msra.mxu0 %v3743
          %3911 = vmatpush.bf16.msra.mxu0 %v3741
          %3912 = vmatpush.bf16.msra.mxu0 %v3739
          %3913 = vmatpush.bf16.msra.mxu0 %v3737
          %3914 = vmatpush.bf16.msra.mxu0 %v3735
          %3915 = vmatpush.bf16.msra.mxu0 %v3733
          %3916 = vmatpush.bf16.msra.mxu0 %v3731
          %3917 = vmatpush.bf16.msra.mxu0 %v3729
          %3918 = vmatmul.bf16.gmra.mxu0 %v3452
          %v3919 = vpop.f32.mrf.mxu0
          %v3920 = vadd.f32 %v3907, %v3919
          %v3921 = vpop.f32.mrf.mxu0
          %3922 = vdwg.mxu0
          %3923 = vmatpush.bf16.msra.mxu0 %v3759
          %3924 = vmatpush.bf16.msra.mxu0 %v3757
          %3925 = vmatpush.bf16.msra.mxu0 %v3755
          %3926 = vmatpush.bf16.msra.mxu0 %v3753
          %3927 = vmatpush.bf16.msra.mxu0 %v3751
          %3928 = vmatpush.bf16.msra.mxu0 %v3749
          %3929 = vmatpush.bf16.msra.mxu0 %v3747
          %3930 = vmatpush.bf16.msra.mxu0 %v3745
          %3931 = vmatmul.bf16.gmra.mxu0 %v3453
          %v3932 = vpop.f32.mrf.mxu0
          %v3933 = vadd.f32 %v3920, %v3932
          %v3934 = vpop.f32.mrf.mxu0
          %3935 = vdwg.mxu0
          %3936 = vmatpush.bf16.msra.mxu0 %v3775
          %3937 = vmatpush.bf16.msra.mxu0 %v3773
          %3938 = vmatpush.bf16.msra.mxu0 %v3771
          %3939 = vmatpush.bf16.msra.mxu0 %v3769
          %3940 = vmatpush.bf16.msra.mxu0 %v3767
          %3941 = vmatpush.bf16.msra.mxu0 %v3765
          %3942 = vmatpush.bf16.msra.mxu0 %v3763
          %3943 = vmatpush.bf16.msra.mxu0 %v3761
          %3944 = vmatmul.bf16.gmra.mxu0 %v3454
          %v3945 = vpop.f32.mrf.mxu0
          %v3946 = vadd.f32 %v3933, %v3945
          %v3947 = vpop.f32.mrf.mxu0
          %3948 = vdwg.mxu0
          %v3949 = vmax.f32 %v3894, 0.0
          %v3950 = vmax.f32 %v3946, 0.0
          %v3951 = vld [vmem:[%s11] sm:$0xff]
          %v3952 = vld [vmem:[%s11 + $0x8] sm:$0xff]
          %v3953 = vld [vmem:[%s11 + $0x10] sm:$0xff]
          %v3954 = vld [vmem:[%s11 + $0x18] sm:$0xff]
          %v3955 = vld [vmem:[%s11 + $0x20] sm:$0xff]
          %v3956 = vld [vmem:[%s11 + $0x28] sm:$0xff]
          %v3957 = vld [vmem:[%s11 + $0x30] sm:$0xff]
          %v3958 = vld [vmem:[%s11 + $0x38] sm:$0xff]
          %v3959 = vld [vmem:[%s11 + $0x40] sm:$0xff]
          %v3960 = vld [vmem:[%s11 + $0x48] sm:$0xff]
          %v3961 = vld [vmem:[%s11 + $0x50] sm:$0xff]
          %v3962 = vld [vmem:[%s11 + $0x58] sm:$0xff]
          %v3963 = vld [vmem:[%s11 + $0x60] sm:$0xff]
          %v3964 = vld [vmem:[%s11 + $0x68] sm:$0xff]
          %v3965 = vld [vmem:[%s11 + $0x70] sm:$0xff]
          %v3966 = vld [vmem:[%s11 + $0x78] sm:$0xff]
          %v3967 = vld [vmem:[%s11 + $0x80] sm:$0xff]
          %v3968 = vld [vmem:[%s11 + $0x88] sm:$0xff]
          %v3969 = vld [vmem:[%s11 + $0x90] sm:$0xff]
          %v3970 = vld [vmem:[%s11 + $0x98] sm:$0xff]
          %v3971 = vld [vmem:[%s11 + $0xa0] sm:$0xff]
          %v3972 = vld [vmem:[%s11 + $0xa8] sm:$0xff]
          %v3973 = vld [vmem:[%s11 + $0xb0] sm:$0xff]
          %v3974 = vld [vmem:[%s11 + $0xb8] sm:$0xff]
          %v3975 = vld [vmem:[%s11 + $0xc0] sm:$0xff]
          %v3976 = vld [vmem:[%s11 + $0xc8] sm:$0xff]
          %v3977 = vld [vmem:[%s11 + $0xd0] sm:$0xff]
          %v3978 = vld [vmem:[%s11 + $0xd8] sm:$0xff]
          %v3979 = vld [vmem:[%s11 + $0xe0] sm:$0xff]
          %v3980 = vld [vmem:[%s11 + $0xe8] sm:$0xff]
          %v3981 = vld [vmem:[%s11 + $0xf0] sm:$0xff]
          %v3982 = vld [vmem:[%s11 + $0xf8] sm:$0xff]
          %v3983 = vld [vmem:[%s12] sm:$0x1]
          %3984 = vmatpush.msra.mxu0 %v3966
          %3985 = vmatpush.msra.mxu0 %v3965
          %3986 = vmatpush.msra.mxu0 %v3964
          %3987 = vmatpush.msra.mxu0 %v3963
          %3988 = vmatpush.msra.mxu0 %v3962
          %3989 = vmatpush.msra.mxu0 %v3961
          %3990 = vmatpush.msra.mxu0 %v3960
          %3991 = vmatpush.msra.mxu0 %v3959
          %3992 = vmatpush.msra.mxu0 %v3958
          %3993 = vmatpush.msra.mxu0 %v3957
          %3994 = vmatpush.msra.mxu0 %v3956
          %3995 = vmatpush.msra.mxu0 %v3955
          %3996 = vmatpush.msra.mxu0 %v3954
          %3997 = vmatpush.msra.mxu0 %v3953
          %3998 = vmatpush.msra.mxu0 %v3952
          %3999 = vmatpush.msra.mxu0 %v3951
          %4000 = vmatmul.f32.gmra.mxu0 %v3949
          %v4001 = vpop.f32.mrf.mxu0
          %v4002 = vadd.f32 %v3983, %v4001
          %4003 = vdwg.mxu0
          %4004 = vmatpush.msra.mxu0 %v3982
          %4005 = vmatpush.msra.mxu0 %v3981
          %4006 = vmatpush.msra.mxu0 %v3980
          %4007 = vmatpush.msra.mxu0 %v3979
          %4008 = vmatpush.msra.mxu0 %v3978
          %4009 = vmatpush.msra.mxu0 %v3977
          %4010 = vmatpush.msra.mxu0 %v3976
          %4011 = vmatpush.msra.mxu0 %v3975
          %4012 = vmatpush.msra.mxu0 %v3974
          %4013 = vmatpush.msra.mxu0 %v3973
          %4014 = vmatpush.msra.mxu0 %v3972
          %4015 = vmatpush.msra.mxu0 %v3971
          %4016 = vmatpush.msra.mxu0 %v3970
          %4017 = vmatpush.msra.mxu0 %v3969
          %4018 = vmatpush.msra.mxu0 %v3968
          %4019 = vmatpush.msra.mxu0 %v3967
          %4020 = vmatmul.f32.gmra.mxu0 %v3950
          %v4021 = vpop.f32.mrf.mxu0
          %v4022 = vadd.f32 %v4002, %v4021
          %4023 = vdwg.mxu0
          %vm4024 = vcmask 65536
          %4025 = vst.msk [vmem:[%s505] sm:$0x1] %vm4024, %v4022
        $region96: #{tpu_custom_call.1} parent=71 // pred_fallthru
          _
        %s4026 = sand.u32 %s329, 1
        %s4027 = scalar_lea.sflag [#allocation5], %s4026
        %s4028 = sand.u32 %s329, 1
        %s4029 = scalar_lea.vmem [#allocation9], %s4028
        // Predicated region
        $region97: #{tpu_custom_call.1} parent=71 // pred_check
          %p4030 = pneg %p339
        $region98: #{tpu_custom_call.1} parent=71 // pred_check_branch
          %4032 = sbr.rel (%p4030) target = $region100
        $region99: #{tpu_custom_call.1} parent=71 // pred_region
          %4034 = vsyncadd %s4027, 0
          %s4035 = scalar_lea.hbm %s13, %s33
          %s4037 = sshll.u32 %s4029, 4
          %s4038 = int_to_ptr.vmem [resolvable:$true] %s4037
          %s4039 = sshll.u32 %s4035, 4
          %s4040 = int_to_ptr.hbm [resolvable:$true] %s4039
          %4042 = dma.vmem_to_hbm [thread:$0]  %s4038, 16, %s4040, %s4027
        $region100: #{tpu_custom_call.1} parent=71 // pred_fallthru
          _
      $region72: #{tpu_custom_call.1} parent=5 // pred_fallthru
        _
      %p4043 = scmp.le.s32.totalorder 2, %s24
      // Predicated region
      $region101: #{tpu_custom_call.1} parent=5 // pred_check
        %p4044 = pneg %p4043
      $region102: #{tpu_custom_call.1} parent=5 // pred_check_branch
        %4046 = sbr.rel (%p4044) target = $region104
      $region103: #{tpu_custom_call.1} parent=5 // pred_region
        %s4047 = ssub.s32 %s24, 2
        // Predicated region
        $region105: #{tpu_custom_call.1} parent=103 // pred_check
          %p4048 = pneg %p345
        $region106: #{tpu_custom_call.1} parent=103 // pred_check_branch
          %4050 = sbr.rel (%p4048) target = $region108
        $region107: #{tpu_custom_call.1} parent=103 // pred_region
          %s4051 = sand.u32 %s330, 1
          %s4052 = scalar_lea.sflag [#allocation5], %s4051
          %s4053 = sand.u32 %s330, 1
          %s4054 = scalar_lea.vmem [#allocation9], %s4053
          %4056 = dma.done %s4052, 16
        $region108: #{tpu_custom_call.1} parent=103 // pred_fallthru
          _
      $region104: #{tpu_custom_call.1} parent=5 // pred_fallthru
        _
    $region6: #{tpu_custom_call.1} parent=1 // loop_footer
      %s28 = sadd.s32 1, %s24
    $region7: #{tpu_custom_call.1} parent=1 // loop_footer_branch
      %23 = sbr.rel target = $region3
    $region8: #{tpu_custom_call.1} parent=1 // loop_exit
      _
    %4057 = vsyncpa [#allocation4], 1
    %s4058 = scalar_lea.sflag [#allocation4], 1
    %4059 = vsyncpa %s4058, 1
    %4060 = vsyncpa [#allocation7], 1
    %4061 = vsyncpa [#allocation5], 1
    %s4062 = scalar_lea.sflag [#allocation5], 1
    %4063 = vsyncpa %s4062, 1

</llo_original>
